<compile_context>
chip_gen: v7x
topology: tpu7x:2x2x1
jax: 0.10.0
libtpu: 0.0.40
codegen_flags: <defaults>
</compile_context>

<pallas_src>
import jax
import jax.numpy as jnp
import numpy as np
from jax.experimental import pallas as pl
from jax.experimental.pallas import tpu as pltpu


# ----------------------------------------------------------------------------
# Fused Pallas kernel factory: one batch tile of Bt images per grid step.
# ----------------------------------------------------------------------------
def _make_cnn_kernel(Bt):
    def kernel(x_ref,
               m1a_ref, m1b_ref, m1c_ref, b1_ref,
               se1_ref, so1_ref, pe1_ref, po1_ref,
               m2a_ref, m2b_ref, m2c_ref, b2_ref,
               se2_ref, so2_ref, pe2_ref, po2_ref,
               wf1_ref, bf1_ref, wf2_ref, bf2_ref, wf3_ref, bf3_ref,
               o_ref):
        f32 = jnp.float32
        # Hoist every constant load out of the unrolled per-image loop
        # (JAX does not CSE them if issued inside the loop).
        M1 = (m1a_ref[...], m1b_ref[...], m1c_ref[...])
        B1 = b1_ref[...]
        SE1, SO1 = se1_ref[...], so1_ref[...]
        PE1, PO1 = pe1_ref[...], po1_ref[...]
        M2 = (m2a_ref[...], m2b_ref[...], m2c_ref[...])
        B2 = b2_ref[...]
        SE2, SO2 = se2_ref[...], so2_ref[...]
        PE2, PO2 = pe2_ref[...], po2_ref[...]

        # ---- per-image conv/pool stages (static, unrolled loop) -------------
        p2_list = []
        for b in range(Bt):
            x = x_ref[b]                                          # (28, 28)

            # conv1 (1->6, 3x3 valid): 3 banded matmuls; layout (oy, ox*6+co)
            acc1 = jnp.dot(x[0:26, :], M1[0], preferred_element_type=f32)
            acc1 = acc1 + jnp.dot(x[1:27, :], M1[1], preferred_element_type=f32)
            acc1 = acc1 + jnp.dot(x[2:28, :], M1[2], preferred_element_type=f32)
            a1 = jnp.maximum(acc1 + B1, 0.0)                      # (26, 156)

            # maxpool 2x2/2: even/odd row + lane-group 0/1 selection matmuls
            r1 = jnp.maximum(jnp.dot(SE1, a1, preferred_element_type=f32),
                             jnp.dot(SO1, a1, preferred_element_type=f32))
            p1 = jnp.maximum(jnp.dot(r1, PE1, preferred_element_type=f32),
                             jnp.dot(r1, PO1, preferred_element_type=f32))
            # p1: (13, 78), lanes = (x, channel)

            # conv2 (6->16, 3x3): 3 banded matmuls; layout (oy, ox*16+co)
            acc2 = jnp.dot(p1[0:11, :], M2[0], preferred_element_type=f32)
            acc2 = acc2 + jnp.dot(p1[1:12, :], M2[1], preferred_element_type=f32)
            acc2 = acc2 + jnp.dot(p1[2:13, :], M2[2], preferred_element_type=f32)
            a2 = jnp.maximum(acc2 + B2, 0.0)                      # (11, 176)

            r2 = jnp.maximum(jnp.dot(SE2, a2, preferred_element_type=f32),
                             jnp.dot(SO2, a2, preferred_element_type=f32))
            p2 = jnp.maximum(jnp.dot(r2, PE2, preferred_element_type=f32),
                             jnp.dot(r2, PO2, preferred_element_type=f32))
            p2_list.append(p2)                                    # (5, 80)

        # ---- fc1 batched across the Bt images --------------------------------
        # PyTorch's NCHW flatten is folded into wf1's (h, w, c) row order; the
        # 5 row-chunk matmuls are (Bt,80)@(80,128) so the MXU gets M=Bt rows
        # instead of M=1, with no in-kernel reshape.
        hacc = None
        for r in range(5):
            if Bt == 1:
                P2r = p2_list[0][r:r + 1, :]
            else:
                P2r = jnp.concatenate(
                    [p2_list[b][r:r + 1, :] for b in range(Bt)], axis=0)
            term = jnp.dot(P2r, wf1_ref[r * 80:(r + 1) * 80, :],
                           preferred_element_type=f32)
            hacc = term if hacc is None else hacc + term
        h1 = jnp.maximum(hacc + bf1_ref[...], 0.0)                # (Bt, 128)

        # ---- fc2 + ReLU, fc3 (all padded to 128 lanes) -----------------------
        h2 = jnp.maximum(jnp.dot(h1, wf2_ref[...], preferred_element_type=f32)
                         + bf2_ref[...], 0.0)                     # (Bt, 128)
        logits = (jnp.dot(h2, wf3_ref[...], preferred_element_type=f32)
                  + bf3_ref[...])                                 # (Bt, 128)

        # ---- log_softmax over the 10 real class lanes (lanes >= 10 are pad)
        lane = jax.lax.broadcasted_iota(jnp.int32, (Bt, 128), 1)
        valid = lane < 10
        masked = jnp.where(valid, logits, jnp.float32(-1e30))
        m = jnp.max(masked, axis=1, keepdims=True)
        s = masked - m
        denom = jnp.sum(jnp.where(valid, jnp.exp(s), 0.0), axis=1, keepdims=True)
        o_ref[0] = s - jnp.log(denom)                             # (Bt, 128)

    return kernel


# ----------------------------------------------------------------------------
# One-time parameter preparation (host / numpy, outside the per-call path).
# ----------------------------------------------------------------------------
def prepare_params(params):
    w1 = np.asarray(params["w_conv1"], np.float32)   # (6, 1, 3, 3)
    b1 = np.asarray(params["b_conv1"], np.float32)   # (6,)
    w2 = np.asarray(params["w_conv2"], np.float32)   # (16, 6, 3, 3)
    b2 = np.asarray(params["b_conv2"], np.float32)   # (16,)
    wf1 = np.asarray(params["w_fc1"], np.float32)    # (120, 400)
    bf1 = np.asarray(params["b_fc1"], np.float32)
    wf2 = np.asarray(params["w_fc2"], np.float32)    # (60, 120)
    bf2 = np.asarray(params["b_fc2"], np.float32)
    wf3 = np.asarray(params["w_fc3"], np.float32)    # (10, 60)
    bf3 = np.asarray(params["b_fc3"], np.float32)

    # conv1 banded weights; one (28, 156) matrix per kernel row di so the
    # kernel never slices a weight ref at a sublane-unaligned offset.
    M1 = np.zeros((3, 28, 26 * 6), np.float32)
    for di in range(3):
        for ox in range(26):
            for dj in range(3):
                M1[di, ox + dj, ox * 6:(ox + 1) * 6] = w1[:, 0, di, dj]
    b1w = np.tile(b1, 26)[None, :]                    # (1, 156)

    # conv2 banded weights over the (x, channel)-interleaved lanes of pool1
    M2 = np.zeros((3, 13 * 6, 11 * 16), np.float32)
    for di in range(3):
        for ox in range(11):
            for dj in range(3):
                for ci in range(6):
                    M2[di, (ox + dj) * 6 + ci,
                       ox * 16:(ox + 1) * 16] = w2[:, ci, di, dj]
    b2w = np.tile(b2, 11)[None, :]                    # (1, 176)

    # 2x2/2 max-pool: even/odd row and lane-group selection matrices
    SE1 = np.zeros((13, 26), np.float32)
    SO1 = np.zeros((13, 26), np.float32)
    SE1[np.arange(13), 2 * np.arange(13)] = 1.0
    SO1[np.arange(13), 2 * np.arange(13) + 1] = 1.0
    PE1 = np.zeros((26 * 6, 13 * 6), np.float32)
    PO1 = np.zeros((26 * 6, 13 * 6), np.float32)
    for j in range(13):
        for c in range(6):
            PE1[(2 * j) * 6 + c, j * 6 + c] = 1.0
            PO1[(2 * j + 1) * 6 + c, j * 6 + c] = 1.0

    SE2 = np.zeros((5, 11), np.float32)
    SO2 = np.zeros((5, 11), np.float32)
    SE2[np.arange(5), 2 * np.arange(5)] = 1.0
    SO2[np.arange(5), 2 * np.arange(5) + 1] = 1.0
    PE2 = np.zeros((11 * 16, 5 * 16), np.float32)
    PO2 = np.zeros((11 * 16, 5 * 16), np.float32)
    for j in range(5):
        for c in range(16):
            PE2[(2 * j) * 16 + c, j * 16 + c] = 1.0
            PO2[(2 * j + 1) * 16 + c, j * 16 + c] = 1.0

    # fc1: fold PyTorch NCHW flatten (c*25 + h*5 + w) into the kernel's
    # (h, w, c) row order; zero-pad the 120-wide output to 128 lanes.
    Wf1 = np.zeros((400, 128), np.float32)
    for h in range(5):
        for w in range(5):
            for c in range(16):
                Wf1[h * 80 + w * 16 + c, :120] = wf1[:, c * 25 + h * 5 + w]
    bf1p = np.zeros((1, 128), np.float32)
    bf1p[0, :120] = bf1

    Wf2 = np.zeros((128, 128), np.float32)
    Wf2[:120, :60] = wf2.T
    bf2p = np.zeros((1, 128), np.float32)
    bf2p[0, :60] = bf2

    # fc3 padded to a lane-dense 128-wide output (kernel masks lanes >= 10).
    Wf3 = np.zeros((128, 128), np.float32)
    Wf3[:60, :10] = wf3.T
    bf3p = np.zeros((1, 128), np.float32)
    bf3p[0, :10] = bf3

    arrs = (M1[0], M1[1], M1[2], b1w, SE1, SO1, PE1, PO1,
            M2[0], M2[1], M2[2], b2w, SE2, SO2, PE2, PO2,
            Wf1, bf1p, Wf2, bf2p, Wf3, bf3p)
    return tuple(jnp.asarray(a) for a in arrs)


# ----------------------------------------------------------------------------
# Forward: a single pallas_call, grid over batch tiles of Bt images.
# ----------------------------------------------------------------------------
def _pick_batch_tile(B):
    # Amortize the fixed per-grid-step cost over several images, but keep at
    # least 2 grid steps when possible so the "parallel" batch axis can still
    # shard across both TensorCores on v7x.
    if B >= 16:
        return 8
    if B >= 2:
        return max(1, B // 2)
    return 1


@jax.jit
def cnn_forward(x_nchw, consts):
    B = x_nchw.shape[0]
    assert x_nchw.shape[1:] == (1, 28, 28)
    x = x_nchw.reshape(B, 28, 28).astype(jnp.float32)

    Bt = _pick_batch_tile(B)
    num_steps = pl.cdiv(B, Bt)
    Bpad = num_steps * Bt
    if Bpad != B:                      # zero-pad the ragged tail (sliced off below)
        x = jnp.pad(x, ((0, Bpad - B), (0, 0), (0, 0)))

    def const_spec(a):
        nd = a.ndim
        return pl.BlockSpec(a.shape, lambda s, _n=nd: (0,) * _n)

    const_bytes = sum(int(c.size) * 4 for c in consts)
    cost = pl.CostEstimate(
        flops=int(3.0e6) * Bpad,                              # ~3 MFLOP / image
        transcendentals=128 * Bpad,                           # exp in log_softmax
        bytes_accessed=(28 * 28 * 4 + 128 * 4) * Bpad + const_bytes,
    )

    out = pl.pallas_call(
        _make_cnn_kernel(Bt),
        out_shape=jax.ShapeDtypeStruct((num_steps, Bt, 128), jnp.float32),
        grid=(num_steps,),
        in_specs=[pl.BlockSpec((Bt, 28, 28), lambda s: (s, 0, 0))]
                 + [const_spec(a) for a in consts],
        out_specs=pl.BlockSpec((1, Bt, 128), lambda s: (s, 0, 0)),
        compiler_params=pltpu.CompilerParams(
            dimension_semantics=("parallel",)),
        cost_estimate=cost,
    )(x, *consts)
    # Lane-dense (Bt,128) blocks in-kernel; trim padding lanes/rows here.
    return out.reshape(Bpad, 128)[:B, :10]


# ----------------------------------------------------------------------------
# Pure-JAX reference (for silent correctness check)
# ----------------------------------------------------------------------------
def cnn_reference(x, p):
    dn = ("NCHW", "OIHW", "NCHW")
    out = jax.lax.conv_general_dilated(x, p["w_conv1"], (1, 1), "VALID",
                                       dimension_numbers=dn)
    out = jax.nn.relu(out + p["b_conv1"].reshape(1, 6, 1, 1))
    out = jax.lax.reduce_window(out, -jnp.inf, jax.lax.max,
                                (1, 1, 2, 2), (1, 1, 2, 2), "VALID")
    out = jax.lax.conv_general_dilated(out, p["w_conv2"], (1, 1), "VALID",
                                       dimension_numbers=dn)
    out = jax.nn.relu(out + p["b_conv2"].reshape(1, 16, 1, 1))
    out = jax.lax.reduce_window(out, -jnp.inf, jax.lax.max,
                                (1, 1, 2, 2), (1, 1, 2, 2), "VALID")
    out = out.reshape(x.shape[0], 16 * 5 * 5)
    out = jax.nn.relu(out @ p["w_fc1"].T + p["b_fc1"])
    out = jax.nn.relu(out @ p["w_fc2"].T + p["b_fc2"])
    out = out @ p["w_fc3"].T + p["b_fc3"]
    return jax.nn.log_softmax(out, axis=1)


# ----------------------------------------------------------------------------
# Deterministic parameter init (PyTorch-style U(-1/sqrt(fan_in), 1/sqrt(fan_in)))
# ----------------------------------------------------------------------------
def init_params(key):
    ks = jax.random.split(key, 10)

    def u(k, shape, fan_in):
        bound = 1.0 / float(np.sqrt(fan_in))
        return jax.random.uniform(k, shape, jnp.float32, -bound, bound)

    return {
        "w_conv1": u(ks[0], (6, 1, 3, 3), 1 * 3 * 3),
        "b_conv1": u(ks[1], (6,), 1 * 3 * 3),
        "w_conv2": u(ks[2], (16, 6, 3, 3), 6 * 3 * 3),
        "b_conv2": u(ks[3], (16,), 6 * 3 * 3),
        "w_fc1": u(ks[4], (120, 400), 400),
        "b_fc1": u(ks[5], (120,), 400),
        "w_fc2": u(ks[6], (60, 120), 120),
        "b_fc2": u(ks[7], (60,), 120),
        "w_fc3": u(ks[8], (10, 60), 60),
        "b_fc3": u(ks[9], (10,), 60),
    }


if __name__ == "__main__":
    key = jax.random.PRNGKey(0)
    k_param, k_input = jax.random.split(key)
    params = init_params(k_param)
    consts = prepare_params(params)   # one-time parameter transforms

    # Small case: batch=2 -> Bt=1, 2 grid steps (both v7x TCs get work).
    x = jax.random.normal(k_input, (2, 1, 28, 28), dtype=jnp.float32)
    out = jax.block_until_ready(cnn_forward(x, consts))
    ref = jax.block_until_ready(cnn_reference(x, params))
    np.testing.assert_allclose(np.asarray(out), np.asarray(ref),
                               rtol=1e-4, atol=1e-4)
    assert out.shape == (2, 10)

    # Larger case: batch=20 -> Bt=8, 3 grid steps, exercises the batched FC
    # path and the zero-padded ragged tail.
    x2 = jax.random.normal(jax.random.PRNGKey(1), (20, 1, 28, 28),
                           dtype=jnp.float32)
    out2 = jax.block_until_ready(cnn_forward(x2, consts))
    ref2 = jax.block_until_ready(cnn_reference(x2, params))
    np.testing.assert_allclose(np.asarray(out2), np.asarray(ref2),
                               rtol=1e-4, atol=1e-4)
    assert out2.shape == (20, 10)

    print("KERNEL_OK")
</pallas_src>

<mosaic_0001>
module attributes {stable_mosaic.version = 11 : i64} {
  func.func @kernel(%arg0: i32, %arg1: memref<1x28x28xf32, #tpu.memory_space<vmem>>, %arg2: memref<28x156xf32, #tpu.memory_space<vmem>>, %arg3: memref<28x156xf32, #tpu.memory_space<vmem>>, %arg4: memref<28x156xf32, #tpu.memory_space<vmem>>, %arg5: memref<1x156xf32, #tpu.memory_space<vmem>>, %arg6: memref<13x26xf32, #tpu.memory_space<vmem>>, %arg7: memref<13x26xf32, #tpu.memory_space<vmem>>, %arg8: memref<156x78xf32, #tpu.memory_space<vmem>>, %arg9: memref<156x78xf32, #tpu.memory_space<vmem>>, %arg10: memref<78x176xf32, #tpu.memory_space<vmem>>, %arg11: memref<78x176xf32, #tpu.memory_space<vmem>>, %arg12: memref<78x176xf32, #tpu.memory_space<vmem>>, %arg13: memref<1x176xf32, #tpu.memory_space<vmem>>, %arg14: memref<5x11xf32, #tpu.memory_space<vmem>>, %arg15: memref<5x11xf32, #tpu.memory_space<vmem>>, %arg16: memref<176x80xf32, #tpu.memory_space<vmem>>, %arg17: memref<176x80xf32, #tpu.memory_space<vmem>>, %arg18: memref<400x128xf32, #tpu.memory_space<vmem>>, %arg19: memref<1x128xf32, #tpu.memory_space<vmem>>, %arg20: memref<128x128xf32, #tpu.memory_space<vmem>>, %arg21: memref<1x128xf32, #tpu.memory_space<vmem>>, %arg22: memref<128x128xf32, #tpu.memory_space<vmem>>, %arg23: memref<1x128xf32, #tpu.memory_space<vmem>>, %arg24: memref<1x1x128xf32, #tpu.memory_space<vmem>>) attributes {dimension_semantics = [#tpu.dimension_semantics<parallel>], iteration_bounds = array<i64: 2>, scalar_prefetch = 0 : i64, scratch_operands = 0 : i64, tpu.core_type = #tpu.core_type<tc>, window_params = [{transform_indices = @transform_0, window_bounds = array<i64: 1, 28, 28>}, {pipeline_mode = #tpu.pipeline_mode<synchronous>, transform_indices = @transform_1, window_bounds = array<i64: 28, 156>}, {pipeline_mode = #tpu.pipeline_mode<synchronous>, transform_indices = @transform_2, window_bounds = array<i64: 28, 156>}, {pipeline_mode = #tpu.pipeline_mode<synchronous>, transform_indices = @transform_3, window_bounds = array<i64: 28, 156>}, {pipeline_mode = #tpu.pipeline_mode<synchronous>, transform_indices = @transform_4, window_bounds = array<i64: 1, 156>}, {pipeline_mode = #tpu.pipeline_mode<synchronous>, transform_indices = @transform_5, window_bounds = array<i64: 13, 26>}, {pipeline_mode = #tpu.pipeline_mode<synchronous>, transform_indices = @transform_6, window_bounds = array<i64: 13, 26>}, {pipeline_mode = #tpu.pipeline_mode<synchronous>, transform_indices = @transform_7, window_bounds = array<i64: 156, 78>}, {pipeline_mode = #tpu.pipeline_mode<synchronous>, transform_indices = @transform_8, window_bounds = array<i64: 156, 78>}, {pipeline_mode = #tpu.pipeline_mode<synchronous>, transform_indices = @transform_9, window_bounds = array<i64: 78, 176>}, {pipeline_mode = #tpu.pipeline_mode<synchronous>, transform_indices = @transform_10, window_bounds = array<i64: 78, 176>}, {pipeline_mode = #tpu.pipeline_mode<synchronous>, transform_indices = @transform_11, window_bounds = array<i64: 78, 176>}, {pipeline_mode = #tpu.pipeline_mode<synchronous>, transform_indices = @transform_12, window_bounds = array<i64: 1, 176>}, {pipeline_mode = #tpu.pipeline_mode<synchronous>, transform_indices = @transform_13, window_bounds = array<i64: 5, 11>}, {pipeline_mode = #tpu.pipeline_mode<synchronous>, transform_indices = @transform_14, window_bounds = array<i64: 5, 11>}, {pipeline_mode = #tpu.pipeline_mode<synchronous>, transform_indices = @transform_15, window_bounds = array<i64: 176, 80>}, {pipeline_mode = #tpu.pipeline_mode<synchronous>, transform_indices = @transform_16, window_bounds = array<i64: 176, 80>}, {pipeline_mode = #tpu.pipeline_mode<synchronous>, transform_indices = @transform_17, window_bounds = array<i64: 400, 128>}, {pipeline_mode = #tpu.pipeline_mode<synchronous>, transform_indices = @transform_18, window_bounds = array<i64: 1, 128>}, {pipeline_mode = #tpu.pipeline_mode<synchronous>, transform_indices = @transform_19, window_bounds = array<i64: 128, 128>}, {pipeline_mode = #tpu.pipeline_mode<synchronous>, transform_indices = @transform_20, window_bounds = array<i64: 1, 128>}, {pipeline_mode = #tpu.pipeline_mode<synchronous>, transform_indices = @transform_21, window_bounds = array<i64: 128, 128>}, {pipeline_mode = #tpu.pipeline_mode<synchronous>, transform_indices = @transform_22, window_bounds = array<i64: 1, 128>}, {transform_indices = @transform_23, window_bounds = array<i64: 1, 1, 128>}]} {
    %c0 = arith.constant 0 : index
    %c0_0 = arith.constant 0 : index
    %0 = vector.load %arg2[%c0, %c0_0] : memref<28x156xf32, #tpu.memory_space<vmem>>, vector<28x156xf32>
    %c0_1 = arith.constant 0 : index
    %c0_2 = arith.constant 0 : index
    %1 = vector.load %arg3[%c0_1, %c0_2] : memref<28x156xf32, #tpu.memory_space<vmem>>, vector<28x156xf32>
    %c0_3 = arith.constant 0 : index
    %c0_4 = arith.constant 0 : index
    %2 = vector.load %arg4[%c0_3, %c0_4] : memref<28x156xf32, #tpu.memory_space<vmem>>, vector<28x156xf32>
    %c0_5 = arith.constant 0 : index
    %c0_6 = arith.constant 0 : index
    %3 = vector.load %arg5[%c0_5, %c0_6] : memref<1x156xf32, #tpu.memory_space<vmem>>, vector<1x156xf32>
    %c0_7 = arith.constant 0 : index
    %c0_8 = arith.constant 0 : index
    %4 = vector.load %arg6[%c0_7, %c0_8] : memref<13x26xf32, #tpu.memory_space<vmem>>, vector<13x26xf32>
    %c0_9 = arith.constant 0 : index
    %c0_10 = arith.constant 0 : index
    %5 = vector.load %arg7[%c0_9, %c0_10] : memref<13x26xf32, #tpu.memory_space<vmem>>, vector<13x26xf32>
    %c0_11 = arith.constant 0 : index
    %c0_12 = arith.constant 0 : index
    %6 = vector.load %arg8[%c0_11, %c0_12] : memref<156x78xf32, #tpu.memory_space<vmem>>, vector<156x78xf32>
    %c0_13 = arith.constant 0 : index
    %c0_14 = arith.constant 0 : index
    %7 = vector.load %arg9[%c0_13, %c0_14] : memref<156x78xf32, #tpu.memory_space<vmem>>, vector<156x78xf32>
    %c0_15 = arith.constant 0 : index
    %c0_16 = arith.constant 0 : index
    %8 = vector.load %arg10[%c0_15, %c0_16] : memref<78x176xf32, #tpu.memory_space<vmem>>, vector<78x176xf32>
    %c0_17 = arith.constant 0 : index
    %c0_18 = arith.constant 0 : index
    %9 = vector.load %arg11[%c0_17, %c0_18] : memref<78x176xf32, #tpu.memory_space<vmem>>, vector<78x176xf32>
    %c0_19 = arith.constant 0 : index
    %c0_20 = arith.constant 0 : index
    %10 = vector.load %arg12[%c0_19, %c0_20] : memref<78x176xf32, #tpu.memory_space<vmem>>, vector<78x176xf32>
    %c0_21 = arith.constant 0 : index
    %c0_22 = arith.constant 0 : index
    %11 = vector.load %arg13[%c0_21, %c0_22] : memref<1x176xf32, #tpu.memory_space<vmem>>, vector<1x176xf32>
    %c0_23 = arith.constant 0 : index
    %c0_24 = arith.constant 0 : index
    %12 = vector.load %arg14[%c0_23, %c0_24] : memref<5x11xf32, #tpu.memory_space<vmem>>, vector<5x11xf32>
    %c0_25 = arith.constant 0 : index
    %c0_26 = arith.constant 0 : index
    %13 = vector.load %arg15[%c0_25, %c0_26] : memref<5x11xf32, #tpu.memory_space<vmem>>, vector<5x11xf32>
    %c0_27 = arith.constant 0 : index
    %c0_28 = arith.constant 0 : index
    %14 = vector.load %arg16[%c0_27, %c0_28] : memref<176x80xf32, #tpu.memory_space<vmem>>, vector<176x80xf32>
    %c0_29 = arith.constant 0 : index
    %c0_30 = arith.constant 0 : index
    %15 = vector.load %arg17[%c0_29, %c0_30] : memref<176x80xf32, #tpu.memory_space<vmem>>, vector<176x80xf32>
    %c0_31 = arith.constant 0 : index
    %c0_32 = arith.constant 0 : index
    %c0_33 = arith.constant 0 : index
    %16 = vector.load %arg1[%c0_31, %c0_32, %c0_33] : memref<1x28x28xf32, #tpu.memory_space<vmem>>, vector<1x28x28xf32>
    %17 = vector.shape_cast %16 : vector<1x28x28xf32> to vector<28x28xf32>
    %18 = vector.extract_strided_slice %17 {offsets = [0, 0], sizes = [26, 28], strides = [1, 1]} : vector<28x28xf32> to vector<26x28xf32>
    %cst = arith.constant dense<0.000000e+00> : vector<26x156xf32>
    %19 = tpu.matmul %18, %0, %cst {dimension_numbers = #tpu.dot_dimension_numbers<[1], [0], [0], [1], [0, 0, 1, 1], [], []>} : vector<26x28xf32>, vector<28x156xf32>, vector<26x156xf32> -> vector<26x156xf32>
    %20 = vector.extract_strided_slice %17 {offsets = [1, 0], sizes = [26, 28], strides = [1, 1]} : vector<28x28xf32> to vector<26x28xf32>
    %cst_34 = arith.constant dense<0.000000e+00> : vector<26x156xf32>
    %21 = tpu.matmul %20, %1, %cst_34 {dimension_numbers = #tpu.dot_dimension_numbers<[1], [0], [0], [1], [0, 0, 1, 1], [], []>} : vector<26x28xf32>, vector<28x156xf32>, vector<26x156xf32> -> vector<26x156xf32>
    %22 = arith.addf %19, %21 : vector<26x156xf32>
    %23 = vector.extract_strided_slice %17 {offsets = [2, 0], sizes = [26, 28], strides = [1, 1]} : vector<28x28xf32> to vector<26x28xf32>
    %cst_35 = arith.constant dense<0.000000e+00> : vector<26x156xf32>
    %24 = tpu.matmul %23, %2, %cst_35 {dimension_numbers = #tpu.dot_dimension_numbers<[1], [0], [0], [1], [0, 0, 1, 1], [], []>} : vector<26x28xf32>, vector<28x156xf32>, vector<26x156xf32> -> vector<26x156xf32>
    %25 = arith.addf %22, %24 : vector<26x156xf32>
    %26 = vector.broadcast %3 : vector<1x156xf32> to vector<26x156xf32>
    %27 = arith.addf %25, %26 : vector<26x156xf32>
    %cst_36 = arith.constant 0.000000e+00 : f32
    %28 = vector.broadcast %cst_36 : f32 to vector<26x156xf32>
    %29 = arith.maximumf %27, %28 : vector<26x156xf32>
    %cst_37 = arith.constant dense<0.000000e+00> : vector<13x156xf32>
    %30 = tpu.matmul %4, %29, %cst_37 {dimension_numbers = #tpu.dot_dimension_numbers<[1], [0], [0], [1], [0, 0, 1, 1], [], []>} : vector<13x26xf32>, vector<26x156xf32>, vector<13x156xf32> -> vector<13x156xf32>
    %cst_38 = arith.constant dense<0.000000e+00> : vector<13x156xf32>
    %31 = tpu.matmul %5, %29, %cst_38 {dimension_numbers = #tpu.dot_dimension_numbers<[1], [0], [0], [1], [0, 0, 1, 1], [], []>} : vector<13x26xf32>, vector<26x156xf32>, vector<13x156xf32> -> vector<13x156xf32>
    %32 = arith.maximumf %30, %31 : vector<13x156xf32>
    %cst_39 = arith.constant dense<0.000000e+00> : vector<13x78xf32>
    %33 = tpu.matmul %32, %6, %cst_39 {dimension_numbers = #tpu.dot_dimension_numbers<[1], [0], [0], [1], [0, 0, 1, 1], [], []>} : vector<13x156xf32>, vector<156x78xf32>, vector<13x78xf32> -> vector<13x78xf32>
    %cst_40 = arith.constant dense<0.000000e+00> : vector<13x78xf32>
    %34 = tpu.matmul %32, %7, %cst_40 {dimension_numbers = #tpu.dot_dimension_numbers<[1], [0], [0], [1], [0, 0, 1, 1], [], []>} : vector<13x156xf32>, vector<156x78xf32>, vector<13x78xf32> -> vector<13x78xf32>
    %35 = arith.maximumf %33, %34 : vector<13x78xf32>
    %36 = vector.extract_strided_slice %35 {offsets = [0, 0], sizes = [11, 78], strides = [1, 1]} : vector<13x78xf32> to vector<11x78xf32>
    %cst_41 = arith.constant dense<0.000000e+00> : vector<11x176xf32>
    %37 = tpu.matmul %36, %8, %cst_41 {dimension_numbers = #tpu.dot_dimension_numbers<[1], [0], [0], [1], [0, 0, 1, 1], [], []>} : vector<11x78xf32>, vector<78x176xf32>, vector<11x176xf32> -> vector<11x176xf32>
    %38 = vector.extract_strided_slice %35 {offsets = [1, 0], sizes = [11, 78], strides = [1, 1]} : vector<13x78xf32> to vector<11x78xf32>
    %cst_42 = arith.constant dense<0.000000e+00> : vector<11x176xf32>
    %39 = tpu.matmul %38, %9, %cst_42 {dimension_numbers = #tpu.dot_dimension_numbers<[1], [0], [0], [1], [0, 0, 1, 1], [], []>} : vector<11x78xf32>, vector<78x176xf32>, vector<11x176xf32> -> vector<11x176xf32>
    %40 = arith.addf %37, %39 : vector<11x176xf32>
    %41 = vector.extract_strided_slice %35 {offsets = [2, 0], sizes = [11, 78], strides = [1, 1]} : vector<13x78xf32> to vector<11x78xf32>
    %cst_43 = arith.constant dense<0.000000e+00> : vector<11x176xf32>
    %42 = tpu.matmul %41, %10, %cst_43 {dimension_numbers = #tpu.dot_dimension_numbers<[1], [0], [0], [1], [0, 0, 1, 1], [], []>} : vector<11x78xf32>, vector<78x176xf32>, vector<11x176xf32> -> vector<11x176xf32>
    %43 = arith.addf %40, %42 : vector<11x176xf32>
    %44 = vector.broadcast %11 : vector<1x176xf32> to vector<11x176xf32>
    %45 = arith.addf %43, %44 : vector<11x176xf32>
    %cst_44 = arith.constant 0.000000e+00 : f32
    %46 = vector.broadcast %cst_44 : f32 to vector<11x176xf32>
    %47 = arith.maximumf %45, %46 : vector<11x176xf32>
    %cst_45 = arith.constant dense<0.000000e+00> : vector<5x176xf32>
    %48 = tpu.matmul %12, %47, %cst_45 {dimension_numbers = #tpu.dot_dimension_numbers<[1], [0], [0], [1], [0, 0, 1, 1], [], []>} : vector<5x11xf32>, vector<11x176xf32>, vector<5x176xf32> -> vector<5x176xf32>
    %cst_46 = arith.constant dense<0.000000e+00> : vector<5x176xf32>
    %49 = tpu.matmul %13, %47, %cst_46 {dimension_numbers = #tpu.dot_dimension_numbers<[1], [0], [0], [1], [0, 0, 1, 1], [], []>} : vector<5x11xf32>, vector<11x176xf32>, vector<5x176xf32> -> vector<5x176xf32>
    %50 = arith.maximumf %48, %49 : vector<5x176xf32>
    %cst_47 = arith.constant dense<0.000000e+00> : vector<5x80xf32>
    %51 = tpu.matmul %50, %14, %cst_47 {dimension_numbers = #tpu.dot_dimension_numbers<[1], [0], [0], [1], [0, 0, 1, 1], [], []>} : vector<5x176xf32>, vector<176x80xf32>, vector<5x80xf32> -> vector<5x80xf32>
    %cst_48 = arith.constant dense<0.000000e+00> : vector<5x80xf32>
    %52 = tpu.matmul %50, %15, %cst_48 {dimension_numbers = #tpu.dot_dimension_numbers<[1], [0], [0], [1], [0, 0, 1, 1], [], []>} : vector<5x176xf32>, vector<176x80xf32>, vector<5x80xf32> -> vector<5x80xf32>
    %53 = arith.maximumf %51, %52 : vector<5x80xf32>
    %54 = vector.extract_strided_slice %53 {offsets = [0, 0], sizes = [1, 80], strides = [1, 1]} : vector<5x80xf32> to vector<1x80xf32>
    %c0_49 = arith.constant 0 : index
    %c0_50 = arith.constant 0 : index
    %55 = vector.load %arg18[%c0_49, %c0_50] : memref<400x128xf32, #tpu.memory_space<vmem>>, vector<80x128xf32>
    %cst_51 = arith.constant dense<0.000000e+00> : vector<1x128xf32>
    %56 = tpu.matmul %54, %55, %cst_51 {dimension_numbers = #tpu.dot_dimension_numbers<[1], [0], [0], [1], [0, 0, 1, 1], [], []>} : vector<1x80xf32>, vector<80x128xf32>, vector<1x128xf32> -> vector<1x128xf32>
    %57 = vector.extract_strided_slice %53 {offsets = [1, 0], sizes = [1, 80], strides = [1, 1]} : vector<5x80xf32> to vector<1x80xf32>
    %c80 = arith.constant 80 : index
    %c0_52 = arith.constant 0 : index
    %58 = vector.load %arg18[%c80, %c0_52] : memref<400x128xf32, #tpu.memory_space<vmem>>, vector<80x128xf32>
    %cst_53 = arith.constant dense<0.000000e+00> : vector<1x128xf32>
    %59 = tpu.matmul %57, %58, %cst_53 {dimension_numbers = #tpu.dot_dimension_numbers<[1], [0], [0], [1], [0, 0, 1, 1], [], []>} : vector<1x80xf32>, vector<80x128xf32>, vector<1x128xf32> -> vector<1x128xf32>
    %60 = arith.addf %56, %59 : vector<1x128xf32>
    %61 = vector.extract_strided_slice %53 {offsets = [2, 0], sizes = [1, 80], strides = [1, 1]} : vector<5x80xf32> to vector<1x80xf32>
    %c160 = arith.constant 160 : index
    %c0_54 = arith.constant 0 : index
    %62 = vector.load %arg18[%c160, %c0_54] : memref<400x128xf32, #tpu.memory_space<vmem>>, vector<80x128xf32>
    %cst_55 = arith.constant dense<0.000000e+00> : vector<1x128xf32>
    %63 = tpu.matmul %61, %62, %cst_55 {dimension_numbers = #tpu.dot_dimension_numbers<[1], [0], [0], [1], [0, 0, 1, 1], [], []>} : vector<1x80xf32>, vector<80x128xf32>, vector<1x128xf32> -> vector<1x128xf32>
    %64 = arith.addf %60, %63 : vector<1x128xf32>
    %65 = vector.extract_strided_slice %53 {offsets = [3, 0], sizes = [1, 80], strides = [1, 1]} : vector<5x80xf32> to vector<1x80xf32>
    %c240 = arith.constant 240 : index
    %c0_56 = arith.constant 0 : index
    %66 = vector.load %arg18[%c240, %c0_56] : memref<400x128xf32, #tpu.memory_space<vmem>>, vector<80x128xf32>
    %cst_57 = arith.constant dense<0.000000e+00> : vector<1x128xf32>
    %67 = tpu.matmul %65, %66, %cst_57 {dimension_numbers = #tpu.dot_dimension_numbers<[1], [0], [0], [1], [0, 0, 1, 1], [], []>} : vector<1x80xf32>, vector<80x128xf32>, vector<1x128xf32> -> vector<1x128xf32>
    %68 = arith.addf %64, %67 : vector<1x128xf32>
    %69 = vector.extract_strided_slice %53 {offsets = [4, 0], sizes = [1, 80], strides = [1, 1]} : vector<5x80xf32> to vector<1x80xf32>
    %c320 = arith.constant 320 : index
    %c0_58 = arith.constant 0 : index
    %70 = vector.load %arg18[%c320, %c0_58] : memref<400x128xf32, #tpu.memory_space<vmem>>, vector<80x128xf32>
    %cst_59 = arith.constant dense<0.000000e+00> : vector<1x128xf32>
    %71 = tpu.matmul %69, %70, %cst_59 {dimension_numbers = #tpu.dot_dimension_numbers<[1], [0], [0], [1], [0, 0, 1, 1], [], []>} : vector<1x80xf32>, vector<80x128xf32>, vector<1x128xf32> -> vector<1x128xf32>
    %72 = arith.addf %68, %71 : vector<1x128xf32>
    %c0_60 = arith.constant 0 : index
    %c0_61 = arith.constant 0 : index
    %73 = vector.load %arg19[%c0_60, %c0_61] : memref<1x128xf32, #tpu.memory_space<vmem>>, vector<1x128xf32>
    %74 = arith.addf %72, %73 : vector<1x128xf32>
    %cst_62 = arith.constant 0.000000e+00 : f32
    %75 = vector.broadcast %cst_62 : f32 to vector<1x128xf32>
    %76 = arith.maximumf %74, %75 : vector<1x128xf32>
    %c0_63 = arith.constant 0 : index
    %c0_64 = arith.constant 0 : index
    %77 = vector.load %arg20[%c0_63, %c0_64] : memref<128x128xf32, #tpu.memory_space<vmem>>, vector<128x128xf32>
    %cst_65 = arith.constant dense<0.000000e+00> : vector<1x128xf32>
    %78 = tpu.matmul %76, %77, %cst_65 {dimension_numbers = #tpu.dot_dimension_numbers<[1], [0], [0], [1], [0, 0, 1, 1], [], []>} : vector<1x128xf32>, vector<128x128xf32>, vector<1x128xf32> -> vector<1x128xf32>
    %c0_66 = arith.constant 0 : index
    %c0_67 = arith.constant 0 : index
    %79 = vector.load %arg21[%c0_66, %c0_67] : memref<1x128xf32, #tpu.memory_space<vmem>>, vector<1x128xf32>
    %80 = arith.addf %78, %79 : vector<1x128xf32>
    %cst_68 = arith.constant 0.000000e+00 : f32
    %81 = vector.broadcast %cst_68 : f32 to vector<1x128xf32>
    %82 = arith.maximumf %80, %81 : vector<1x128xf32>
    %c0_69 = arith.constant 0 : index
    %c0_70 = arith.constant 0 : index
    %83 = vector.load %arg22[%c0_69, %c0_70] : memref<128x128xf32, #tpu.memory_space<vmem>>, vector<128x128xf32>
    %cst_71 = arith.constant dense<0.000000e+00> : vector<1x128xf32>
    %84 = tpu.matmul %82, %83, %cst_71 {dimension_numbers = #tpu.dot_dimension_numbers<[1], [0], [0], [1], [0, 0, 1, 1], [], []>} : vector<1x128xf32>, vector<128x128xf32>, vector<1x128xf32> -> vector<1x128xf32>
    %c0_72 = arith.constant 0 : index
    %c0_73 = arith.constant 0 : index
    %85 = vector.load %arg23[%c0_72, %c0_73] : memref<1x128xf32, #tpu.memory_space<vmem>>, vector<1x128xf32>
    %86 = arith.addf %84, %85 : vector<1x128xf32>
    %87 = tpu.iota {dimensions = array<i32: 1>} : vector<1x128xi32>
    %c10_i32 = arith.constant 10 : i32
    %88 = vector.broadcast %c10_i32 : i32 to vector<1x128xi32>
    %89 = arith.cmpi slt, %87, %88 : vector<1x128xi32>
    %cst_74 = arith.constant -1.000000e+30 : f32
    %90 = vector.broadcast %cst_74 : f32 to vector<1x128xf32>
    %91 = arith.select %89, %86, %90 : vector<1x128xi1>, vector<1x128xf32>
    %cst_75 = arith.constant dense<0xFF800000> : vector<1xf32>
    %92 = vector.multi_reduction <maximumf>, %91, %cst_75 [1] : vector<1x128xf32> to vector<1xf32>
    %93 = vector.shape_cast %92 : vector<1xf32> to vector<1x1xf32>
    %94 = vector.broadcast %93 : vector<1x1xf32> to vector<1x128xf32>
    %95 = arith.subf %91, %94 : vector<1x128xf32>
    %96 = math.exp %95 : vector<1x128xf32>
    %cst_76 = arith.constant 0.000000e+00 : f32
    %97 = vector.broadcast %cst_76 : f32 to vector<1x128xf32>
    %98 = arith.select %89, %96, %97 : vector<1x128xi1>, vector<1x128xf32>
    %cst_77 = arith.constant dense<0.000000e+00> : vector<1xf32>
    %99 = vector.multi_reduction <add>, %98, %cst_77 [1] : vector<1x128xf32> to vector<1xf32>
    %100 = vector.shape_cast %99 : vector<1xf32> to vector<1x1xf32>
    %101 = math.log %100 : vector<1x1xf32>
    %102 = vector.broadcast %101 : vector<1x1xf32> to vector<1x128xf32>
    %103 = arith.subf %95, %102 : vector<1x128xf32>
    %c0_78 = arith.constant 0 : index
    %c0_79 = arith.constant 0 : index
    %c0_80 = arith.constant 0 : index
    %104 = vector.load %arg24[%c0_78, %c0_79, %c0_80] : memref<1x1x128xf32, #tpu.memory_space<vmem>>, vector<1x1x128xf32>
    %105 = vector.shape_cast %104 : vector<1x1x128xf32> to vector<1x128xf32>
    %106 = vector.shape_cast %103 : vector<1x128xf32> to vector<1x1x128xf32>
    tpu.vector_store %arg24[%c0_78, %c0_79, %c0_80], %106 {strides = array<i32>} : memref<1x1x128xf32, #tpu.memory_space<vmem>>, vector<1x1x128xf32>,
    return
  }
  func.func @transform_0(%arg0: i32) -> (i32, i32, i32) {
    %c0_i32 = arith.constant 0 : i32
    %c0_i32_0 = arith.constant 0 : i32
    %c0_i32_1 = arith.constant 0 : i32
    return %arg0, %c0_i32, %c0_i32_0 : i32, i32, i32
  }
  func.func @transform_1(%arg0: i32) -> (i32, i32) {
    %c0_i32 = arith.constant 0 : i32
    %c0_i32_0 = arith.constant 0 : i32
    %c0_i32_1 = arith.constant 0 : i32
    return %c0_i32, %c0_i32_0 : i32, i32
  }
  func.func @transform_2(%arg0: i32) -> (i32, i32) {
    %c0_i32 = arith.constant 0 : i32
    %c0_i32_0 = arith.constant 0 : i32
    %c0_i32_1 = arith.constant 0 : i32
    return %c0_i32, %c0_i32_0 : i32, i32
  }
  func.func @transform_3(%arg0: i32) -> (i32, i32) {
    %c0_i32 = arith.constant 0 : i32
    %c0_i32_0 = arith.constant 0 : i32
    %c0_i32_1 = arith.constant 0 : i32
    return %c0_i32, %c0_i32_0 : i32, i32
  }
  func.func @transform_4(%arg0: i32) -> (i32, i32) {
    %c0_i32 = arith.constant 0 : i32
    %c0_i32_0 = arith.constant 0 : i32
    %c0_i32_1 = arith.constant 0 : i32
    return %c0_i32, %c0_i32_0 : i32, i32
  }
  func.func @transform_5(%arg0: i32) -> (i32, i32) {
    %c0_i32 = arith.constant 0 : i32
    %c0_i32_0 = arith.constant 0 : i32
    %c0_i32_1 = arith.constant 0 : i32
    return %c0_i32, %c0_i32_0 : i32, i32
  }
  func.func @transform_6(%arg0: i32) -> (i32, i32) {
    %c0_i32 = arith.constant 0 : i32
    %c0_i32_0 = arith.constant 0 : i32
    %c0_i32_1 = arith.constant 0 : i32
    return %c0_i32, %c0_i32_0 : i32, i32
  }
  func.func @transform_7(%arg0: i32) -> (i32, i32) {
    %c0_i32 = arith.constant 0 : i32
    %c0_i32_0 = arith.constant 0 : i32
    %c0_i32_1 = arith.constant 0 : i32
    return %c0_i32, %c0_i32_0 : i32, i32
  }
  func.func @transform_8(%arg0: i32) -> (i32, i32) {
    %c0_i32 = arith.constant 0 : i32
    %c0_i32_0 = arith.constant 0 : i32
    %c0_i32_1 = arith.constant 0 : i32
    return %c0_i32, %c0_i32_0 : i32, i32
  }
  func.func @transform_9(%arg0: i32) -> (i32, i32) {
    %c0_i32 = arith.constant 0 : i32
    %c0_i32_0 = arith.constant 0 : i32
    %c0_i32_1 = arith.constant 0 : i32
    return %c0_i32, %c0_i32_0 : i32, i32
  }
  func.func @transform_10(%arg0: i32) -> (i32, i32) {
    %c0_i32 = arith.constant 0 : i32
    %c0_i32_0 = arith.constant 0 : i32
    %c0_i32_1 = arith.constant 0 : i32
    return %c0_i32, %c0_i32_0 : i32, i32
  }
  func.func @transform_11(%arg0: i32) -> (i32, i32) {
    %c0_i32 = arith.constant 0 : i32
    %c0_i32_0 = arith.constant 0 : i32
    %c0_i32_1 = arith.constant 0 : i32
    return %c0_i32, %c0_i32_0 : i32, i32
  }
  func.func @transform_12(%arg0: i32) -> (i32, i32) {
    %c0_i32 = arith.constant 0 : i32
    %c0_i32_0 = arith.constant 0 : i32
    %c0_i32_1 = arith.constant 0 : i32
    return %c0_i32, %c0_i32_0 : i32, i32
  }
  func.func @transform_13(%arg0: i32) -> (i32, i32) {
    %c0_i32 = arith.constant 0 : i32
    %c0_i32_0 = arith.constant 0 : i32
    %c0_i32_1 = arith.constant 0 : i32
    return %c0_i32, %c0_i32_0 : i32, i32
  }
  func.func @transform_14(%arg0: i32) -> (i32, i32) {
    %c0_i32 = arith.constant 0 : i32
    %c0_i32_0 = arith.constant 0 : i32
    %c0_i32_1 = arith.constant 0 : i32
    return %c0_i32, %c0_i32_0 : i32, i32
  }
  func.func @transform_15(%arg0: i32) -> (i32, i32) {
    %c0_i32 = arith.constant 0 : i32
    %c0_i32_0 = arith.constant 0 : i32
    %c0_i32_1 = arith.constant 0 : i32
    return %c0_i32, %c0_i32_0 : i32, i32
  }
  func.func @transform_16(%arg0: i32) -> (i32, i32) {
    %c0_i32 = arith.constant 0 : i32
    %c0_i32_0 = arith.constant 0 : i32
    %c0_i32_1 = arith.constant 0 : i32
    return %c0_i32, %c0_i32_0 : i32, i32
  }
  func.func @transform_17(%arg0: i32) -> (i32, i32) {
    %c0_i32 = arith.constant 0 : i32
    %c0_i32_0 = arith.constant 0 : i32
    %c0_i32_1 = arith.constant 0 : i32
    return %c0_i32, %c0_i32_0 : i32, i32
  }
  func.func @transform_18(%arg0: i32) -> (i32, i32) {
    %c0_i32 = arith.constant 0 : i32
    %c0_i32_0 = arith.constant 0 : i32
    %c0_i32_1 = arith.constant 0 : i32
    return %c0_i32, %c0_i32_0 : i32, i32
  }
  func.func @transform_19(%arg0: i32) -> (i32, i32) {
    %c0_i32 = arith.constant 0 : i32
    %c0_i32_0 = arith.constant 0 : i32
    %c0_i32_1 = arith.constant 0 : i32
    return %c0_i32, %c0_i32_0 : i32, i32
  }
  func.func @transform_20(%arg0: i32) -> (i32, i32) {
    %c0_i32 = arith.constant 0 : i32
    %c0_i32_0 = arith.constant 0 : i32
    %c0_i32_1 = arith.constant 0 : i32
    return %c0_i32, %c0_i32_0 : i32, i32
  }
  func.func @transform_21(%arg0: i32) -> (i32, i32) {
    %c0_i32 = arith.constant 0 : i32
    %c0_i32_0 = arith.constant 0 : i32
    %c0_i32_1 = arith.constant 0 : i32
    return %c0_i32, %c0_i32_0 : i32, i32
  }
  func.func @transform_22(%arg0: i32) -> (i32, i32) {
    %c0_i32 = arith.constant 0 : i32
    %c0_i32_0 = arith.constant 0 : i32
    %c0_i32_1 = arith.constant 0 : i32
    return %c0_i32, %c0_i32_0 : i32, i32
  }
  func.func @transform_23(%arg0: i32) -> (i32, i32, i32) {
    %c0_i32 = arith.constant 0 : i32
    %c0_i32_0 = arith.constant 0 : i32
    %c0_i32_1 = arith.constant 0 : i32
    return %arg0, %c0_i32, %c0_i32_0 : i32, i32, i32
  }
}

</mosaic_0001>

<llo_original>
// kernel: cnn_forward.1
$region0: #{cnn_forward.1}
  #allocation0 [shape = 'u32[]', space=smem, size = 0x4, offset = 0x4, fixed_abs, tag = 'smem constant byte address 0x4 - core index']
  #allocation1 [shape = 'u32[144,128]{1,0:T(1,128)}', space=vmem, size = 0x12000, scoped, tag = 'internal scratch']
  %s0 = inlined_call_operand.vmem [shape: f32[2,28,28], index: 0, kind: input, shape index: {}]
  %s1 = inlined_call_operand.vmem [shape: f32[28,156], index: 1, kind: input, shape index: {}]
  %s2 = inlined_call_operand.hbm [shape: f32[28,156], index: 2, kind: input, shape index: {}]
  %s3 = inlined_call_operand.hbm [shape: f32[28,156], index: 3, kind: input, shape index: {}]
  %s4 = inlined_call_operand.hbm [shape: f32[1,156], index: 4, kind: input, shape index: {}]
  %s5 = inlined_call_operand.vmem [shape: f32[13,26], index: 5, kind: input, shape index: {}]
  %s6 = inlined_call_operand.hbm [shape: f32[13,26], index: 6, kind: input, shape index: {}]
  %s7 = inlined_call_operand.vmem [shape: f32[156,78], index: 7, kind: input, shape index: {}]
  %s8 = inlined_call_operand.hbm [shape: f32[156,78], index: 8, kind: input, shape index: {}]
  %s9 = inlined_call_operand.hbm [shape: f32[78,176], index: 9, kind: input, shape index: {}]
  %s10 = inlined_call_operand.hbm [shape: f32[78,176], index: 10, kind: input, shape index: {}]
  %s11 = inlined_call_operand.hbm [shape: f32[78,176], index: 11, kind: input, shape index: {}]
  %s12 = inlined_call_operand.hbm [shape: f32[1,176], index: 12, kind: input, shape index: {}]
  %s13 = inlined_call_operand.hbm [shape: f32[5,11], index: 13, kind: input, shape index: {}]
  %s14 = inlined_call_operand.hbm [shape: f32[5,11], index: 14, kind: input, shape index: {}]
  %s15 = inlined_call_operand.vmem [shape: f32[176,80], index: 15, kind: input, shape index: {}]
  %s16 = inlined_call_operand.vmem [shape: f32[176,80], index: 16, kind: input, shape index: {}]
  %s17 = inlined_call_operand.vmem [shape: f32[400,128], index: 17, kind: input, shape index: {}]
  %s18 = inlined_call_operand.vmem [shape: f32[1,128], index: 18, kind: input, shape index: {}]
  %s19 = inlined_call_operand.hbm [shape: f32[128,128], index: 19, kind: input, shape index: {}]
  %s20 = inlined_call_operand.vmem [shape: f32[1,128], index: 20, kind: input, shape index: {}]
  %s21 = inlined_call_operand.hbm [shape: f32[128,128], index: 21, kind: input, shape index: {}]
  %s22 = inlined_call_operand.vmem [shape: f32[1,128], index: 22, kind: input, shape index: {}]
  %s23 = inlined_call_operand.hbm [shape: f32[2,1,128], index: 23, kind: output, shape index: {}]
  %s24 = sld [smem:[#allocation0]]
  $region177: #{cnn_forward.1} parent=0
    _
  %s26 = ssub.s32 1, %s24
  %s27 = scalar_select 0, %s26, %s24
  $region1: #{cnn_forward.1} parent=0
    #allocation2 [shape = 'u8[32768]{0}', space=vmem, size = 0x8000, scoped, tag = 'input window, operand 2, single buffered']
    #allocation3 [shape = 's32[2]{0}', space=sflag, size = 0x8, scoped, tag = 'scoped memory for cnn_forward.1']
    #allocation4 [shape = 's32[2]{0}', space=sflag, size = 0x8, scoped, tag = 'scoped memory for cnn_forward.1']
    #allocation5 [shape = 'u8[32768]{0}', space=vmem, size = 0x8000, scoped, tag = 'input window, operand 3, single buffered']
    #allocation6 [shape = 's32[1]{0}', space=sflag, size = 0x4, scoped, tag = 'scoped memory for cnn_forward.1']
    #allocation7 [shape = 'u8[1024]{0}', space=vmem, size = 0x400, scoped, tag = 'input window, operand 4, single buffered']
    #allocation8 [shape = 'u8[8192]{0}', space=vmem, size = 0x2000, scoped, tag = 'input window, operand 6, single buffered']
    #allocation9 [shape = 's32[1]{0}', space=sflag, size = 0x4, scoped, tag = 'scoped memory for cnn_forward.1']
    #allocation10 [shape = 'u8[81920]{0}', space=vmem, size = 0x14000, scoped, tag = 'input window, operand 8, single buffered']
    #allocation11 [shape = 'u8[81920]{0}', space=vmem, size = 0x14000, scoped, tag = 'input window, operand 9, single buffered']
    #allocation12 [shape = 's32[1]{0}', space=sflag, size = 0x4, scoped, tag = 'scoped memory for cnn_forward.1']
    #allocation13 [shape = 'u8[81920]{0}', space=vmem, size = 0x14000, scoped, tag = 'input window, operand 10, single buffered']
    #allocation14 [shape = 'u8[81920]{0}', space=vmem, size = 0x14000, scoped, tag = 'input window, operand 11, single buffered']
    #allocation15 [shape = 's32[1]{0}', space=sflag, size = 0x4, scoped, tag = 'scoped memory for cnn_forward.1']
    #allocation16 [shape = 'u8[1024]{0}', space=vmem, size = 0x400, scoped, tag = 'input window, operand 12, single buffered']
    #allocation17 [shape = 'u8[4096]{0}', space=vmem, size = 0x1000, scoped, tag = 'input window, operand 13, single buffered']
    #allocation18 [shape = 's32[1]{0}', space=sflag, size = 0x4, scoped, tag = 'scoped memory for cnn_forward.1']
    #allocation19 [shape = 'u8[4096]{0}', space=vmem, size = 0x1000, scoped, tag = 'input window, operand 14, single buffered']
    #allocation20 [shape = 'u8[65536]{0}', space=vmem, size = 0x10000, scoped, tag = 'input window, operand 19, single buffered']
    #allocation21 [shape = 's32[1]{0}', space=sflag, size = 0x4, scoped, tag = 'scoped memory for cnn_forward.1']
    #allocation22 [shape = 'u8[65536]{0}', space=vmem, size = 0x10000, scoped, tag = 'input window, operand 21, single buffered']
    #allocation23 [shape = 'u8[1024]{0}', space=vmem, size = 0x400, scoped, tag = 'output window, operand 0']
    %28 = vsyncpa [#allocation3], 0
    %29 = vsyncpa [#allocation6], 0
    %30 = vsyncpa [#allocation9], 0
    %31 = vsyncpa [#allocation12], 0
    %32 = vsyncpa [#allocation15], 0
    %33 = vsyncpa [#allocation18], 0
    %34 = vsyncpa [#allocation21], 0
    %35 = vsyncpa [#allocation4], 0
    %s36 = scalar_lea.sflag [#allocation4], 1
    %37 = vsyncpa %s36, 0
    loop: start=0, step=1, limit=4
    $region2: #{cnn_forward.1} parent=1 // loop_pre_header
      _
    $region3: #{cnn_forward.1} parent=1 // loop_header
      %s39 = sphi 0, %s43
      %p40 = scmp.ge.s32.totalorder %s39, 4
      %s49 = sphi 0, %s51
      %s52 = sphi 0, %s49
      %s53 = sphi 0, %s52
      %s69 = sphi 0, %s53
      %s73 = sphi 0, %s73
      %s75 = sphi 0, %s73
      %s76 = sphi 0, %s75
      %s90 = sphi 0, %s76
      %s94 = sphi 0, %s94
      %s96 = sphi 0, %s94
      %s97 = sphi 0, %s96
      %s111 = sphi 0, %s97
      %s115 = sphi 0, %s115
      %s117 = sphi 0, %s115
      %s118 = sphi 0, %s117
      %s132 = sphi 0, %s118
      %s136 = sphi 0, %s136
      %s138 = sphi 0, %s136
      %s139 = sphi 0, %s138
      %s153 = sphi 0, %s139
      %s157 = sphi 0, %s157
      %s159 = sphi 0, %s157
      %s160 = sphi 0, %s159
      %s174 = sphi 0, %s160
      %s178 = sphi 0, %s178
      %s180 = sphi 0, %s178
      %s181 = sphi 0, %s180
      %s195 = sphi 0, %s181
      %s199 = sphi 0, %s199
      %s201 = sphi 0, %s199
      %s202 = sphi 0, %s201
      %s216 = sphi 0, %s202
      %s220 = sphi 0, %s220
      %s222 = sphi 0, %s220
      %s223 = sphi 0, %s222
      %s237 = sphi 0, %s223
      %s241 = sphi 0, %s241
      %s243 = sphi 0, %s241
      %s244 = sphi 0, %s243
      %s258 = sphi 0, %s244
      %s262 = sphi 0, %s262
      %s264 = sphi 0, %s262
      %s265 = sphi 0, %s264
      %s279 = sphi 0, %s265
      %s283 = sphi 0, %s283
      %s285 = sphi 0, %s283
      %s286 = sphi 0, %s285
      %s300 = sphi 0, %s286
      %s304 = sphi 0, %s304
      %s306 = sphi 0, %s304
      %s307 = sphi 0, %s306
      %s321 = sphi 0, %s307
      %s325 = sphi 0, %s325
      %s327 = sphi 0, %s325
      %s328 = sphi 0, %s327
      %s342 = sphi 0, %s328
      %s346 = sphi 0, %s346
      %s348 = sphi 0, %s346
      %s349 = sphi 0, %s348
      %s363 = sphi 0, %s349
      %s367 = sphi 0, %s367
      %s369 = sphi 0, %s367
      %s370 = sphi 0, %s369
      %s384 = sphi 0, %s370
      %s388 = sphi 0, %s388
      %s390 = sphi 0, %s388
      %s391 = sphi 0, %s390
      %s405 = sphi 0, %s391
      %s409 = sphi 0, %s409
      %s411 = sphi 0, %s409
      %s412 = sphi 0, %s411
      %s426 = sphi 0, %s412
      %s430 = sphi 0, %s430
      %s432 = sphi 0, %s430
      %s433 = sphi 0, %s432
      %s447 = sphi 0, %s433
      %s451 = sphi 0, %s451
      %s453 = sphi 0, %s451
      %s454 = sphi 0, %s453
      %s468 = sphi 0, %s454
      %s472 = sphi 0, %s472
      %s474 = sphi 0, %s472
      %s475 = sphi 0, %s474
      %s489 = sphi 0, %s475
      %s493 = sphi 0, %s493
      %s495 = sphi 0, %s493
      %s496 = sphi 0, %s495
      %s510 = sphi 0, %s496
      %s514 = sphi 0, %s514
      %s516 = sphi 0, %s514
      %s517 = sphi 0, %s516
      %s531 = sphi 0, %s517
      %s537 = sphi 0, %s539
      %s540 = sphi 0, %s537
      %s541 = sphi 0, %s540
      %s557 = sphi 0, %s541
    $region4: #{cnn_forward.1} parent=1 // loop_header_branch
      %42 = sbr.rel (%p40) target = $region8
    $region5: #{cnn_forward.1} parent=1 // loop_body
      %s44 = ssub.s32 %s39, 1
      %s45 = ssub.s32 %s39, 2
      %s46 = sadd.s32 %s39, 1
      %s47 = ssub.s32 %s39, %s46
      %p48 = scmp.eq.s32.totalorder %s47, 0
      %s50 = sadd.s32 %s49, 1
      %s51 = scalar_select %p48, %s49, %s50
      %p54 = pneg %p48
      %p55 = scmp.eq.s32.totalorder %s39, 1
      %p56 = por %p54, %p55
      %p57 = scmp.ne.s32.totalorder %s49, %s52
      %p58 = scmp.eq.s32.totalorder %s39, 0
      %p59 = por %p57, %p58
      %p60 = scmp.ne.s32.totalorder %s49, %s52
      %p61 = scmp.eq.s32.totalorder %s44, 1
      %p62 = por %p60, %p61
      %p63 = scmp.ne.s32.totalorder %s52, %s53
      %p64 = scmp.eq.s32.totalorder %s44, 0
      %p65 = por %p63, %p64
      %p66 = scmp.ne.s32.totalorder %s52, %s53
      %p67 = scmp.eq.s32.totalorder %s45, 1
      %p68 = por %p66, %p67
      %p70 = scmp.ne.s32.totalorder %s53, %s69
      %p71 = scmp.eq.s32.totalorder %s45, 0
      %p72 = por %p70, %p71
      %s74 = sadd.s32 %s73, 1
      %p77 = scmp.eq.s32.totalorder %s39, 1
      %p78 = scmp.ne.s32.totalorder %s73, %s75
      %p79 = scmp.eq.s32.totalorder %s39, 0
      %p80 = por %p78, %p79
      %p81 = scmp.ne.s32.totalorder %s73, %s75
      %p82 = scmp.eq.s32.totalorder %s44, 1
      %p83 = por %p81, %p82
      %p84 = scmp.ne.s32.totalorder %s75, %s76
      %p85 = scmp.eq.s32.totalorder %s44, 0
      %p86 = por %p84, %p85
      %p87 = scmp.ne.s32.totalorder %s75, %s76
      %p88 = scmp.eq.s32.totalorder %s45, 1
      %p89 = por %p87, %p88
      %p91 = scmp.ne.s32.totalorder %s76, %s90
      %p92 = scmp.eq.s32.totalorder %s45, 0
      %p93 = por %p91, %p92
      %s95 = sadd.s32 %s94, 1
      %p98 = scmp.eq.s32.totalorder %s39, 1
      %p99 = scmp.ne.s32.totalorder %s94, %s96
      %p100 = scmp.eq.s32.totalorder %s39, 0
      %p101 = por %p99, %p100
      %p102 = scmp.ne.s32.totalorder %s94, %s96
      %p103 = scmp.eq.s32.totalorder %s44, 1
      %p104 = por %p102, %p103
      %p105 = scmp.ne.s32.totalorder %s96, %s97
      %p106 = scmp.eq.s32.totalorder %s44, 0
      %p107 = por %p105, %p106
      %p108 = scmp.ne.s32.totalorder %s96, %s97
      %p109 = scmp.eq.s32.totalorder %s45, 1
      %p110 = por %p108, %p109
      %p112 = scmp.ne.s32.totalorder %s97, %s111
      %p113 = scmp.eq.s32.totalorder %s45, 0
      %p114 = por %p112, %p113
      %s116 = sadd.s32 %s115, 1
      %p119 = scmp.eq.s32.totalorder %s39, 1
      %p120 = scmp.ne.s32.totalorder %s115, %s117
      %p121 = scmp.eq.s32.totalorder %s39, 0
      %p122 = por %p120, %p121
      %p123 = scmp.ne.s32.totalorder %s115, %s117
      %p124 = scmp.eq.s32.totalorder %s44, 1
      %p125 = por %p123, %p124
      %p126 = scmp.ne.s32.totalorder %s117, %s118
      %p127 = scmp.eq.s32.totalorder %s44, 0
      %p128 = por %p126, %p127
      %p129 = scmp.ne.s32.totalorder %s117, %s118
      %p130 = scmp.eq.s32.totalorder %s45, 1
      %p131 = por %p129, %p130
      %p133 = scmp.ne.s32.totalorder %s118, %s132
      %p134 = scmp.eq.s32.totalorder %s45, 0
      %p135 = por %p133, %p134
      %s137 = sadd.s32 %s136, 1
      %p140 = scmp.eq.s32.totalorder %s39, 1
      %p141 = scmp.ne.s32.totalorder %s136, %s138
      %p142 = scmp.eq.s32.totalorder %s39, 0
      %p143 = por %p141, %p142
      %p144 = scmp.ne.s32.totalorder %s136, %s138
      %p145 = scmp.eq.s32.totalorder %s44, 1
      %p146 = por %p144, %p145
      %p147 = scmp.ne.s32.totalorder %s138, %s139
      %p148 = scmp.eq.s32.totalorder %s44, 0
      %p149 = por %p147, %p148
      %p150 = scmp.ne.s32.totalorder %s138, %s139
      %p151 = scmp.eq.s32.totalorder %s45, 1
      %p152 = por %p150, %p151
      %p154 = scmp.ne.s32.totalorder %s139, %s153
      %p155 = scmp.eq.s32.totalorder %s45, 0
      %p156 = por %p154, %p155
      %s158 = sadd.s32 %s157, 1
      %p161 = scmp.eq.s32.totalorder %s39, 1
      %p162 = scmp.ne.s32.totalorder %s157, %s159
      %p163 = scmp.eq.s32.totalorder %s39, 0
      %p164 = por %p162, %p163
      %p165 = scmp.ne.s32.totalorder %s157, %s159
      %p166 = scmp.eq.s32.totalorder %s44, 1
      %p167 = por %p165, %p166
      %p168 = scmp.ne.s32.totalorder %s159, %s160
      %p169 = scmp.eq.s32.totalorder %s44, 0
      %p170 = por %p168, %p169
      %p171 = scmp.ne.s32.totalorder %s159, %s160
      %p172 = scmp.eq.s32.totalorder %s45, 1
      %p173 = por %p171, %p172
      %p175 = scmp.ne.s32.totalorder %s160, %s174
      %p176 = scmp.eq.s32.totalorder %s45, 0
      %p177 = por %p175, %p176
      %s179 = sadd.s32 %s178, 1
      %p182 = scmp.eq.s32.totalorder %s39, 1
      %p183 = scmp.ne.s32.totalorder %s178, %s180
      %p184 = scmp.eq.s32.totalorder %s39, 0
      %p185 = por %p183, %p184
      %p186 = scmp.ne.s32.totalorder %s178, %s180
      %p187 = scmp.eq.s32.totalorder %s44, 1
      %p188 = por %p186, %p187
      %p189 = scmp.ne.s32.totalorder %s180, %s181
      %p190 = scmp.eq.s32.totalorder %s44, 0
      %p191 = por %p189, %p190
      %p192 = scmp.ne.s32.totalorder %s180, %s181
      %p193 = scmp.eq.s32.totalorder %s45, 1
      %p194 = por %p192, %p193
      %p196 = scmp.ne.s32.totalorder %s181, %s195
      %p197 = scmp.eq.s32.totalorder %s45, 0
      %p198 = por %p196, %p197
      %s200 = sadd.s32 %s199, 1
      %p203 = scmp.eq.s32.totalorder %s39, 1
      %p204 = scmp.ne.s32.totalorder %s199, %s201
      %p205 = scmp.eq.s32.totalorder %s39, 0
      %p206 = por %p204, %p205
      %p207 = scmp.ne.s32.totalorder %s199, %s201
      %p208 = scmp.eq.s32.totalorder %s44, 1
      %p209 = por %p207, %p208
      %p210 = scmp.ne.s32.totalorder %s201, %s202
      %p211 = scmp.eq.s32.totalorder %s44, 0
      %p212 = por %p210, %p211
      %p213 = scmp.ne.s32.totalorder %s201, %s202
      %p214 = scmp.eq.s32.totalorder %s45, 1
      %p215 = por %p213, %p214
      %p217 = scmp.ne.s32.totalorder %s202, %s216
      %p218 = scmp.eq.s32.totalorder %s45, 0
      %p219 = por %p217, %p218
      %s221 = sadd.s32 %s220, 1
      %p224 = scmp.eq.s32.totalorder %s39, 1
      %p225 = scmp.ne.s32.totalorder %s220, %s222
      %p226 = scmp.eq.s32.totalorder %s39, 0
      %p227 = por %p225, %p226
      %p228 = scmp.ne.s32.totalorder %s220, %s222
      %p229 = scmp.eq.s32.totalorder %s44, 1
      %p230 = por %p228, %p229
      %p231 = scmp.ne.s32.totalorder %s222, %s223
      %p232 = scmp.eq.s32.totalorder %s44, 0
      %p233 = por %p231, %p232
      %p234 = scmp.ne.s32.totalorder %s222, %s223
      %p235 = scmp.eq.s32.totalorder %s45, 1
      %p236 = por %p234, %p235
      %p238 = scmp.ne.s32.totalorder %s223, %s237
      %p239 = scmp.eq.s32.totalorder %s45, 0
      %p240 = por %p238, %p239
      %s242 = sadd.s32 %s241, 1
      %p245 = scmp.eq.s32.totalorder %s39, 1
      %p246 = scmp.ne.s32.totalorder %s241, %s243
      %p247 = scmp.eq.s32.totalorder %s39, 0
      %p248 = por %p246, %p247
      %p249 = scmp.ne.s32.totalorder %s241, %s243
      %p250 = scmp.eq.s32.totalorder %s44, 1
      %p251 = por %p249, %p250
      %p252 = scmp.ne.s32.totalorder %s243, %s244
      %p253 = scmp.eq.s32.totalorder %s44, 0
      %p254 = por %p252, %p253
      %p255 = scmp.ne.s32.totalorder %s243, %s244
      %p256 = scmp.eq.s32.totalorder %s45, 1
      %p257 = por %p255, %p256
      %p259 = scmp.ne.s32.totalorder %s244, %s258
      %p260 = scmp.eq.s32.totalorder %s45, 0
      %p261 = por %p259, %p260
      %s263 = sadd.s32 %s262, 1
      %p266 = scmp.eq.s32.totalorder %s39, 1
      %p267 = scmp.ne.s32.totalorder %s262, %s264
      %p268 = scmp.eq.s32.totalorder %s39, 0
      %p269 = por %p267, %p268
      %p270 = scmp.ne.s32.totalorder %s262, %s264
      %p271 = scmp.eq.s32.totalorder %s44, 1
      %p272 = por %p270, %p271
      %p273 = scmp.ne.s32.totalorder %s264, %s265
      %p274 = scmp.eq.s32.totalorder %s44, 0
      %p275 = por %p273, %p274
      %p276 = scmp.ne.s32.totalorder %s264, %s265
      %p277 = scmp.eq.s32.totalorder %s45, 1
      %p278 = por %p276, %p277
      %p280 = scmp.ne.s32.totalorder %s265, %s279
      %p281 = scmp.eq.s32.totalorder %s45, 0
      %p282 = por %p280, %p281
      %s284 = sadd.s32 %s283, 1
      %p287 = scmp.eq.s32.totalorder %s39, 1
      %p288 = scmp.ne.s32.totalorder %s283, %s285
      %p289 = scmp.eq.s32.totalorder %s39, 0
      %p290 = por %p288, %p289
      %p291 = scmp.ne.s32.totalorder %s283, %s285
      %p292 = scmp.eq.s32.totalorder %s44, 1
      %p293 = por %p291, %p292
      %p294 = scmp.ne.s32.totalorder %s285, %s286
      %p295 = scmp.eq.s32.totalorder %s44, 0
      %p296 = por %p294, %p295
      %p297 = scmp.ne.s32.totalorder %s285, %s286
      %p298 = scmp.eq.s32.totalorder %s45, 1
      %p299 = por %p297, %p298
      %p301 = scmp.ne.s32.totalorder %s286, %s300
      %p302 = scmp.eq.s32.totalorder %s45, 0
      %p303 = por %p301, %p302
      %s305 = sadd.s32 %s304, 1
      %p308 = scmp.eq.s32.totalorder %s39, 1
      %p309 = scmp.ne.s32.totalorder %s304, %s306
      %p310 = scmp.eq.s32.totalorder %s39, 0
      %p311 = por %p309, %p310
      %p312 = scmp.ne.s32.totalorder %s304, %s306
      %p313 = scmp.eq.s32.totalorder %s44, 1
      %p314 = por %p312, %p313
      %p315 = scmp.ne.s32.totalorder %s306, %s307
      %p316 = scmp.eq.s32.totalorder %s44, 0
      %p317 = por %p315, %p316
      %p318 = scmp.ne.s32.totalorder %s306, %s307
      %p319 = scmp.eq.s32.totalorder %s45, 1
      %p320 = por %p318, %p319
      %p322 = scmp.ne.s32.totalorder %s307, %s321
      %p323 = scmp.eq.s32.totalorder %s45, 0
      %p324 = por %p322, %p323
      %s326 = sadd.s32 %s325, 1
      %p329 = scmp.eq.s32.totalorder %s39, 1
      %p330 = scmp.ne.s32.totalorder %s325, %s327
      %p331 = scmp.eq.s32.totalorder %s39, 0
      %p332 = por %p330, %p331
      %p333 = scmp.ne.s32.totalorder %s325, %s327
      %p334 = scmp.eq.s32.totalorder %s44, 1
      %p335 = por %p333, %p334
      %p336 = scmp.ne.s32.totalorder %s327, %s328
      %p337 = scmp.eq.s32.totalorder %s44, 0
      %p338 = por %p336, %p337
      %p339 = scmp.ne.s32.totalorder %s327, %s328
      %p340 = scmp.eq.s32.totalorder %s45, 1
      %p341 = por %p339, %p340
      %p343 = scmp.ne.s32.totalorder %s328, %s342
      %p344 = scmp.eq.s32.totalorder %s45, 0
      %p345 = por %p343, %p344
      %s347 = sadd.s32 %s346, 1
      %p350 = scmp.eq.s32.totalorder %s39, 1
      %p351 = scmp.ne.s32.totalorder %s346, %s348
      %p352 = scmp.eq.s32.totalorder %s39, 0
      %p353 = por %p351, %p352
      %p354 = scmp.ne.s32.totalorder %s346, %s348
      %p355 = scmp.eq.s32.totalorder %s44, 1
      %p356 = por %p354, %p355
      %p357 = scmp.ne.s32.totalorder %s348, %s349
      %p358 = scmp.eq.s32.totalorder %s44, 0
      %p359 = por %p357, %p358
      %p360 = scmp.ne.s32.totalorder %s348, %s349
      %p361 = scmp.eq.s32.totalorder %s45, 1
      %p362 = por %p360, %p361
      %p364 = scmp.ne.s32.totalorder %s349, %s363
      %p365 = scmp.eq.s32.totalorder %s45, 0
      %p366 = por %p364, %p365
      %s368 = sadd.s32 %s367, 1
      %p371 = scmp.eq.s32.totalorder %s39, 1
      %p372 = scmp.ne.s32.totalorder %s367, %s369
      %p373 = scmp.eq.s32.totalorder %s39, 0
      %p374 = por %p372, %p373
      %p375 = scmp.ne.s32.totalorder %s367, %s369
      %p376 = scmp.eq.s32.totalorder %s44, 1
      %p377 = por %p375, %p376
      %p378 = scmp.ne.s32.totalorder %s369, %s370
      %p379 = scmp.eq.s32.totalorder %s44, 0
      %p380 = por %p378, %p379
      %p381 = scmp.ne.s32.totalorder %s369, %s370
      %p382 = scmp.eq.s32.totalorder %s45, 1
      %p383 = por %p381, %p382
      %p385 = scmp.ne.s32.totalorder %s370, %s384
      %p386 = scmp.eq.s32.totalorder %s45, 0
      %p387 = por %p385, %p386
      %s389 = sadd.s32 %s388, 1
      %p392 = scmp.eq.s32.totalorder %s39, 1
      %p393 = scmp.ne.s32.totalorder %s388, %s390
      %p394 = scmp.eq.s32.totalorder %s39, 0
      %p395 = por %p393, %p394
      %p396 = scmp.ne.s32.totalorder %s388, %s390
      %p397 = scmp.eq.s32.totalorder %s44, 1
      %p398 = por %p396, %p397
      %p399 = scmp.ne.s32.totalorder %s390, %s391
      %p400 = scmp.eq.s32.totalorder %s44, 0
      %p401 = por %p399, %p400
      %p402 = scmp.ne.s32.totalorder %s390, %s391
      %p403 = scmp.eq.s32.totalorder %s45, 1
      %p404 = por %p402, %p403
      %p406 = scmp.ne.s32.totalorder %s391, %s405
      %p407 = scmp.eq.s32.totalorder %s45, 0
      %p408 = por %p406, %p407
      %s410 = sadd.s32 %s409, 1
      %p413 = scmp.eq.s32.totalorder %s39, 1
      %p414 = scmp.ne.s32.totalorder %s409, %s411
      %p415 = scmp.eq.s32.totalorder %s39, 0
      %p416 = por %p414, %p415
      %p417 = scmp.ne.s32.totalorder %s409, %s411
      %p418 = scmp.eq.s32.totalorder %s44, 1
      %p419 = por %p417, %p418
      %p420 = scmp.ne.s32.totalorder %s411, %s412
      %p421 = scmp.eq.s32.totalorder %s44, 0
      %p422 = por %p420, %p421
      %p423 = scmp.ne.s32.totalorder %s411, %s412
      %p424 = scmp.eq.s32.totalorder %s45, 1
      %p425 = por %p423, %p424
      %p427 = scmp.ne.s32.totalorder %s412, %s426
      %p428 = scmp.eq.s32.totalorder %s45, 0
      %p429 = por %p427, %p428
      %s431 = sadd.s32 %s430, 1
      %p434 = scmp.eq.s32.totalorder %s39, 1
      %p435 = scmp.ne.s32.totalorder %s430, %s432
      %p436 = scmp.eq.s32.totalorder %s39, 0
      %p437 = por %p435, %p436
      %p438 = scmp.ne.s32.totalorder %s430, %s432
      %p439 = scmp.eq.s32.totalorder %s44, 1
      %p440 = por %p438, %p439
      %p441 = scmp.ne.s32.totalorder %s432, %s433
      %p442 = scmp.eq.s32.totalorder %s44, 0
      %p443 = por %p441, %p442
      %p444 = scmp.ne.s32.totalorder %s432, %s433
      %p445 = scmp.eq.s32.totalorder %s45, 1
      %p446 = por %p444, %p445
      %p448 = scmp.ne.s32.totalorder %s433, %s447
      %p449 = scmp.eq.s32.totalorder %s45, 0
      %p450 = por %p448, %p449
      %s452 = sadd.s32 %s451, 1
      %p455 = scmp.eq.s32.totalorder %s39, 1
      %p456 = scmp.ne.s32.totalorder %s451, %s453
      %p457 = scmp.eq.s32.totalorder %s39, 0
      %p458 = por %p456, %p457
      %p459 = scmp.ne.s32.totalorder %s451, %s453
      %p460 = scmp.eq.s32.totalorder %s44, 1
      %p461 = por %p459, %p460
      %p462 = scmp.ne.s32.totalorder %s453, %s454
      %p463 = scmp.eq.s32.totalorder %s44, 0
      %p464 = por %p462, %p463
      %p465 = scmp.ne.s32.totalorder %s453, %s454
      %p466 = scmp.eq.s32.totalorder %s45, 1
      %p467 = por %p465, %p466
      %p469 = scmp.ne.s32.totalorder %s454, %s468
      %p470 = scmp.eq.s32.totalorder %s45, 0
      %p471 = por %p469, %p470
      %s473 = sadd.s32 %s472, 1
      %p476 = scmp.eq.s32.totalorder %s39, 1
      %p477 = scmp.ne.s32.totalorder %s472, %s474
      %p478 = scmp.eq.s32.totalorder %s39, 0
      %p479 = por %p477, %p478
      %p480 = scmp.ne.s32.totalorder %s472, %s474
      %p481 = scmp.eq.s32.totalorder %s44, 1
      %p482 = por %p480, %p481
      %p483 = scmp.ne.s32.totalorder %s474, %s475
      %p484 = scmp.eq.s32.totalorder %s44, 0
      %p485 = por %p483, %p484
      %p486 = scmp.ne.s32.totalorder %s474, %s475
      %p487 = scmp.eq.s32.totalorder %s45, 1
      %p488 = por %p486, %p487
      %p490 = scmp.ne.s32.totalorder %s475, %s489
      %p491 = scmp.eq.s32.totalorder %s45, 0
      %p492 = por %p490, %p491
      %s494 = sadd.s32 %s493, 1
      %p497 = scmp.eq.s32.totalorder %s39, 1
      %p498 = scmp.ne.s32.totalorder %s493, %s495
      %p499 = scmp.eq.s32.totalorder %s39, 0
      %p500 = por %p498, %p499
      %p501 = scmp.ne.s32.totalorder %s493, %s495
      %p502 = scmp.eq.s32.totalorder %s44, 1
      %p503 = por %p501, %p502
      %p504 = scmp.ne.s32.totalorder %s495, %s496
      %p505 = scmp.eq.s32.totalorder %s44, 0
      %p506 = por %p504, %p505
      %p507 = scmp.ne.s32.totalorder %s495, %s496
      %p508 = scmp.eq.s32.totalorder %s45, 1
      %p509 = por %p507, %p508
      %p511 = scmp.ne.s32.totalorder %s496, %s510
      %p512 = scmp.eq.s32.totalorder %s45, 0
      %p513 = por %p511, %p512
      %s515 = sadd.s32 %s514, 1
      %p518 = scmp.eq.s32.totalorder %s39, 1
      %p519 = scmp.ne.s32.totalorder %s514, %s516
      %p520 = scmp.eq.s32.totalorder %s39, 0
      %p521 = por %p519, %p520
      %p522 = scmp.ne.s32.totalorder %s514, %s516
      %p523 = scmp.eq.s32.totalorder %s44, 1
      %p524 = por %p522, %p523
      %p525 = scmp.ne.s32.totalorder %s516, %s517
      %p526 = scmp.eq.s32.totalorder %s44, 0
      %p527 = por %p525, %p526
      %p528 = scmp.ne.s32.totalorder %s516, %s517
      %p529 = scmp.eq.s32.totalorder %s45, 1
      %p530 = por %p528, %p529
      %p532 = scmp.ne.s32.totalorder %s517, %s531
      %p533 = scmp.eq.s32.totalorder %s45, 0
      %p534 = por %p532, %p533
      %s535 = ssub.s32 %s39, %s46
      %p536 = scmp.eq.s32.totalorder %s535, 0
      %s538 = sadd.s32 %s537, 1
      %s539 = scalar_select %p536, %s537, %s538
      %p542 = pneg %p536
      %p543 = scmp.eq.s32.totalorder %s39, 1
      %p544 = por %p542, %p543
      %p545 = scmp.ne.s32.totalorder %s537, %s540
      %p546 = scmp.eq.s32.totalorder %s39, 0
      %p547 = por %p545, %p546
      %p548 = scmp.ne.s32.totalorder %s537, %s540
      %p549 = scmp.eq.s32.totalorder %s44, 1
      %p550 = por %p548, %p549
      %p551 = scmp.ne.s32.totalorder %s540, %s541
      %p552 = scmp.eq.s32.totalorder %s44, 0
      %p553 = por %p551, %p552
      %p554 = scmp.ne.s32.totalorder %s540, %s541
      %p555 = scmp.eq.s32.totalorder %s45, 1
      %p556 = por %p554, %p555
      %p558 = scmp.ne.s32.totalorder %s541, %s557
      %p559 = scmp.eq.s32.totalorder %s45, 0
      %p560 = por %p558, %p559
      %p561 = scmp.le.s32.totalorder 1, %s39
      %p562 = scmp.lt.s32.totalorder %s39, 3
      %p563 = pnand %p561, %p562
      %p564 = pneg %p563
      // Predicated region
      $region9: #{cnn_forward.1} parent=5 // pred_check
        _
      $region10: #{cnn_forward.1} parent=5 // pred_check_branch
        %566 = sbr.rel (%p563) target = $region12
      $region11: #{cnn_forward.1} parent=5 // pred_region
        %s567 = ssub.s32 %s39, 1
        // Predicated region
        $region13: #{cnn_forward.1} parent=11 // pred_check
          %p568 = pneg %p86
        $region14: #{cnn_forward.1} parent=11 // pred_check_branch
          %570 = sbr.rel (%p568) target = $region16
        $region15: #{cnn_forward.1} parent=11 // pred_region
          _
        $region16: #{cnn_forward.1} parent=11 // pred_fallthru
          _
        // Predicated region
        $region17: #{cnn_forward.1} parent=11 // pred_check
          %p571 = pneg %p107
        $region18: #{cnn_forward.1} parent=11 // pred_check_branch
          %573 = sbr.rel (%p571) target = $region20
        $region19: #{cnn_forward.1} parent=11 // pred_region
          %s575 = ssub.s32 1024, 1024
          %576 = vsyncadd [#allocation3], %s575
          %s577 = sshll.u32 [#allocation2], 4
          %s578 = int_to_ptr.vmem [resolvable:$true] %s577
          %583 = dma.hbm_to_vmem [thread:$0]  %s2, 1024, %s578, [#allocation3], 256, 256, 16
        $region20: #{cnn_forward.1} parent=11 // pred_fallthru
          _
        // Predicated region
        $region21: #{cnn_forward.1} parent=11 // pred_check
          %p584 = pneg %p128
        $region22: #{cnn_forward.1} parent=11 // pred_check_branch
          %586 = sbr.rel (%p584) target = $region24
        $region23: #{cnn_forward.1} parent=11 // pred_region
          %s588 = ssub.s32 1024, 1024
          %589 = vsyncadd [#allocation6], %s588
          %s590 = sshll.u32 [#allocation5], 4
          %s591 = int_to_ptr.vmem [resolvable:$true] %s590
          %596 = dma.hbm_to_vmem [thread:$0]  %s3, 1024, %s591, [#allocation6], 256, 256, 16
        $region24: #{cnn_forward.1} parent=11 // pred_fallthru
          _
        // Predicated region
        $region25: #{cnn_forward.1} parent=11 // pred_check
          %p597 = pneg %p149
        $region26: #{cnn_forward.1} parent=11 // pred_check_branch
          %599 = sbr.rel (%p597) target = $region28
        $region27: #{cnn_forward.1} parent=11 // pred_region
          %s601 = ssub.s32 32, 32
          %602 = vsyncadd [#allocation6], %s601
          %s604 = sshll.u32 [#allocation7], 4
          %s605 = int_to_ptr.vmem [resolvable:$true] %s604
          %607 = dma.hbm_to_vmem [thread:$0]  %s4, 32, %s605, [#allocation6]
        $region28: #{cnn_forward.1} parent=11 // pred_fallthru
          _
        // Predicated region
        $region29: #{cnn_forward.1} parent=11 // pred_check
          %p608 = pneg %p170
        $region30: #{cnn_forward.1} parent=11 // pred_check_branch
          %610 = sbr.rel (%p608) target = $region32
        $region31: #{cnn_forward.1} parent=11 // pred_region
          _
        $region32: #{cnn_forward.1} parent=11 // pred_fallthru
          _
        // Predicated region
        $region33: #{cnn_forward.1} parent=11 // pred_check
          %p611 = pneg %p191
        $region34: #{cnn_forward.1} parent=11 // pred_check_branch
          %613 = sbr.rel (%p611) target = $region36
        $region35: #{cnn_forward.1} parent=11 // pred_region
          %s615 = ssub.s32 256, 256
          %616 = vsyncadd [#allocation9], %s615
          %s617 = sshll.u32 [#allocation8], 4
          %s618 = int_to_ptr.vmem [resolvable:$true] %s617
          %623 = dma.hbm_to_vmem [thread:$0]  %s6, 256, %s618, [#allocation9], 128, 128, 8
        $region36: #{cnn_forward.1} parent=11 // pred_fallthru
          _
        // Predicated region
        $region37: #{cnn_forward.1} parent=11 // pred_check
          %p624 = pneg %p212
        $region38: #{cnn_forward.1} parent=11 // pred_check_branch
          %626 = sbr.rel (%p624) target = $region40
        $region39: #{cnn_forward.1} parent=11 // pred_region
          _
        $region40: #{cnn_forward.1} parent=11 // pred_fallthru
          _
        // Predicated region
        $region41: #{cnn_forward.1} parent=11 // pred_check
          %p627 = pneg %p233
        $region42: #{cnn_forward.1} parent=11 // pred_check_branch
          %629 = sbr.rel (%p627) target = $region44
        $region43: #{cnn_forward.1} parent=11 // pred_region
          %s631 = ssub.s32 2560, 2560
          %632 = vsyncadd [#allocation9], %s631
          %s633 = sshll.u32 [#allocation10], 4
          %s634 = int_to_ptr.vmem [resolvable:$true] %s633
          %639 = dma.hbm_to_vmem [thread:$0]  %s8, 2560, %s634, [#allocation9], 128, 128, 8
        $region44: #{cnn_forward.1} parent=11 // pred_fallthru
          _
        // Predicated region
        $region45: #{cnn_forward.1} parent=11 // pred_check
          %p640 = pneg %p254
        $region46: #{cnn_forward.1} parent=11 // pred_check_branch
          %642 = sbr.rel (%p640) target = $region48
        $region47: #{cnn_forward.1} parent=11 // pred_region
          %s644 = ssub.s32 2560, 2560
          %645 = vsyncadd [#allocation12], %s644
          %s646 = sshll.u32 [#allocation11], 4
          %s647 = int_to_ptr.vmem [resolvable:$true] %s646
          %652 = dma.hbm_to_vmem [thread:$0]  %s9, 2560, %s647, [#allocation12], 256, 256, 16
        $region48: #{cnn_forward.1} parent=11 // pred_fallthru
          _
        // Predicated region
        $region49: #{cnn_forward.1} parent=11 // pred_check
          %p653 = pneg %p275
        $region50: #{cnn_forward.1} parent=11 // pred_check_branch
          %655 = sbr.rel (%p653) target = $region52
        $region51: #{cnn_forward.1} parent=11 // pred_region
          %s657 = ssub.s32 2560, 2560
          %658 = vsyncadd [#allocation12], %s657
          %s659 = sshll.u32 [#allocation13], 4
          %s660 = int_to_ptr.vmem [resolvable:$true] %s659
          %665 = dma.hbm_to_vmem [thread:$0]  %s10, 2560, %s660, [#allocation12], 256, 256, 16
        $region52: #{cnn_forward.1} parent=11 // pred_fallthru
          _
        // Predicated region
        $region53: #{cnn_forward.1} parent=11 // pred_check
          %p666 = pneg %p296
        $region54: #{cnn_forward.1} parent=11 // pred_check_branch
          %668 = sbr.rel (%p666) target = $region56
        $region55: #{cnn_forward.1} parent=11 // pred_region
          %s670 = ssub.s32 2560, 2560
          %671 = vsyncadd [#allocation15], %s670
          %s672 = sshll.u32 [#allocation14], 4
          %s673 = int_to_ptr.vmem [resolvable:$true] %s672
          %678 = dma.hbm_to_vmem [thread:$0]  %s11, 2560, %s673, [#allocation15], 256, 256, 16
        $region56: #{cnn_forward.1} parent=11 // pred_fallthru
          _
        // Predicated region
        $region57: #{cnn_forward.1} parent=11 // pred_check
          %p679 = pneg %p317
        $region58: #{cnn_forward.1} parent=11 // pred_check_branch
          %681 = sbr.rel (%p679) target = $region60
        $region59: #{cnn_forward.1} parent=11 // pred_region
          %s683 = ssub.s32 32, 32
          %684 = vsyncadd [#allocation15], %s683
          %s686 = sshll.u32 [#allocation16], 4
          %s687 = int_to_ptr.vmem [resolvable:$true] %s686
          %689 = dma.hbm_to_vmem [thread:$0]  %s12, 32, %s687, [#allocation15]
        $region60: #{cnn_forward.1} parent=11 // pred_fallthru
          _
        // Predicated region
        $region61: #{cnn_forward.1} parent=11 // pred_check
          %p690 = pneg %p338
        $region62: #{cnn_forward.1} parent=11 // pred_check_branch
          %692 = sbr.rel (%p690) target = $region64
        $region63: #{cnn_forward.1} parent=11 // pred_region
          %s694 = ssub.s32 128, 128
          %695 = vsyncadd [#allocation18], %s694
          %s697 = sshll.u32 [#allocation17], 4
          %s698 = int_to_ptr.vmem [resolvable:$true] %s697
          %700 = dma.hbm_to_vmem [thread:$0]  %s13, 128, %s698, [#allocation18]
        $region64: #{cnn_forward.1} parent=11 // pred_fallthru
          _
        // Predicated region
        $region65: #{cnn_forward.1} parent=11 // pred_check
          %p701 = pneg %p359
        $region66: #{cnn_forward.1} parent=11 // pred_check_branch
          %703 = sbr.rel (%p701) target = $region68
        $region67: #{cnn_forward.1} parent=11 // pred_region
          %s705 = ssub.s32 128, 128
          %706 = vsyncadd [#allocation18], %s705
          %s708 = sshll.u32 [#allocation19], 4
          %s709 = int_to_ptr.vmem [resolvable:$true] %s708
          %711 = dma.hbm_to_vmem [thread:$0]  %s14, 128, %s709, [#allocation18]
        $region68: #{cnn_forward.1} parent=11 // pred_fallthru
          _
        // Predicated region
        $region69: #{cnn_forward.1} parent=11 // pred_check
          %p712 = pneg %p380
        $region70: #{cnn_forward.1} parent=11 // pred_check_branch
          %714 = sbr.rel (%p712) target = $region72
        $region71: #{cnn_forward.1} parent=11 // pred_region
          _
        $region72: #{cnn_forward.1} parent=11 // pred_fallthru
          _
        // Predicated region
        $region73: #{cnn_forward.1} parent=11 // pred_check
          %p715 = pneg %p401
        $region74: #{cnn_forward.1} parent=11 // pred_check_branch
          %717 = sbr.rel (%p715) target = $region76
        $region75: #{cnn_forward.1} parent=11 // pred_region
          _
        $region76: #{cnn_forward.1} parent=11 // pred_fallthru
          _
        // Predicated region
        $region77: #{cnn_forward.1} parent=11 // pred_check
          %p718 = pneg %p422
        $region78: #{cnn_forward.1} parent=11 // pred_check_branch
          %720 = sbr.rel (%p718) target = $region80
        $region79: #{cnn_forward.1} parent=11 // pred_region
          _
        $region80: #{cnn_forward.1} parent=11 // pred_fallthru
          _
        // Predicated region
        $region81: #{cnn_forward.1} parent=11 // pred_check
          %p721 = pneg %p443
        $region82: #{cnn_forward.1} parent=11 // pred_check_branch
          %723 = sbr.rel (%p721) target = $region84
        $region83: #{cnn_forward.1} parent=11 // pred_region
          _
        $region84: #{cnn_forward.1} parent=11 // pred_fallthru
          _
        // Predicated region
        $region85: #{cnn_forward.1} parent=11 // pred_check
          %p724 = pneg %p464
        $region86: #{cnn_forward.1} parent=11 // pred_check_branch
          %726 = sbr.rel (%p724) target = $region88
        $region87: #{cnn_forward.1} parent=11 // pred_region
          %s728 = ssub.s32 2048, 2048
          %729 = vsyncadd [#allocation21], %s728
          %s730 = sshll.u32 [#allocation20], 4
          %s731 = int_to_ptr.vmem [resolvable:$true] %s730
          %736 = dma.hbm_to_vmem [thread:$0]  %s19, 2048, %s731, [#allocation21], 128, 128, 8
        $region88: #{cnn_forward.1} parent=11 // pred_fallthru
          _
        // Predicated region
        $region89: #{cnn_forward.1} parent=11 // pred_check
          %p737 = pneg %p485
        $region90: #{cnn_forward.1} parent=11 // pred_check_branch
          %739 = sbr.rel (%p737) target = $region92
        $region91: #{cnn_forward.1} parent=11 // pred_region
          _
        $region92: #{cnn_forward.1} parent=11 // pred_fallthru
          _
        // Predicated region
        $region93: #{cnn_forward.1} parent=11 // pred_check
          %p740 = pneg %p506
        $region94: #{cnn_forward.1} parent=11 // pred_check_branch
          %742 = sbr.rel (%p740) target = $region96
        $region95: #{cnn_forward.1} parent=11 // pred_region
          %s744 = ssub.s32 2048, 2048
          %745 = vsyncadd [#allocation21], %s744
          %s746 = sshll.u32 [#allocation22], 4
          %s747 = int_to_ptr.vmem [resolvable:$true] %s746
          %752 = dma.hbm_to_vmem [thread:$0]  %s21, 2048, %s747, [#allocation21], 128, 128, 8
        $region96: #{cnn_forward.1} parent=11 // pred_fallthru
          _
        // Predicated region
        $region97: #{cnn_forward.1} parent=11 // pred_check
          %p753 = pneg %p527
        $region98: #{cnn_forward.1} parent=11 // pred_check_branch
          %755 = sbr.rel (%p753) target = $region100
        $region99: #{cnn_forward.1} parent=11 // pred_region
          _
        $region100: #{cnn_forward.1} parent=11 // pred_fallthru
          _
      $region12: #{cnn_forward.1} parent=5 // pred_fallthru
        _
      %p756 = scmp.lt.s32.totalorder %s39, 2
      // Predicated region
      $region101: #{cnn_forward.1} parent=5 // pred_check
        %p757 = pneg %p756
      $region102: #{cnn_forward.1} parent=5 // pred_check_branch
        %759 = sbr.rel (%p757) target = $region104
      $region103: #{cnn_forward.1} parent=5 // pred_region
        // Predicated region
        $region105: #{cnn_forward.1} parent=103 // pred_check
          %p760 = pneg %p59
        $region106: #{cnn_forward.1} parent=103 // pred_check_branch
          %762 = sbr.rel (%p760) target = $region108
        $region107: #{cnn_forward.1} parent=103 // pred_region
          %p763 = scmp.lt.s32.totalorder %s39, 1
          %s764 = scalar_select %p763, %s39, 1
          %s765 = smul.addr %s764, 4
          %s766 = smul.addr %s765, 8
          %s767 = scalar_lea.vmem %s0, %s766
        $region108: #{cnn_forward.1} parent=103 // pred_fallthru
          _
      $region104: #{cnn_forward.1} parent=5 // pred_fallthru
        _
      %p768 = scmp.le.s32.totalorder 1, %s39
      %p769 = scmp.lt.s32.totalorder %s39, 3
      %p770 = pnand %p768, %p769
      %p771 = pneg %p770
      // Predicated region
      $region109: #{cnn_forward.1} parent=5 // pred_check
        _
      $region110: #{cnn_forward.1} parent=5 // pred_check_branch
        %773 = sbr.rel (%p770) target = $region112
      $region111: #{cnn_forward.1} parent=5 // pred_region
        %s774 = ssub.s32 %s39, 1
        // Predicated region
        $region113: #{cnn_forward.1} parent=111 // pred_check
          %p775 = pneg %p107
        $region114: #{cnn_forward.1} parent=111 // pred_check_branch
          %777 = sbr.rel (%p775) target = $region116
        $region115: #{cnn_forward.1} parent=111 // pred_region
          %778 = dma.done [#allocation3], 1024
        $region116: #{cnn_forward.1} parent=111 // pred_fallthru
          _
        // Predicated region
        $region117: #{cnn_forward.1} parent=111 // pred_check
          %p779 = pneg %p128
        $region118: #{cnn_forward.1} parent=111 // pred_check_branch
          %781 = sbr.rel (%p779) target = $region120
        $region119: #{cnn_forward.1} parent=111 // pred_region
          %782 = dma.done [#allocation6], 1024
        $region120: #{cnn_forward.1} parent=111 // pred_fallthru
          _
        // Predicated region
        $region121: #{cnn_forward.1} parent=111 // pred_check
          %p783 = pneg %p149
        $region122: #{cnn_forward.1} parent=111 // pred_check_branch
          %785 = sbr.rel (%p783) target = $region124
        $region123: #{cnn_forward.1} parent=111 // pred_region
          %786 = dma.done [#allocation6], 32
        $region124: #{cnn_forward.1} parent=111 // pred_fallthru
          _
        // Predicated region
        $region125: #{cnn_forward.1} parent=111 // pred_check
          %p787 = pneg %p191
        $region126: #{cnn_forward.1} parent=111 // pred_check_branch
          %789 = sbr.rel (%p787) target = $region128
        $region127: #{cnn_forward.1} parent=111 // pred_region
          %790 = dma.done [#allocation9], 256
        $region128: #{cnn_forward.1} parent=111 // pred_fallthru
          _
        // Predicated region
        $region129: #{cnn_forward.1} parent=111 // pred_check
          %p791 = pneg %p233
        $region130: #{cnn_forward.1} parent=111 // pred_check_branch
          %793 = sbr.rel (%p791) target = $region132
        $region131: #{cnn_forward.1} parent=111 // pred_region
          %794 = dma.done [#allocation9], 2560
        $region132: #{cnn_forward.1} parent=111 // pred_fallthru
          _
        // Predicated region
        $region133: #{cnn_forward.1} parent=111 // pred_check
          %p795 = pneg %p254
        $region134: #{cnn_forward.1} parent=111 // pred_check_branch
          %797 = sbr.rel (%p795) target = $region136
        $region135: #{cnn_forward.1} parent=111 // pred_region
          %798 = dma.done [#allocation12], 2560
        $region136: #{cnn_forward.1} parent=111 // pred_fallthru
          _
        // Predicated region
        $region137: #{cnn_forward.1} parent=111 // pred_check
          %p799 = pneg %p275
        $region138: #{cnn_forward.1} parent=111 // pred_check_branch
          %801 = sbr.rel (%p799) target = $region140
        $region139: #{cnn_forward.1} parent=111 // pred_region
          %802 = dma.done [#allocation12], 2560
        $region140: #{cnn_forward.1} parent=111 // pred_fallthru
          _
        // Predicated region
        $region141: #{cnn_forward.1} parent=111 // pred_check
          %p803 = pneg %p296
        $region142: #{cnn_forward.1} parent=111 // pred_check_branch
          %805 = sbr.rel (%p803) target = $region144
        $region143: #{cnn_forward.1} parent=111 // pred_region
          %806 = dma.done [#allocation15], 2560
        $region144: #{cnn_forward.1} parent=111 // pred_fallthru
          _
        // Predicated region
        $region145: #{cnn_forward.1} parent=111 // pred_check
          %p807 = pneg %p317
        $region146: #{cnn_forward.1} parent=111 // pred_check_branch
          %809 = sbr.rel (%p807) target = $region148
        $region147: #{cnn_forward.1} parent=111 // pred_region
          %810 = dma.done [#allocation15], 32
        $region148: #{cnn_forward.1} parent=111 // pred_fallthru
          _
        // Predicated region
        $region149: #{cnn_forward.1} parent=111 // pred_check
          %p811 = pneg %p338
        $region150: #{cnn_forward.1} parent=111 // pred_check_branch
          %813 = sbr.rel (%p811) target = $region152
        $region151: #{cnn_forward.1} parent=111 // pred_region
          %814 = dma.done [#allocation18], 128
        $region152: #{cnn_forward.1} parent=111 // pred_fallthru
          _
        // Predicated region
        $region153: #{cnn_forward.1} parent=111 // pred_check
          %p815 = pneg %p359
        $region154: #{cnn_forward.1} parent=111 // pred_check_branch
          %817 = sbr.rel (%p815) target = $region156
        $region155: #{cnn_forward.1} parent=111 // pred_region
          %818 = dma.done [#allocation18], 128
        $region156: #{cnn_forward.1} parent=111 // pred_fallthru
          _
        // Predicated region
        $region157: #{cnn_forward.1} parent=111 // pred_check
          %p819 = pneg %p464
        $region158: #{cnn_forward.1} parent=111 // pred_check_branch
          %821 = sbr.rel (%p819) target = $region160
        $region159: #{cnn_forward.1} parent=111 // pred_region
          %822 = dma.done [#allocation21], 2048
        $region160: #{cnn_forward.1} parent=111 // pred_fallthru
          _
        // Predicated region
        $region161: #{cnn_forward.1} parent=111 // pred_check
          %p823 = pneg %p506
        $region162: #{cnn_forward.1} parent=111 // pred_check_branch
          %825 = sbr.rel (%p823) target = $region164
        $region163: #{cnn_forward.1} parent=111 // pred_region
          %826 = dma.done [#allocation21], 2048
        $region164: #{cnn_forward.1} parent=111 // pred_fallthru
          _
        %p827 = scmp.lt.s32.totalorder %s44, 1
        %s828 = scalar_select %p827, %s44, 1
        %s829 = smul.addr %s828, 4
        %s830 = smul.addr %s829, 8
        %s831 = scalar_lea.vmem %s0, %s830
        %p832 = pneg %p65
        %p833 = pneg %p62
        %p834 = pneg %p86
        %p835 = pneg %p83
        %p836 = pneg %p107
        %p837 = pneg %p104
        %p838 = pneg %p128
        %p839 = pneg %p125
        %p840 = pneg %p149
        %p841 = pneg %p146
        %p842 = pneg %p170
        %p843 = pneg %p167
        %p844 = pneg %p191
        %p845 = pneg %p188
        %p846 = pneg %p212
        %p847 = pneg %p209
        %p848 = pneg %p233
        %p849 = pneg %p230
        %p850 = pneg %p254
        %p851 = pneg %p251
        %p852 = pneg %p275
        %p853 = pneg %p272
        %p854 = pneg %p296
        %p855 = pneg %p293
        %p856 = pneg %p317
        %p857 = pneg %p314
        %p858 = pneg %p338
        %p859 = pneg %p335
        %p860 = pneg %p359
        %p861 = pneg %p356
        %p862 = pneg %p380
        %p863 = pneg %p377
        %p864 = pneg %p401
        %p865 = pneg %p398
        %p866 = pneg %p422
        %p867 = pneg %p419
        %p868 = pneg %p443
        %p869 = pneg %p440
        %p870 = pneg %p464
        %p871 = pneg %p461
        %p872 = pneg %p485
        %p873 = pneg %p482
        %p874 = pneg %p506
        %p875 = pneg %p503
        %p876 = pneg %p527
        %p877 = pneg %p524
        %p878 = pneg %p553
        %p879 = pneg %p550
        %s880 = sand.u32 %s540, 1
        %s881 = scalar_lea.sflag [#allocation4], %s880
        %s882 = sand.u32 %s540, 1
        %s883 = scalar_lea.vmem [#allocation23], %s882
        %p884 = scmp.lt.s32.totalorder %s44, 1
        %s885 = scalar_select %p884, %s44, 1
        %s886 = smul.addr %s885, 4
        %s887 = smul.addr %s886, 8
        %s888 = scalar_lea.vmem %s0, %s887
        %v889 = vld [vmem:[%s1] sm:$0xff]
        %v890 = vld [vmem:[%s1 + $0x8] sm:$0xff]
        %v891 = vld [vmem:[%s1 + $0x10] sm:$0xff]
        %v892 = vld [vmem:[%s1 + $0x18] sm:$0xff]
        %v893 = vld [vmem:[%s1 + $0x20] sm:$0xff]
        %v894 = vld [vmem:[%s1 + $0x28] sm:$0xff]
        %v895 = vld [vmem:[%s1 + $0x30] sm:$0xf]
        %v896 = vld [vmem:[%s1 + $0x38] sm:$0xf]
        %v897 = vld [vmem:[#allocation2] sm:$0xff]
        %v898 = vld [vmem:[#allocation2 + $0x8] sm:$0xff]
        %v899 = vld [vmem:[#allocation2 + $0x10] sm:$0xff]
        %v900 = vld [vmem:[#allocation2 + $0x18] sm:$0xff]
        %v901 = vld [vmem:[#allocation2 + $0x20] sm:$0xff]
        %v902 = vld [vmem:[#allocation2 + $0x28] sm:$0xff]
        %v903 = vld [vmem:[#allocation2 + $0x30] sm:$0xf]
        %v904 = vld [vmem:[#allocation2 + $0x38] sm:$0xf]
        %v905 = vld [vmem:[#allocation5] sm:$0xff]
        %v906 = vld [vmem:[#allocation5 + $0x8] sm:$0xff]
        %v907 = vld [vmem:[#allocation5 + $0x10] sm:$0xff]
        %v908 = vld [vmem:[#allocation5 + $0x18] sm:$0xff]
        %v909 = vld [vmem:[#allocation5 + $0x20] sm:$0xff]
        %v910 = vld [vmem:[#allocation5 + $0x28] sm:$0xff]
        %v911 = vld [vmem:[#allocation5 + $0x30] sm:$0xf]
        %v912 = vld [vmem:[#allocation5 + $0x38] sm:$0xf]
        %v913 = vld [vmem:[#allocation7] sm:$0x3]
        %v914 = vld [vmem:[%s5] sm:$0xff]
        %v915 = vld [vmem:[%s5 + $0x8] sm:$0x1f]
        %v916 = vld [vmem:[#allocation8] sm:$0xff]
        %v917 = vld [vmem:[#allocation8 + $0x8] sm:$0x1f]
        %v918 = vld [vmem:[%s7] sm:$0xff]
        %v919 = vld [vmem:[%s7 + $0x8] sm:$0xff]
        %v920 = vld [vmem:[%s7 + $0x10] sm:$0xff]
        %v921 = vld [vmem:[%s7 + $0x18] sm:$0xff]
        %v922 = vld [vmem:[%s7 + $0x20] sm:$0xff]
        %v923 = vld [vmem:[%s7 + $0x28] sm:$0xff]
        %v924 = vld [vmem:[%s7 + $0x30] sm:$0xff]
        %v925 = vld [vmem:[%s7 + $0x38] sm:$0xff]
        %v926 = vld [vmem:[%s7 + $0x40] sm:$0xff]
        %v927 = vld [vmem:[%s7 + $0x48] sm:$0xff]
        %v928 = vld [vmem:[%s7 + $0x50] sm:$0xff]
        %v929 = vld [vmem:[%s7 + $0x58] sm:$0xff]
        %v930 = vld [vmem:[%s7 + $0x60] sm:$0xff]
        %v931 = vld [vmem:[%s7 + $0x68] sm:$0xff]
        %v932 = vld [vmem:[%s7 + $0x70] sm:$0xff]
        %v933 = vld [vmem:[%s7 + $0x78] sm:$0xff]
        %v934 = vld [vmem:[%s7 + $0x80] sm:$0xff]
        %v935 = vld [vmem:[%s7 + $0x88] sm:$0xff]
        %v936 = vld [vmem:[%s7 + $0x90] sm:$0xff]
        %v937 = vld [vmem:[%s7 + $0x98] sm:$0xf]
        %v938 = vld [vmem:[#allocation10] sm:$0xff]
        %v939 = vld [vmem:[#allocation10 + $0x8] sm:$0xff]
        %v940 = vld [vmem:[#allocation10 + $0x10] sm:$0xff]
        %v941 = vld [vmem:[#allocation10 + $0x18] sm:$0xff]
        %v942 = vld [vmem:[#allocation10 + $0x20] sm:$0xff]
        %v943 = vld [vmem:[#allocation10 + $0x28] sm:$0xff]
        %v944 = vld [vmem:[#allocation10 + $0x30] sm:$0xff]
        %v945 = vld [vmem:[#allocation10 + $0x38] sm:$0xff]
        %v946 = vld [vmem:[#allocation10 + $0x40] sm:$0xff]
        %v947 = vld [vmem:[#allocation10 + $0x48] sm:$0xff]
        %v948 = vld [vmem:[#allocation10 + $0x50] sm:$0xff]
        %v949 = vld [vmem:[#allocation10 + $0x58] sm:$0xff]
        %v950 = vld [vmem:[#allocation10 + $0x60] sm:$0xff]
        %v951 = vld [vmem:[#allocation10 + $0x68] sm:$0xff]
        %v952 = vld [vmem:[#allocation10 + $0x70] sm:$0xff]
        %v953 = vld [vmem:[#allocation10 + $0x78] sm:$0xff]
        %v954 = vld [vmem:[#allocation10 + $0x80] sm:$0xff]
        %v955 = vld [vmem:[#allocation10 + $0x88] sm:$0xff]
        %v956 = vld [vmem:[#allocation10 + $0x90] sm:$0xff]
        %v957 = vld [vmem:[#allocation10 + $0x98] sm:$0xf]
        %v958 = vld [vmem:[#allocation11] sm:$0xff]
        %v959 = vld [vmem:[#allocation11 + $0x8] sm:$0xff]
        %v960 = vld [vmem:[#allocation11 + $0x10] sm:$0xff]
        %v961 = vld [vmem:[#allocation11 + $0x18] sm:$0xff]
        %v962 = vld [vmem:[#allocation11 + $0x20] sm:$0xff]
        %v963 = vld [vmem:[#allocation11 + $0x28] sm:$0xff]
        %v964 = vld [vmem:[#allocation11 + $0x30] sm:$0xff]
        %v965 = vld [vmem:[#allocation11 + $0x38] sm:$0xff]
        %v966 = vld [vmem:[#allocation11 + $0x40] sm:$0xff]
        %v967 = vld [vmem:[#allocation11 + $0x48] sm:$0xff]
        %v968 = vld [vmem:[#allocation11 + $0x50] sm:$0xff]
        %v969 = vld [vmem:[#allocation11 + $0x58] sm:$0xff]
        %v970 = vld [vmem:[#allocation11 + $0x60] sm:$0xff]
        %v971 = vld [vmem:[#allocation11 + $0x68] sm:$0xff]
        %v972 = vld [vmem:[#allocation11 + $0x70] sm:$0xff]
        %v973 = vld [vmem:[#allocation11 + $0x78] sm:$0xff]
        %v974 = vld [vmem:[#allocation11 + $0x80] sm:$0xff]
        %v975 = vld [vmem:[#allocation11 + $0x88] sm:$0xff]
        %v976 = vld [vmem:[#allocation11 + $0x90] sm:$0x3f]
        %v977 = vld [vmem:[#allocation11 + $0x98] sm:$0x3f]
        %v978 = vld [vmem:[#allocation13] sm:$0xff]
        %v979 = vld [vmem:[#allocation13 + $0x8] sm:$0xff]
        %v980 = vld [vmem:[#allocation13 + $0x10] sm:$0xff]
        %v981 = vld [vmem:[#allocation13 + $0x18] sm:$0xff]
        %v982 = vld [vmem:[#allocation13 + $0x20] sm:$0xff]
        %v983 = vld [vmem:[#allocation13 + $0x28] sm:$0xff]
        %v984 = vld [vmem:[#allocation13 + $0x30] sm:$0xff]
        %v985 = vld [vmem:[#allocation13 + $0x38] sm:$0xff]
        %v986 = vld [vmem:[#allocation13 + $0x40] sm:$0xff]
        %v987 = vld [vmem:[#allocation13 + $0x48] sm:$0xff]
        %v988 = vld [vmem:[#allocation13 + $0x50] sm:$0xff]
        %v989 = vld [vmem:[#allocation13 + $0x58] sm:$0xff]
        %v990 = vld [vmem:[#allocation13 + $0x60] sm:$0xff]
        %v991 = vld [vmem:[#allocation13 + $0x68] sm:$0xff]
        %v992 = vld [vmem:[#allocation13 + $0x70] sm:$0xff]
        %v993 = vld [vmem:[#allocation13 + $0x78] sm:$0xff]
        %v994 = vld [vmem:[#allocation13 + $0x80] sm:$0xff]
        %v995 = vld [vmem:[#allocation13 + $0x88] sm:$0xff]
        %v996 = vld [vmem:[#allocation13 + $0x90] sm:$0x3f]
        %v997 = vld [vmem:[#allocation13 + $0x98] sm:$0x3f]
        %v998 = vld [vmem:[#allocation14] sm:$0xff]
        %v999 = vld [vmem:[#allocation14 + $0x8] sm:$0xff]
        %v1000 = vld [vmem:[#allocation14 + $0x10] sm:$0xff]
        %v1001 = vld [vmem:[#allocation14 + $0x18] sm:$0xff]
        %v1002 = vld [vmem:[#allocation14 + $0x20] sm:$0xff]
        %v1003 = vld [vmem:[#allocation14 + $0x28] sm:$0xff]
        %v1004 = vld [vmem:[#allocation14 + $0x30] sm:$0xff]
        %v1005 = vld [vmem:[#allocation14 + $0x38] sm:$0xff]
        %v1006 = vld [vmem:[#allocation14 + $0x40] sm:$0xff]
        %v1007 = vld [vmem:[#allocation14 + $0x48] sm:$0xff]
        %v1008 = vld [vmem:[#allocation14 + $0x50] sm:$0xff]
        %v1009 = vld [vmem:[#allocation14 + $0x58] sm:$0xff]
        %v1010 = vld [vmem:[#allocation14 + $0x60] sm:$0xff]
        %v1011 = vld [vmem:[#allocation14 + $0x68] sm:$0xff]
        %v1012 = vld [vmem:[#allocation14 + $0x70] sm:$0xff]
        %v1013 = vld [vmem:[#allocation14 + $0x78] sm:$0xff]
        %v1014 = vld [vmem:[#allocation14 + $0x80] sm:$0xff]
        %v1015 = vld [vmem:[#allocation14 + $0x88] sm:$0xff]
        %v1016 = vld [vmem:[#allocation14 + $0x90] sm:$0x3f]
        %v1017 = vld [vmem:[#allocation14 + $0x98] sm:$0x3f]
        %v1018 = vld [vmem:[#allocation16] sm:$0x3]
        %v1019 = vld [vmem:[#allocation17] sm:$0x1f]
        %v1020 = vld [vmem:[#allocation19] sm:$0x1f]
        %v1021 = vld [vmem:[%s15] sm:$0xff]
        %v1022 = vld [vmem:[%s15 + $0x8] sm:$0xff]
        %v1023 = vld [vmem:[%s15 + $0x10] sm:$0xff]
        %v1024 = vld [vmem:[%s15 + $0x18] sm:$0xff]
        %v1025 = vld [vmem:[%s15 + $0x20] sm:$0xff]
        %v1026 = vld [vmem:[%s15 + $0x28] sm:$0xff]
        %v1027 = vld [vmem:[%s15 + $0x30] sm:$0xff]
        %v1028 = vld [vmem:[%s15 + $0x38] sm:$0xff]
        %v1029 = vld [vmem:[%s15 + $0x40] sm:$0xff]
        %v1030 = vld [vmem:[%s15 + $0x48] sm:$0xff]
        %v1031 = vld [vmem:[%s15 + $0x50] sm:$0xff]
        %v1032 = vld [vmem:[%s15 + $0x58] sm:$0xff]
        %v1033 = vld [vmem:[%s15 + $0x60] sm:$0xff]
        %v1034 = vld [vmem:[%s15 + $0x68] sm:$0xff]
        %v1035 = vld [vmem:[%s15 + $0x70] sm:$0xff]
        %v1036 = vld [vmem:[%s15 + $0x78] sm:$0xff]
        %v1037 = vld [vmem:[%s15 + $0x80] sm:$0xff]
        %v1038 = vld [vmem:[%s15 + $0x88] sm:$0xff]
        %v1039 = vld [vmem:[%s15 + $0x90] sm:$0xff]
        %v1040 = vld [vmem:[%s15 + $0x98] sm:$0xff]
        %v1041 = vld [vmem:[%s15 + $0xa0] sm:$0xff]
        %v1042 = vld [vmem:[%s15 + $0xa8] sm:$0xff]
        %v1043 = vld [vmem:[%s16] sm:$0xff]
        %v1044 = vld [vmem:[%s16 + $0x8] sm:$0xff]
        %v1045 = vld [vmem:[%s16 + $0x10] sm:$0xff]
        %v1046 = vld [vmem:[%s16 + $0x18] sm:$0xff]
        %v1047 = vld [vmem:[%s16 + $0x20] sm:$0xff]
        %v1048 = vld [vmem:[%s16 + $0x28] sm:$0xff]
        %v1049 = vld [vmem:[%s16 + $0x30] sm:$0xff]
        %v1050 = vld [vmem:[%s16 + $0x38] sm:$0xff]
        %v1051 = vld [vmem:[%s16 + $0x40] sm:$0xff]
        %v1052 = vld [vmem:[%s16 + $0x48] sm:$0xff]
        %v1053 = vld [vmem:[%s16 + $0x50] sm:$0xff]
        %v1054 = vld [vmem:[%s16 + $0x58] sm:$0xff]
        %v1055 = vld [vmem:[%s16 + $0x60] sm:$0xff]
        %v1056 = vld [vmem:[%s16 + $0x68] sm:$0xff]
        %v1057 = vld [vmem:[%s16 + $0x70] sm:$0xff]
        %v1058 = vld [vmem:[%s16 + $0x78] sm:$0xff]
        %v1059 = vld [vmem:[%s16 + $0x80] sm:$0xff]
        %v1060 = vld [vmem:[%s16 + $0x88] sm:$0xff]
        %v1061 = vld [vmem:[%s16 + $0x90] sm:$0xff]
        %v1062 = vld [vmem:[%s16 + $0x98] sm:$0xff]
        %v1063 = vld [vmem:[%s16 + $0xa0] sm:$0xff]
        %v1064 = vld [vmem:[%s16 + $0xa8] sm:$0xff]
        %v1065 = vld [vmem:[%s888] sm:$0xff]
        %v1066 = vld [vmem:[%s888 + $0x8] sm:$0xff]
        %v1067 = vld [vmem:[%s888 + $0x10] sm:$0xff]
        %v1068 = vld [vmem:[%s888 + $0x18] sm:$0xf]
        %vm1073 = vcmask 1046528
        %v1074 = vrot.slane %v1065, 1
        %v1075 = vrot.slane %v1066, 1
        %v1076 = vsel %vm1073, %v1074, %v1075
        %v1077 = vrot.slane %v1067, 1
        %v1078 = vsel %vm1073, %v1075, %v1077
        %v1079 = vrot.slane %v1068, 1
        %v1080 = vsel %vm1073, %v1077, %v1079
        %vm1081 = vcmask 228352
        %v1082 = vsel %vm1081, %v1076, 0
        %v1084 = vsel %vm1081, %v1078, 0
        %v1086 = vsel %vm1081, %v1080, 0
        %v1088 = vsel %vm1081, %v1079, 0
        %vm1090 = vcmask 1043456
        %v1092 = vsel %vm1090, %v903, 0
        %v1095 = vsel %vm1090, %v904, 0
        %1097 = vmatprep.subr.mxu0 %v898
        %1098 = vmatpush1.msra.mxu0 %v897
        %1099 = vmatprep.subr.mxu0 %v900
        %1100 = vmatpush1.msra.mxu0 %v899
        %1101 = vmatprep.subr.mxu0 %v902
        %1102 = vmatpush1.msra.mxu0 %v901
        %1103 = vmatprep.subr.mxu0 %v1095
        %1104 = vmatpush1.msra.mxu0 %v1092
        %1105 = vmatprep.subr.mxu0 0.0
        %1106 = vmatpush1.msra.mxu0 0.0
        %1107 = vmatprep.subr.mxu0 0.0
        %1108 = vmatpush1.msra.mxu0 0.0
        %1109 = vmatprep.subr.mxu0 0.0
        %1110 = vmatpush1.msra.mxu0 0.0
        %1111 = vmatprep.subr.mxu0 0.0
        %1112 = vmatpush1.msra.mxu0 0.0
        %1113 = vmatprep.subr.mxu0 0.0
        %1114 = vmatpush1.msra.mxu0 0.0
        %1115 = vmatprep.subr.mxu0 0.0
        %1116 = vmatpush1.msra.mxu0 0.0
        %1117 = vmatprep.subr.mxu0 0.0
        %1118 = vmatpush1.msra.mxu0 0.0
        %1119 = vmatprep.subr.mxu0 0.0
        %1120 = vmatpush1.msra.mxu0 0.0
        %1121 = vmatprep.subr.mxu0 0.0
        %1122 = vmatpush1.msra.mxu0 0.0
        %1123 = vmatprep.subr.mxu0 0.0
        %1124 = vmatpush1.msra.mxu0 0.0
        %1125 = vmatprep.subr.mxu0 0.0
        %1126 = vmatpush1.msra.mxu0 0.0
        %1127 = vmatprep.subr.mxu0 0.0
        %1128 = vmatpush1.msra.mxu0 0.0
        %1129 = vmatprep.subr.mxu0 0.0
        %1130 = vmatpush1.msra.mxu0 0.0
        %1131 = vmatprep.subr.mxu0 0.0
        %1132 = vmatpush1.msra.mxu0 0.0
        %1133 = vmatprep.subr.mxu0 0.0
        %1134 = vmatpush1.msra.mxu0 0.0
        %1135 = vmatprep.subr.mxu0 0.0
        %1136 = vmatpush1.msra.mxu0 0.0
        %1137 = vmatprep.subr.mxu0 0.0
        %1138 = vmatpush1.msra.mxu0 0.0
        %1139 = vmatprep.subr.mxu0 0.0
        %1140 = vmatpush1.msra.mxu0 0.0
        %1141 = vmatprep.subr.mxu0 0.0
        %1142 = vmatpush1.msra.mxu0 0.0
        %1143 = vmatprep.subr.mxu0 0.0
        %1144 = vmatpush1.msra.mxu0 0.0
        %1145 = vmatprep.subr.mxu0 0.0
        %1146 = vmatpush1.msra.mxu0 0.0
        %1147 = vmatprep.subr.mxu0 0.0
        %1148 = vmatpush1.msra.mxu0 0.0
        %1149 = vmatprep.subr.mxu0 0.0
        %1150 = vmatpush1.msra.mxu0 0.0
        %1151 = vmatprep.subr.mxu0 0.0
        %1152 = vmatpush1.msra.mxu0 0.0
        %1153 = vmatprep.subr.mxu0 0.0
        %1154 = vmatpush1.msra.mxu0 0.0
        %1155 = vmatprep.subr.mxu0 0.0
        %1156 = vmatpush1.msra.mxu0 0.0
        %1157 = vmatprep.subr.mxu0 0.0
        %1158 = vmatpush1.msra.mxu0 0.0
        %1159 = vmatprep.subr.mxu0 0.0
        %1160 = vmatpush1.msra.mxu0 0.0
        %1161 = vmatprep.mubr.f32.mxu0 0.0
        %1162 = vmatmul.mubr.f32.gmra.mrb[0].mxu0 %v1082
        %v1163 = vpop.f32.mrb[0].mxu0
        %v1164 = vadd.f32 0.0, %v1163
        %v1165 = vpop.f32.mrb[0].mxu0
        %v1166 = vadd.f32 0.0, %v1165
        %1167 = vmatprep.mubr.f32.mxu0 0.0
        %1168 = vmatmul.mubr.f32.gmra.mrb[0].mxu0 %v1084
        %v1169 = vpop.f32.mrb[0].mxu0
        %v1170 = vadd.f32 0.0, %v1169
        %v1171 = vpop.f32.mrb[0].mxu0
        %v1172 = vadd.f32 0.0, %v1171
        %1173 = vmatprep.mubr.f32.mxu0 0.0
        %1174 = vmatmul.mubr.f32.gmra.mrb[0].mxu0 %v1086
        %v1175 = vpop.f32.mrb[0].mxu0
        %v1176 = vadd.f32 0.0, %v1175
        %v1177 = vpop.f32.mrb[0].mxu0
        %v1178 = vadd.f32 0.0, %v1177
        %1179 = vmatprep.mubr.f32.mxu0 0.0
        %1180 = vmatmul.mubr.f32.gmra.mrb[0].mxu0 %v1088
        %v1181 = vpop.f32.mrb[0].mxu0
        %v1182 = vadd.f32 0.0, %v1181
        %v1183 = vpop.f32.mrb[0].mxu0
        %v1184 = vadd.f32 0.0, %v1183
        %1185 = vdwg.mxu0
        %v1186 = vsel %vm1081, %v1065, 0
        %v1188 = vsel %vm1081, %v1066, 0
        %v1190 = vsel %vm1081, %v1067, 0
        %v1192 = vsel %vm1081, %v1068, 0
        %v1195 = vsel %vm1090, %v895, 0
        %v1198 = vsel %vm1090, %v896, 0
        %1200 = vmatprep.subr.mxu0 %v890
        %1201 = vmatpush1.msra.mxu0 %v889
        %1202 = vmatprep.subr.mxu0 %v892
        %1203 = vmatpush1.msra.mxu0 %v891
        %1204 = vmatprep.subr.mxu0 %v894
        %1205 = vmatpush1.msra.mxu0 %v893
        %1206 = vmatprep.subr.mxu0 %v1198
        %1207 = vmatpush1.msra.mxu0 %v1195
        %1208 = vmatprep.subr.mxu0 0.0
        %1209 = vmatpush1.msra.mxu0 0.0
        %1210 = vmatprep.subr.mxu0 0.0
        %1211 = vmatpush1.msra.mxu0 0.0
        %1212 = vmatprep.subr.mxu0 0.0
        %1213 = vmatpush1.msra.mxu0 0.0
        %1214 = vmatprep.subr.mxu0 0.0
        %1215 = vmatpush1.msra.mxu0 0.0
        %1216 = vmatprep.subr.mxu0 0.0
        %1217 = vmatpush1.msra.mxu0 0.0
        %1218 = vmatprep.subr.mxu0 0.0
        %1219 = vmatpush1.msra.mxu0 0.0
        %1220 = vmatprep.subr.mxu0 0.0
        %1221 = vmatpush1.msra.mxu0 0.0
        %1222 = vmatprep.subr.mxu0 0.0
        %1223 = vmatpush1.msra.mxu0 0.0
        %1224 = vmatprep.subr.mxu0 0.0
        %1225 = vmatpush1.msra.mxu0 0.0
        %1226 = vmatprep.subr.mxu0 0.0
        %1227 = vmatpush1.msra.mxu0 0.0
        %1228 = vmatprep.subr.mxu0 0.0
        %1229 = vmatpush1.msra.mxu0 0.0
        %1230 = vmatprep.subr.mxu0 0.0
        %1231 = vmatpush1.msra.mxu0 0.0
        %1232 = vmatprep.subr.mxu0 0.0
        %1233 = vmatpush1.msra.mxu0 0.0
        %1234 = vmatprep.subr.mxu0 0.0
        %1235 = vmatpush1.msra.mxu0 0.0
        %1236 = vmatprep.subr.mxu0 0.0
        %1237 = vmatpush1.msra.mxu0 0.0
        %1238 = vmatprep.subr.mxu0 0.0
        %1239 = vmatpush1.msra.mxu0 0.0
        %1240 = vmatprep.subr.mxu0 0.0
        %1241 = vmatpush1.msra.mxu0 0.0
        %1242 = vmatprep.subr.mxu0 0.0
        %1243 = vmatpush1.msra.mxu0 0.0
        %1244 = vmatprep.subr.mxu0 0.0
        %1245 = vmatpush1.msra.mxu0 0.0
        %1246 = vmatprep.subr.mxu0 0.0
        %1247 = vmatpush1.msra.mxu0 0.0
        %1248 = vmatprep.subr.mxu0 0.0
        %1249 = vmatpush1.msra.mxu0 0.0
        %1250 = vmatprep.subr.mxu0 0.0
        %1251 = vmatpush1.msra.mxu0 0.0
        %1252 = vmatprep.subr.mxu0 0.0
        %1253 = vmatpush1.msra.mxu0 0.0
        %1254 = vmatprep.subr.mxu0 0.0
        %1255 = vmatpush1.msra.mxu0 0.0
        %1256 = vmatprep.subr.mxu0 0.0
        %1257 = vmatpush1.msra.mxu0 0.0
        %1258 = vmatprep.subr.mxu0 0.0
        %1259 = vmatpush1.msra.mxu0 0.0
        %1260 = vmatprep.subr.mxu0 0.0
        %1261 = vmatpush1.msra.mxu0 0.0
        %1262 = vmatprep.subr.mxu0 0.0
        %1263 = vmatpush1.msra.mxu0 0.0
        %1264 = vmatprep.mubr.f32.mxu0 0.0
        %1265 = vmatmul.mubr.f32.gmra.mrb[0].mxu0 %v1186
        %v1266 = vpop.f32.mrb[0].mxu0
        %v1267 = vadd.f32 %v1164, %v1266
        %v1268 = vpop.f32.mrb[0].mxu0
        %v1269 = vadd.f32 %v1166, %v1268
        %1270 = vmatprep.mubr.f32.mxu0 0.0
        %1271 = vmatmul.mubr.f32.gmra.mrb[0].mxu0 %v1188
        %v1272 = vpop.f32.mrb[0].mxu0
        %v1273 = vadd.f32 %v1170, %v1272
        %v1274 = vpop.f32.mrb[0].mxu0
        %v1275 = vadd.f32 %v1172, %v1274
        %1276 = vmatprep.mubr.f32.mxu0 0.0
        %1277 = vmatmul.mubr.f32.gmra.mrb[0].mxu0 %v1190
        %v1278 = vpop.f32.mrb[0].mxu0
        %v1279 = vadd.f32 %v1176, %v1278
        %v1280 = vpop.f32.mrb[0].mxu0
        %v1281 = vadd.f32 %v1178, %v1280
        %1282 = vmatprep.mubr.f32.mxu0 0.0
        %1283 = vmatmul.mubr.f32.gmra.mrb[0].mxu0 %v1192
        %v1284 = vpop.f32.mrb[0].mxu0
        %v1285 = vadd.f32 %v1182, %v1284
        %v1286 = vpop.f32.mrb[0].mxu0
        %v1287 = vadd.f32 %v1184, %v1286
        %1288 = vdwg.mxu0
        %vm1289 = vcmask 1045504
        %v1290 = vrot.slane %v1065, 2
        %v1291 = vrot.slane %v1066, 2
        %v1292 = vsel %vm1289, %v1290, %v1291
        %v1293 = vrot.slane %v1067, 2
        %v1294 = vsel %vm1289, %v1291, %v1293
        %v1295 = vrot.slane %v1068, 2
        %v1296 = vsel %vm1289, %v1293, %v1295
        %v1297 = vsel %vm1081, %v1292, 0
        %v1299 = vsel %vm1081, %v1294, 0
        %v1301 = vsel %vm1081, %v1296, 0
        %v1303 = vsel %vm1081, %v1295, 0
        %v1306 = vsel %vm1090, %v911, 0
        %v1309 = vsel %vm1090, %v912, 0
        %1311 = vmatprep.subr.mxu0 %v906
        %1312 = vmatpush1.msra.mxu0 %v905
        %1313 = vmatprep.subr.mxu0 %v908
        %1314 = vmatpush1.msra.mxu0 %v907
        %1315 = vmatprep.subr.mxu0 %v910
        %1316 = vmatpush1.msra.mxu0 %v909
        %1317 = vmatprep.subr.mxu0 %v1309
        %1318 = vmatpush1.msra.mxu0 %v1306
        %1319 = vmatprep.subr.mxu0 0.0
        %1320 = vmatpush1.msra.mxu0 0.0
        %1321 = vmatprep.subr.mxu0 0.0
        %1322 = vmatpush1.msra.mxu0 0.0
        %1323 = vmatprep.subr.mxu0 0.0
        %1324 = vmatpush1.msra.mxu0 0.0
        %1325 = vmatprep.subr.mxu0 0.0
        %1326 = vmatpush1.msra.mxu0 0.0
        %1327 = vmatprep.subr.mxu0 0.0
        %1328 = vmatpush1.msra.mxu0 0.0
        %1329 = vmatprep.subr.mxu0 0.0
        %1330 = vmatpush1.msra.mxu0 0.0
        %1331 = vmatprep.subr.mxu0 0.0
        %1332 = vmatpush1.msra.mxu0 0.0
        %1333 = vmatprep.subr.mxu0 0.0
        %1334 = vmatpush1.msra.mxu0 0.0
        %1335 = vmatprep.subr.mxu0 0.0
        %1336 = vmatpush1.msra.mxu0 0.0
        %1337 = vmatprep.subr.mxu0 0.0
        %1338 = vmatpush1.msra.mxu0 0.0
        %1339 = vmatprep.subr.mxu0 0.0
        %1340 = vmatpush1.msra.mxu0 0.0
        %1341 = vmatprep.subr.mxu0 0.0
        %1342 = vmatpush1.msra.mxu0 0.0
        %1343 = vmatprep.subr.mxu0 0.0
        %1344 = vmatpush1.msra.mxu0 0.0
        %1345 = vmatprep.subr.mxu0 0.0
        %1346 = vmatpush1.msra.mxu0 0.0
        %1347 = vmatprep.subr.mxu0 0.0
        %1348 = vmatpush1.msra.mxu0 0.0
        %1349 = vmatprep.subr.mxu0 0.0
        %1350 = vmatpush1.msra.mxu0 0.0
        %1351 = vmatprep.subr.mxu0 0.0
        %1352 = vmatpush1.msra.mxu0 0.0
        %1353 = vmatprep.subr.mxu0 0.0
        %1354 = vmatpush1.msra.mxu0 0.0
        %1355 = vmatprep.subr.mxu0 0.0
        %1356 = vmatpush1.msra.mxu0 0.0
        %1357 = vmatprep.subr.mxu0 0.0
        %1358 = vmatpush1.msra.mxu0 0.0
        %1359 = vmatprep.subr.mxu0 0.0
        %1360 = vmatpush1.msra.mxu0 0.0
        %1361 = vmatprep.subr.mxu0 0.0
        %1362 = vmatpush1.msra.mxu0 0.0
        %1363 = vmatprep.subr.mxu0 0.0
        %1364 = vmatpush1.msra.mxu0 0.0
        %1365 = vmatprep.subr.mxu0 0.0
        %1366 = vmatpush1.msra.mxu0 0.0
        %1367 = vmatprep.subr.mxu0 0.0
        %1368 = vmatpush1.msra.mxu0 0.0
        %1369 = vmatprep.subr.mxu0 0.0
        %1370 = vmatpush1.msra.mxu0 0.0
        %1371 = vmatprep.subr.mxu0 0.0
        %1372 = vmatpush1.msra.mxu0 0.0
        %1373 = vmatprep.subr.mxu0 0.0
        %1374 = vmatpush1.msra.mxu0 0.0
        %1375 = vmatprep.mubr.f32.mxu0 0.0
        %1376 = vmatmul.mubr.f32.gmra.mrb[0].mxu0 %v1297
        %v1377 = vpop.f32.mrb[0].mxu0
        %v1378 = vadd.f32 0.0, %v1377
        %v1379 = vpop.f32.mrb[0].mxu0
        %v1380 = vadd.f32 0.0, %v1379
        %1381 = vmatprep.mubr.f32.mxu0 0.0
        %1382 = vmatmul.mubr.f32.gmra.mrb[0].mxu0 %v1299
        %v1383 = vpop.f32.mrb[0].mxu0
        %v1384 = vadd.f32 0.0, %v1383
        %v1385 = vpop.f32.mrb[0].mxu0
        %v1386 = vadd.f32 0.0, %v1385
        %1387 = vmatprep.mubr.f32.mxu0 0.0
        %1388 = vmatmul.mubr.f32.gmra.mrb[0].mxu0 %v1301
        %v1389 = vpop.f32.mrb[0].mxu0
        %v1390 = vadd.f32 0.0, %v1389
        %v1391 = vpop.f32.mrb[0].mxu0
        %v1392 = vadd.f32 0.0, %v1391
        %1393 = vmatprep.mubr.f32.mxu0 0.0
        %1394 = vmatmul.mubr.f32.gmra.mrb[0].mxu0 %v1303
        %v1395 = vpop.f32.mrb[0].mxu0
        %v1396 = vadd.f32 0.0, %v1395
        %v1397 = vpop.f32.mrb[0].mxu0
        %v1398 = vadd.f32 0.0, %v1397
        %1399 = vdwg.mxu0
        %v1400 = vadd.f32 %v1267, %v1378
        %v1401 = vadd.f32 %v1269, %v1380
        %v1402 = vadd.f32 %v1273, %v1384
        %v1403 = vadd.f32 %v1275, %v1386
        %v1404 = vadd.f32 %v1279, %v1390
        %v1405 = vadd.f32 %v1281, %v1392
        %v1406 = vadd.f32 %v1285, %v1396
        %v1407 = vadd.f32 %v1287, %v1398
        %v1409 = vlaneseq
        %v1410 = vshrl.u32 %v1409, 7
        %v1411 = vsub.s32 0, %v1410
        %v1412 = vrot.slane %v913, %v1411
        %v1413 = vlaneseq
        %v1414 = vshrl.u32 %v1413, 7
        %v1415 = vsub.s32 1, %v1414
        %v1416 = vrot.slane %v913, %v1415
        %v1419 = vadd.f32 %v1400, %v1412
        %v1420 = vadd.f32 %v1401, %v1416
        %v1421 = vadd.f32 %v1402, %v1412
        %v1422 = vadd.f32 %v1403, %v1416
        %v1423 = vadd.f32 %v1404, %v1412
        %v1424 = vadd.f32 %v1405, %v1416
        %v1425 = vadd.f32 %v1406, %v1412
        %v1426 = vadd.f32 %v1407, %v1416
        %v1427 = vmax.f32 %v1419, 0.0
        %v1428 = vmax.f32 %v1420, 0.0
        %v1429 = vmax.f32 %v1421, 0.0
        %v1430 = vmax.f32 %v1422, 0.0
        %v1431 = vmax.f32 %v1423, 0.0
        %v1432 = vmax.f32 %v1424, 0.0
        %v1433 = vmax.f32 %v1425, 0.0
        %v1434 = vmax.f32 %v1426, 0.0
        %vm1435 = vcmask 211968
        %v1437 = vsel %vm1435, %v914, 0
        %v1440 = vsel %vm1435, %v915, 0
        %vm1442 = vcmask 1041408
        %v1444 = vsel %vm1442, %v1433, 0
        %v1447 = vsel %vm1442, %v1434, 0
        %1449 = vmatprep.subr.mxu0 %v1428
        %1450 = vmatpush1.msra.mxu0 %v1427
        %1451 = vmatprep.subr.mxu0 %v1430
        %1452 = vmatpush1.msra.mxu0 %v1429
        %1453 = vmatprep.subr.mxu0 %v1432
        %1454 = vmatpush1.msra.mxu0 %v1431
        %1455 = vmatprep.subr.mxu0 %v1447
        %1456 = vmatpush1.msra.mxu0 %v1444
        %1457 = vmatprep.subr.mxu0 0.0
        %1458 = vmatpush1.msra.mxu0 0.0
        %1459 = vmatprep.subr.mxu0 0.0
        %1460 = vmatpush1.msra.mxu0 0.0
        %1461 = vmatprep.subr.mxu0 0.0
        %1462 = vmatpush1.msra.mxu0 0.0
        %1463 = vmatprep.subr.mxu0 0.0
        %1464 = vmatpush1.msra.mxu0 0.0
        %1465 = vmatprep.subr.mxu0 0.0
        %1466 = vmatpush1.msra.mxu0 0.0
        %1467 = vmatprep.subr.mxu0 0.0
        %1468 = vmatpush1.msra.mxu0 0.0
        %1469 = vmatprep.subr.mxu0 0.0
        %1470 = vmatpush1.msra.mxu0 0.0
        %1471 = vmatprep.subr.mxu0 0.0
        %1472 = vmatpush1.msra.mxu0 0.0
        %1473 = vmatprep.subr.mxu0 0.0
        %1474 = vmatpush1.msra.mxu0 0.0
        %1475 = vmatprep.subr.mxu0 0.0
        %1476 = vmatpush1.msra.mxu0 0.0
        %1477 = vmatprep.subr.mxu0 0.0
        %1478 = vmatpush1.msra.mxu0 0.0
        %1479 = vmatprep.subr.mxu0 0.0
        %1480 = vmatpush1.msra.mxu0 0.0
        %1481 = vmatprep.subr.mxu0 0.0
        %1482 = vmatpush1.msra.mxu0 0.0
        %1483 = vmatprep.subr.mxu0 0.0
        %1484 = vmatpush1.msra.mxu0 0.0
        %1485 = vmatprep.subr.mxu0 0.0
        %1486 = vmatpush1.msra.mxu0 0.0
        %1487 = vmatprep.subr.mxu0 0.0
        %1488 = vmatpush1.msra.mxu0 0.0
        %1489 = vmatprep.subr.mxu0 0.0
        %1490 = vmatpush1.msra.mxu0 0.0
        %1491 = vmatprep.subr.mxu0 0.0
        %1492 = vmatpush1.msra.mxu0 0.0
        %1493 = vmatprep.subr.mxu0 0.0
        %1494 = vmatpush1.msra.mxu0 0.0
        %1495 = vmatprep.subr.mxu0 0.0
        %1496 = vmatpush1.msra.mxu0 0.0
        %1497 = vmatprep.subr.mxu0 0.0
        %1498 = vmatpush1.msra.mxu0 0.0
        %1499 = vmatprep.subr.mxu0 0.0
        %1500 = vmatpush1.msra.mxu0 0.0
        %1501 = vmatprep.subr.mxu0 0.0
        %1502 = vmatpush1.msra.mxu0 0.0
        %1503 = vmatprep.subr.mxu0 0.0
        %1504 = vmatpush1.msra.mxu0 0.0
        %1505 = vmatprep.subr.mxu0 0.0
        %1506 = vmatpush1.msra.mxu0 0.0
        %1507 = vmatprep.subr.mxu0 0.0
        %1508 = vmatpush1.msra.mxu0 0.0
        %1509 = vmatprep.subr.mxu0 0.0
        %1510 = vmatpush1.msra.mxu0 0.0
        %1511 = vmatprep.subr.mxu0 0.0
        %1512 = vmatpush1.msra.mxu0 0.0
        %1513 = vmatprep.mubr.f32.mxu0 0.0
        %1514 = vmatmul.mubr.f32.gmra.mrb[0].mxu0 %v1437
        %v1515 = vpop.f32.mrb[0].mxu0
        %v1516 = vadd.f32 0.0, %v1515
        %v1517 = vpop.f32.mrb[0].mxu0
        %v1518 = vadd.f32 0.0, %v1517
        %1519 = vmatprep.mubr.f32.mxu0 0.0
        %1520 = vmatmul.mubr.f32.gmra.mrb[0].mxu0 %v1440
        %v1521 = vpop.f32.mrb[0].mxu0
        %v1522 = vadd.f32 0.0, %v1521
        %v1523 = vpop.f32.mrb[0].mxu0
        %v1524 = vadd.f32 0.0, %v1523
        %1525 = vdwg.mxu0
        %v1527 = vsel %vm1435, %v916, 0
        %v1530 = vsel %vm1435, %v917, 0
        %1532 = vmatprep.subr.mxu0 %v1428
        %1533 = vmatpush1.msra.mxu0 %v1427
        %1534 = vmatprep.subr.mxu0 %v1430
        %1535 = vmatpush1.msra.mxu0 %v1429
        %1536 = vmatprep.subr.mxu0 %v1432
        %1537 = vmatpush1.msra.mxu0 %v1431
        %1538 = vmatprep.subr.mxu0 %v1447
        %1539 = vmatpush1.msra.mxu0 %v1444
        %1540 = vmatprep.subr.mxu0 0.0
        %1541 = vmatpush1.msra.mxu0 0.0
        %1542 = vmatprep.subr.mxu0 0.0
        %1543 = vmatpush1.msra.mxu0 0.0
        %1544 = vmatprep.subr.mxu0 0.0
        %1545 = vmatpush1.msra.mxu0 0.0
        %1546 = vmatprep.subr.mxu0 0.0
        %1547 = vmatpush1.msra.mxu0 0.0
        %1548 = vmatprep.subr.mxu0 0.0
        %1549 = vmatpush1.msra.mxu0 0.0
        %1550 = vmatprep.subr.mxu0 0.0
        %1551 = vmatpush1.msra.mxu0 0.0
        %1552 = vmatprep.subr.mxu0 0.0
        %1553 = vmatpush1.msra.mxu0 0.0
        %1554 = vmatprep.subr.mxu0 0.0
        %1555 = vmatpush1.msra.mxu0 0.0
        %1556 = vmatprep.subr.mxu0 0.0
        %1557 = vmatpush1.msra.mxu0 0.0
        %1558 = vmatprep.subr.mxu0 0.0
        %1559 = vmatpush1.msra.mxu0 0.0
        %1560 = vmatprep.subr.mxu0 0.0
        %1561 = vmatpush1.msra.mxu0 0.0
        %1562 = vmatprep.subr.mxu0 0.0
        %1563 = vmatpush1.msra.mxu0 0.0
        %1564 = vmatprep.subr.mxu0 0.0
        %1565 = vmatpush1.msra.mxu0 0.0
        %1566 = vmatprep.subr.mxu0 0.0
        %1567 = vmatpush1.msra.mxu0 0.0
        %1568 = vmatprep.subr.mxu0 0.0
        %1569 = vmatpush1.msra.mxu0 0.0
        %1570 = vmatprep.subr.mxu0 0.0
        %1571 = vmatpush1.msra.mxu0 0.0
        %1572 = vmatprep.subr.mxu0 0.0
        %1573 = vmatpush1.msra.mxu0 0.0
        %1574 = vmatprep.subr.mxu0 0.0
        %1575 = vmatpush1.msra.mxu0 0.0
        %1576 = vmatprep.subr.mxu0 0.0
        %1577 = vmatpush1.msra.mxu0 0.0
        %1578 = vmatprep.subr.mxu0 0.0
        %1579 = vmatpush1.msra.mxu0 0.0
        %1580 = vmatprep.subr.mxu0 0.0
        %1581 = vmatpush1.msra.mxu0 0.0
        %1582 = vmatprep.subr.mxu0 0.0
        %1583 = vmatpush1.msra.mxu0 0.0
        %1584 = vmatprep.subr.mxu0 0.0
        %1585 = vmatpush1.msra.mxu0 0.0
        %1586 = vmatprep.subr.mxu0 0.0
        %1587 = vmatpush1.msra.mxu0 0.0
        %1588 = vmatprep.subr.mxu0 0.0
        %1589 = vmatpush1.msra.mxu0 0.0
        %1590 = vmatprep.subr.mxu0 0.0
        %1591 = vmatpush1.msra.mxu0 0.0
        %1592 = vmatprep.subr.mxu0 0.0
        %1593 = vmatpush1.msra.mxu0 0.0
        %1594 = vmatprep.subr.mxu0 0.0
        %1595 = vmatpush1.msra.mxu0 0.0
        %1596 = vmatprep.mubr.f32.mxu0 0.0
        %1597 = vmatmul.mubr.f32.gmra.mrb[0].mxu0 %v1527
        %v1598 = vpop.f32.mrb[0].mxu0
        %v1599 = vadd.f32 0.0, %v1598
        %v1600 = vpop.f32.mrb[0].mxu0
        %v1601 = vadd.f32 0.0, %v1600
        %1602 = vmatprep.mubr.f32.mxu0 0.0
        %1603 = vmatmul.mubr.f32.gmra.mrb[0].mxu0 %v1530
        %v1604 = vpop.f32.mrb[0].mxu0
        %v1605 = vadd.f32 0.0, %v1604
        %v1606 = vpop.f32.mrb[0].mxu0
        %v1607 = vadd.f32 0.0, %v1606
        %1608 = vdwg.mxu0
        %v1609 = vmax.f32 %v1516, %v1599
        %v1610 = vmax.f32 %v1518, %v1601
        %v1611 = vmax.f32 %v1522, %v1605
        %v1612 = vmax.f32 %v1524, %v1607
        %v1614 = vsel %vm1081, %v1610, 0
        %v1617 = vsel %vm1081, %v1612, 0
        %v1620 = vsel %vm1090, %v937, 0
        %1622 = vmatprep.subr.mxu0 0.0
        %1623 = vmatpush1.msra.mxu0 %v918
        %1624 = vmatprep.subr.mxu0 0.0
        %1625 = vmatpush1.msra.mxu0 %v919
        %1626 = vmatprep.subr.mxu0 0.0
        %1627 = vmatpush1.msra.mxu0 %v920
        %1628 = vmatprep.subr.mxu0 0.0
        %1629 = vmatpush1.msra.mxu0 %v921
        %1630 = vmatprep.subr.mxu0 0.0
        %1631 = vmatpush1.msra.mxu0 %v922
        %1632 = vmatprep.subr.mxu0 0.0
        %1633 = vmatpush1.msra.mxu0 %v923
        %1634 = vmatprep.subr.mxu0 0.0
        %1635 = vmatpush1.msra.mxu0 %v924
        %1636 = vmatprep.subr.mxu0 0.0
        %1637 = vmatpush1.msra.mxu0 %v925
        %1638 = vmatprep.subr.mxu0 0.0
        %1639 = vmatpush1.msra.mxu0 %v926
        %1640 = vmatprep.subr.mxu0 0.0
        %1641 = vmatpush1.msra.mxu0 %v927
        %1642 = vmatprep.subr.mxu0 0.0
        %1643 = vmatpush1.msra.mxu0 %v928
        %1644 = vmatprep.subr.mxu0 0.0
        %1645 = vmatpush1.msra.mxu0 %v929
        %1646 = vmatprep.subr.mxu0 0.0
        %1647 = vmatpush1.msra.mxu0 %v930
        %1648 = vmatprep.subr.mxu0 0.0
        %1649 = vmatpush1.msra.mxu0 %v931
        %1650 = vmatprep.subr.mxu0 0.0
        %1651 = vmatpush1.msra.mxu0 %v932
        %1652 = vmatprep.subr.mxu0 0.0
        %1653 = vmatpush1.msra.mxu0 %v933
        %1654 = vmatprep.subr.mxu0 0.0
        %1655 = vmatpush1.msra.mxu0 %v934
        %1656 = vmatprep.subr.mxu0 0.0
        %1657 = vmatpush1.msra.mxu0 %v935
        %1658 = vmatprep.subr.mxu0 0.0
        %1659 = vmatpush1.msra.mxu0 %v936
        %1660 = vmatprep.subr.mxu0 0.0
        %1661 = vmatpush1.msra.mxu0 %v1620
        %1662 = vmatprep.subr.mxu0 0.0
        %1663 = vmatpush1.msra.mxu0 0.0
        %1664 = vmatprep.subr.mxu0 0.0
        %1665 = vmatpush1.msra.mxu0 0.0
        %1666 = vmatprep.subr.mxu0 0.0
        %1667 = vmatpush1.msra.mxu0 0.0
        %1668 = vmatprep.subr.mxu0 0.0
        %1669 = vmatpush1.msra.mxu0 0.0
        %1670 = vmatprep.subr.mxu0 0.0
        %1671 = vmatpush1.msra.mxu0 0.0
        %1672 = vmatprep.subr.mxu0 0.0
        %1673 = vmatpush1.msra.mxu0 0.0
        %1674 = vmatprep.subr.mxu0 0.0
        %1675 = vmatpush1.msra.mxu0 0.0
        %1676 = vmatprep.subr.mxu0 0.0
        %1677 = vmatpush1.msra.mxu0 0.0
        %1678 = vmatprep.subr.mxu0 0.0
        %1679 = vmatpush1.msra.mxu0 0.0
        %1680 = vmatprep.subr.mxu0 0.0
        %1681 = vmatpush1.msra.mxu0 0.0
        %1682 = vmatprep.subr.mxu0 0.0
        %1683 = vmatpush1.msra.mxu0 0.0
        %1684 = vmatprep.subr.mxu0 0.0
        %1685 = vmatpush1.msra.mxu0 0.0
        %1686 = vmatprep.mubr.f32.mxu0 %v1614
        %1687 = vmatmul.mubr.f32.gmra.mrb[0].mxu0 %v1609
        %v1688 = vpop.f32.mrb[0].mxu0
        %v1689 = vadd.f32 0.0, %v1688
        %v1690 = vpop.f32.mrb[0].mxu0
        %1691 = vmatprep.mubr.f32.mxu0 %v1617
        %1692 = vmatmul.mubr.f32.gmra.mrb[0].mxu0 %v1611
        %v1693 = vpop.f32.mrb[0].mxu0
        %v1694 = vadd.f32 0.0, %v1693
        %v1695 = vpop.f32.mrb[0].mxu0
        %1696 = vdwg.mxu0
        %v1698 = vsel %vm1090, %v957, 0
        %1700 = vmatprep.subr.mxu0 0.0
        %1701 = vmatpush1.msra.mxu0 %v938
        %1702 = vmatprep.subr.mxu0 0.0
        %1703 = vmatpush1.msra.mxu0 %v939
        %1704 = vmatprep.subr.mxu0 0.0
        %1705 = vmatpush1.msra.mxu0 %v940
        %1706 = vmatprep.subr.mxu0 0.0
        %1707 = vmatpush1.msra.mxu0 %v941
        %1708 = vmatprep.subr.mxu0 0.0
        %1709 = vmatpush1.msra.mxu0 %v942
        %1710 = vmatprep.subr.mxu0 0.0
        %1711 = vmatpush1.msra.mxu0 %v943
        %1712 = vmatprep.subr.mxu0 0.0
        %1713 = vmatpush1.msra.mxu0 %v944
        %1714 = vmatprep.subr.mxu0 0.0
        %1715 = vmatpush1.msra.mxu0 %v945
        %1716 = vmatprep.subr.mxu0 0.0
        %1717 = vmatpush1.msra.mxu0 %v946
        %1718 = vmatprep.subr.mxu0 0.0
        %1719 = vmatpush1.msra.mxu0 %v947
        %1720 = vmatprep.subr.mxu0 0.0
        %1721 = vmatpush1.msra.mxu0 %v948
        %1722 = vmatprep.subr.mxu0 0.0
        %1723 = vmatpush1.msra.mxu0 %v949
        %1724 = vmatprep.subr.mxu0 0.0
        %1725 = vmatpush1.msra.mxu0 %v950
        %1726 = vmatprep.subr.mxu0 0.0
        %1727 = vmatpush1.msra.mxu0 %v951
        %1728 = vmatprep.subr.mxu0 0.0
        %1729 = vmatpush1.msra.mxu0 %v952
        %1730 = vmatprep.subr.mxu0 0.0
        %1731 = vmatpush1.msra.mxu0 %v953
        %1732 = vmatprep.subr.mxu0 0.0
        %1733 = vmatpush1.msra.mxu0 %v954
        %1734 = vmatprep.subr.mxu0 0.0
        %1735 = vmatpush1.msra.mxu0 %v955
        %1736 = vmatprep.subr.mxu0 0.0
        %1737 = vmatpush1.msra.mxu0 %v956
        %1738 = vmatprep.subr.mxu0 0.0
        %1739 = vmatpush1.msra.mxu0 %v1698
        %1740 = vmatprep.subr.mxu0 0.0
        %1741 = vmatpush1.msra.mxu0 0.0
        %1742 = vmatprep.subr.mxu0 0.0
        %1743 = vmatpush1.msra.mxu0 0.0
        %1744 = vmatprep.subr.mxu0 0.0
        %1745 = vmatpush1.msra.mxu0 0.0
        %1746 = vmatprep.subr.mxu0 0.0
        %1747 = vmatpush1.msra.mxu0 0.0
        %1748 = vmatprep.subr.mxu0 0.0
        %1749 = vmatpush1.msra.mxu0 0.0
        %1750 = vmatprep.subr.mxu0 0.0
        %1751 = vmatpush1.msra.mxu0 0.0
        %1752 = vmatprep.subr.mxu0 0.0
        %1753 = vmatpush1.msra.mxu0 0.0
        %1754 = vmatprep.subr.mxu0 0.0
        %1755 = vmatpush1.msra.mxu0 0.0
        %1756 = vmatprep.subr.mxu0 0.0
        %1757 = vmatpush1.msra.mxu0 0.0
        %1758 = vmatprep.subr.mxu0 0.0
        %1759 = vmatpush1.msra.mxu0 0.0
        %1760 = vmatprep.subr.mxu0 0.0
        %1761 = vmatpush1.msra.mxu0 0.0
        %1762 = vmatprep.subr.mxu0 0.0
        %1763 = vmatpush1.msra.mxu0 0.0
        %1764 = vmatprep.mubr.f32.mxu0 %v1614
        %1765 = vmatmul.mubr.f32.gmra.mrb[0].mxu0 %v1609
        %v1766 = vpop.f32.mrb[0].mxu0
        %v1767 = vadd.f32 0.0, %v1766
        %v1768 = vpop.f32.mrb[0].mxu0
        %1769 = vmatprep.mubr.f32.mxu0 %v1617
        %1770 = vmatmul.mubr.f32.gmra.mrb[0].mxu0 %v1611
        %v1771 = vpop.f32.mrb[0].mxu0
        %v1772 = vadd.f32 0.0, %v1771
        %v1773 = vpop.f32.mrb[0].mxu0
        %1774 = vdwg.mxu0
        %v1775 = vmax.f32 %v1689, %v1767
        %v1776 = vmax.f32 %v1694, %v1772
        %v1779 = vrot.slane %v1775, 1
        %v1780 = vrot.slane %v1776, 1
        %v1781 = vsel %vm1073, %v1779, %v1780
        %vm1782 = vcmask 637952
        %v1783 = vsel %vm1782, %v1781, 0
        %v1785 = vsel %vm1782, %v1780, 0
        %v1788 = vsel %vm1289, %v996, 0
        %v1791 = vsel %vm1289, %v997, 0
        %1793 = vmatprep.subr.mxu0 %v979
        %1794 = vmatpush1.msra.mxu0 %v978
        %1795 = vmatprep.subr.mxu0 %v981
        %1796 = vmatpush1.msra.mxu0 %v980
        %1797 = vmatprep.subr.mxu0 %v983
        %1798 = vmatpush1.msra.mxu0 %v982
        %1799 = vmatprep.subr.mxu0 %v985
        %1800 = vmatpush1.msra.mxu0 %v984
        %1801 = vmatprep.subr.mxu0 %v987
        %1802 = vmatpush1.msra.mxu0 %v986
        %1803 = vmatprep.subr.mxu0 %v989
        %1804 = vmatpush1.msra.mxu0 %v988
        %1805 = vmatprep.subr.mxu0 %v991
        %1806 = vmatpush1.msra.mxu0 %v990
        %1807 = vmatprep.subr.mxu0 %v993
        %1808 = vmatpush1.msra.mxu0 %v992
        %1809 = vmatprep.subr.mxu0 %v995
        %1810 = vmatpush1.msra.mxu0 %v994
        %1811 = vmatprep.subr.mxu0 %v1791
        %1812 = vmatpush1.msra.mxu0 %v1788
        %1813 = vmatprep.subr.mxu0 0.0
        %1814 = vmatpush1.msra.mxu0 0.0
        %1815 = vmatprep.subr.mxu0 0.0
        %1816 = vmatpush1.msra.mxu0 0.0
        %1817 = vmatprep.subr.mxu0 0.0
        %1818 = vmatpush1.msra.mxu0 0.0
        %1819 = vmatprep.subr.mxu0 0.0
        %1820 = vmatpush1.msra.mxu0 0.0
        %1821 = vmatprep.subr.mxu0 0.0
        %1822 = vmatpush1.msra.mxu0 0.0
        %1823 = vmatprep.subr.mxu0 0.0
        %1824 = vmatpush1.msra.mxu0 0.0
        %1825 = vmatprep.subr.mxu0 0.0
        %1826 = vmatpush1.msra.mxu0 0.0
        %1827 = vmatprep.subr.mxu0 0.0
        %1828 = vmatpush1.msra.mxu0 0.0
        %1829 = vmatprep.subr.mxu0 0.0
        %1830 = vmatpush1.msra.mxu0 0.0
        %1831 = vmatprep.subr.mxu0 0.0
        %1832 = vmatpush1.msra.mxu0 0.0
        %1833 = vmatprep.subr.mxu0 0.0
        %1834 = vmatpush1.msra.mxu0 0.0
        %1835 = vmatprep.subr.mxu0 0.0
        %1836 = vmatpush1.msra.mxu0 0.0
        %1837 = vmatprep.subr.mxu0 0.0
        %1838 = vmatpush1.msra.mxu0 0.0
        %1839 = vmatprep.subr.mxu0 0.0
        %1840 = vmatpush1.msra.mxu0 0.0
        %1841 = vmatprep.subr.mxu0 0.0
        %1842 = vmatpush1.msra.mxu0 0.0
        %1843 = vmatprep.subr.mxu0 0.0
        %1844 = vmatpush1.msra.mxu0 0.0
        %1845 = vmatprep.subr.mxu0 0.0
        %1846 = vmatpush1.msra.mxu0 0.0
        %1847 = vmatprep.subr.mxu0 0.0
        %1848 = vmatpush1.msra.mxu0 0.0
        %1849 = vmatprep.subr.mxu0 0.0
        %1850 = vmatpush1.msra.mxu0 0.0
        %1851 = vmatprep.subr.mxu0 0.0
        %1852 = vmatpush1.msra.mxu0 0.0
        %1853 = vmatprep.subr.mxu0 0.0
        %1854 = vmatpush1.msra.mxu0 0.0
        %1855 = vmatprep.subr.mxu0 0.0
        %1856 = vmatpush1.msra.mxu0 0.0
        %1857 = vmatprep.mubr.f32.mxu0 0.0
        %1858 = vmatmul.mubr.f32.gmra.mrb[0].mxu0 %v1783
        %v1859 = vpop.f32.mrb[0].mxu0
        %v1860 = vadd.f32 0.0, %v1859
        %v1861 = vpop.f32.mrb[0].mxu0
        %v1862 = vadd.f32 0.0, %v1861
        %1863 = vmatprep.mubr.f32.mxu0 0.0
        %1864 = vmatmul.mubr.f32.gmra.mrb[0].mxu0 %v1785
        %v1865 = vpop.f32.mrb[0].mxu0
        %v1866 = vadd.f32 0.0, %v1865
        %v1867 = vpop.f32.mrb[0].mxu0
        %v1868 = vadd.f32 0.0, %v1867
        %1869 = vdwg.mxu0
        %v1870 = vsel %vm1782, %v1775, 0
        %v1872 = vsel %vm1782, %v1776, 0
        %v1875 = vsel %vm1289, %v976, 0
        %v1878 = vsel %vm1289, %v977, 0
        %1880 = vmatprep.subr.mxu0 %v959
        %1881 = vmatpush1.msra.mxu0 %v958
        %1882 = vmatprep.subr.mxu0 %v961
        %1883 = vmatpush1.msra.mxu0 %v960
        %1884 = vmatprep.subr.mxu0 %v963
        %1885 = vmatpush1.msra.mxu0 %v962
        %1886 = vmatprep.subr.mxu0 %v965
        %1887 = vmatpush1.msra.mxu0 %v964
        %1888 = vmatprep.subr.mxu0 %v967
        %1889 = vmatpush1.msra.mxu0 %v966
        %1890 = vmatprep.subr.mxu0 %v969
        %1891 = vmatpush1.msra.mxu0 %v968
        %1892 = vmatprep.subr.mxu0 %v971
        %1893 = vmatpush1.msra.mxu0 %v970
        %1894 = vmatprep.subr.mxu0 %v973
        %1895 = vmatpush1.msra.mxu0 %v972
        %1896 = vmatprep.subr.mxu0 %v975
        %1897 = vmatpush1.msra.mxu0 %v974
        %1898 = vmatprep.subr.mxu0 %v1878
        %1899 = vmatpush1.msra.mxu0 %v1875
        %1900 = vmatprep.subr.mxu0 0.0
        %1901 = vmatpush1.msra.mxu0 0.0
        %1902 = vmatprep.subr.mxu0 0.0
        %1903 = vmatpush1.msra.mxu0 0.0
        %1904 = vmatprep.subr.mxu0 0.0
        %1905 = vmatpush1.msra.mxu0 0.0
        %1906 = vmatprep.subr.mxu0 0.0
        %1907 = vmatpush1.msra.mxu0 0.0
        %1908 = vmatprep.subr.mxu0 0.0
        %1909 = vmatpush1.msra.mxu0 0.0
        %1910 = vmatprep.subr.mxu0 0.0
        %1911 = vmatpush1.msra.mxu0 0.0
        %1912 = vmatprep.subr.mxu0 0.0
        %1913 = vmatpush1.msra.mxu0 0.0
        %1914 = vmatprep.subr.mxu0 0.0
        %1915 = vmatpush1.msra.mxu0 0.0
        %1916 = vmatprep.subr.mxu0 0.0
        %1917 = vmatpush1.msra.mxu0 0.0
        %1918 = vmatprep.subr.mxu0 0.0
        %1919 = vmatpush1.msra.mxu0 0.0
        %1920 = vmatprep.subr.mxu0 0.0
        %1921 = vmatpush1.msra.mxu0 0.0
        %1922 = vmatprep.subr.mxu0 0.0
        %1923 = vmatpush1.msra.mxu0 0.0
        %1924 = vmatprep.subr.mxu0 0.0
        %1925 = vmatpush1.msra.mxu0 0.0
        %1926 = vmatprep.subr.mxu0 0.0
        %1927 = vmatpush1.msra.mxu0 0.0
        %1928 = vmatprep.subr.mxu0 0.0
        %1929 = vmatpush1.msra.mxu0 0.0
        %1930 = vmatprep.subr.mxu0 0.0
        %1931 = vmatpush1.msra.mxu0 0.0
        %1932 = vmatprep.subr.mxu0 0.0
        %1933 = vmatpush1.msra.mxu0 0.0
        %1934 = vmatprep.subr.mxu0 0.0
        %1935 = vmatpush1.msra.mxu0 0.0
        %1936 = vmatprep.subr.mxu0 0.0
        %1937 = vmatpush1.msra.mxu0 0.0
        %1938 = vmatprep.subr.mxu0 0.0
        %1939 = vmatpush1.msra.mxu0 0.0
        %1940 = vmatprep.subr.mxu0 0.0
        %1941 = vmatpush1.msra.mxu0 0.0
        %1942 = vmatprep.subr.mxu0 0.0
        %1943 = vmatpush1.msra.mxu0 0.0
        %1944 = vmatprep.mubr.f32.mxu0 0.0
        %1945 = vmatmul.mubr.f32.gmra.mrb[0].mxu0 %v1870
        %v1946 = vpop.f32.mrb[0].mxu0
        %v1947 = vadd.f32 %v1860, %v1946
        %v1948 = vpop.f32.mrb[0].mxu0
        %v1949 = vadd.f32 %v1862, %v1948
        %1950 = vmatprep.mubr.f32.mxu0 0.0
        %1951 = vmatmul.mubr.f32.gmra.mrb[0].mxu0 %v1872
        %v1952 = vpop.f32.mrb[0].mxu0
        %v1953 = vadd.f32 %v1866, %v1952
        %v1954 = vpop.f32.mrb[0].mxu0
        %v1955 = vadd.f32 %v1868, %v1954
        %1956 = vdwg.mxu0
        %v1957 = vrot.slane %v1775, 2
        %v1958 = vrot.slane %v1776, 2
        %v1959 = vsel %vm1289, %v1957, %v1958
        %v1960 = vsel %vm1782, %v1959, 0
        %v1962 = vsel %vm1782, %v1958, 0
        %v1965 = vsel %vm1289, %v1016, 0
        %v1968 = vsel %vm1289, %v1017, 0
        %1970 = vmatprep.subr.mxu0 %v999
        %1971 = vmatpush1.msra.mxu0 %v998
        %1972 = vmatprep.subr.mxu0 %v1001
        %1973 = vmatpush1.msra.mxu0 %v1000
        %1974 = vmatprep.subr.mxu0 %v1003
        %1975 = vmatpush1.msra.mxu0 %v1002
        %1976 = vmatprep.subr.mxu0 %v1005
        %1977 = vmatpush1.msra.mxu0 %v1004
        %1978 = vmatprep.subr.mxu0 %v1007
        %1979 = vmatpush1.msra.mxu0 %v1006
        %1980 = vmatprep.subr.mxu0 %v1009
        %1981 = vmatpush1.msra.mxu0 %v1008
        %1982 = vmatprep.subr.mxu0 %v1011
        %1983 = vmatpush1.msra.mxu0 %v1010
        %1984 = vmatprep.subr.mxu0 %v1013
        %1985 = vmatpush1.msra.mxu0 %v1012
        %1986 = vmatprep.subr.mxu0 %v1015
        %1987 = vmatpush1.msra.mxu0 %v1014
        %1988 = vmatprep.subr.mxu0 %v1968
        %1989 = vmatpush1.msra.mxu0 %v1965
        %1990 = vmatprep.subr.mxu0 0.0
        %1991 = vmatpush1.msra.mxu0 0.0
        %1992 = vmatprep.subr.mxu0 0.0
        %1993 = vmatpush1.msra.mxu0 0.0
        %1994 = vmatprep.subr.mxu0 0.0
        %1995 = vmatpush1.msra.mxu0 0.0
        %1996 = vmatprep.subr.mxu0 0.0
        %1997 = vmatpush1.msra.mxu0 0.0
        %1998 = vmatprep.subr.mxu0 0.0
        %1999 = vmatpush1.msra.mxu0 0.0
        %2000 = vmatprep.subr.mxu0 0.0
        %2001 = vmatpush1.msra.mxu0 0.0
        %2002 = vmatprep.subr.mxu0 0.0
        %2003 = vmatpush1.msra.mxu0 0.0
        %2004 = vmatprep.subr.mxu0 0.0
        %2005 = vmatpush1.msra.mxu0 0.0
        %2006 = vmatprep.subr.mxu0 0.0
        %2007 = vmatpush1.msra.mxu0 0.0
        %2008 = vmatprep.subr.mxu0 0.0
        %2009 = vmatpush1.msra.mxu0 0.0
        %2010 = vmatprep.subr.mxu0 0.0
        %2011 = vmatpush1.msra.mxu0 0.0
        %2012 = vmatprep.subr.mxu0 0.0
        %2013 = vmatpush1.msra.mxu0 0.0
        %2014 = vmatprep.subr.mxu0 0.0
        %2015 = vmatpush1.msra.mxu0 0.0
        %2016 = vmatprep.subr.mxu0 0.0
        %2017 = vmatpush1.msra.mxu0 0.0
        %2018 = vmatprep.subr.mxu0 0.0
        %2019 = vmatpush1.msra.mxu0 0.0
        %2020 = vmatprep.subr.mxu0 0.0
        %2021 = vmatpush1.msra.mxu0 0.0
        %2022 = vmatprep.subr.mxu0 0.0
        %2023 = vmatpush1.msra.mxu0 0.0
        %2024 = vmatprep.subr.mxu0 0.0
        %2025 = vmatpush1.msra.mxu0 0.0
        %2026 = vmatprep.subr.mxu0 0.0
        %2027 = vmatpush1.msra.mxu0 0.0
        %2028 = vmatprep.subr.mxu0 0.0
        %2029 = vmatpush1.msra.mxu0 0.0
        %2030 = vmatprep.subr.mxu0 0.0
        %2031 = vmatpush1.msra.mxu0 0.0
        %2032 = vmatprep.subr.mxu0 0.0
        %2033 = vmatpush1.msra.mxu0 0.0
        %2034 = vmatprep.mubr.f32.mxu0 0.0
        %2035 = vmatmul.mubr.f32.gmra.mrb[0].mxu0 %v1960
        %v2036 = vpop.f32.mrb[0].mxu0
        %v2037 = vadd.f32 0.0, %v2036
        %v2038 = vpop.f32.mrb[0].mxu0
        %v2039 = vadd.f32 0.0, %v2038
        %2040 = vmatprep.mubr.f32.mxu0 0.0
        %2041 = vmatmul.mubr.f32.gmra.mrb[0].mxu0 %v1962
        %v2042 = vpop.f32.mrb[0].mxu0
        %v2043 = vadd.f32 0.0, %v2042
        %v2044 = vpop.f32.mrb[0].mxu0
        %v2045 = vadd.f32 0.0, %v2044
        %2046 = vdwg.mxu0
        %v2047 = vadd.f32 %v1947, %v2037
        %v2048 = vadd.f32 %v1949, %v2039
        %v2049 = vadd.f32 %v1953, %v2043
        %v2050 = vadd.f32 %v1955, %v2045
        %v2052 = vlaneseq
        %v2053 = vshrl.u32 %v2052, 7
        %v2054 = vsub.s32 0, %v2053
        %v2055 = vrot.slane %v1018, %v2054
        %v2056 = vlaneseq
        %v2057 = vshrl.u32 %v2056, 7
        %v2058 = vsub.s32 1, %v2057
        %v2059 = vrot.slane %v1018, %v2058
        %v2062 = vadd.f32 %v2047, %v2055
        %v2063 = vadd.f32 %v2048, %v2059
        %v2064 = vadd.f32 %v2049, %v2055
        %v2065 = vadd.f32 %v2050, %v2059
        %v2066 = vmax.f32 %v2062, 0.0
        %v2067 = vmax.f32 %v2063, 0.0
        %v2068 = vmax.f32 %v2064, 0.0
        %v2069 = vmax.f32 %v2065, 0.0
        %vm2070 = vcmask 89088
        %v2072 = vsel %vm2070, %v1019, 0
        %vm2074 = vcmask 1042432
        %v2076 = vsel %vm2074, %v2068, 0
        %v2079 = vsel %vm2074, %v2069, 0
        %2081 = vmatprep.subr.mxu0 %v2067
        %2082 = vmatpush1.msra.mxu0 %v2066
        %2083 = vmatprep.subr.mxu0 %v2079
        %2084 = vmatpush1.msra.mxu0 %v2076
        %2085 = vmatprep.subr.mxu0 0.0
        %2086 = vmatpush1.msra.mxu0 0.0
        %2087 = vmatprep.subr.mxu0 0.0
        %2088 = vmatpush1.msra.mxu0 0.0
        %2089 = vmatprep.subr.mxu0 0.0
        %2090 = vmatpush1.msra.mxu0 0.0
        %2091 = vmatprep.subr.mxu0 0.0
        %2092 = vmatpush1.msra.mxu0 0.0
        %2093 = vmatprep.subr.mxu0 0.0
        %2094 = vmatpush1.msra.mxu0 0.0
        %2095 = vmatprep.subr.mxu0 0.0
        %2096 = vmatpush1.msra.mxu0 0.0
        %2097 = vmatprep.subr.mxu0 0.0
        %2098 = vmatpush1.msra.mxu0 0.0
        %2099 = vmatprep.subr.mxu0 0.0
        %2100 = vmatpush1.msra.mxu0 0.0
        %2101 = vmatprep.subr.mxu0 0.0
        %2102 = vmatpush1.msra.mxu0 0.0
        %2103 = vmatprep.subr.mxu0 0.0
        %2104 = vmatpush1.msra.mxu0 0.0
        %2105 = vmatprep.subr.mxu0 0.0
        %2106 = vmatpush1.msra.mxu0 0.0
        %2107 = vmatprep.subr.mxu0 0.0
        %2108 = vmatpush1.msra.mxu0 0.0
        %2109 = vmatprep.subr.mxu0 0.0
        %2110 = vmatpush1.msra.mxu0 0.0
        %2111 = vmatprep.subr.mxu0 0.0
        %2112 = vmatpush1.msra.mxu0 0.0
        %2113 = vmatprep.subr.mxu0 0.0
        %2114 = vmatpush1.msra.mxu0 0.0
        %2115 = vmatprep.subr.mxu0 0.0
        %2116 = vmatpush1.msra.mxu0 0.0
        %2117 = vmatprep.subr.mxu0 0.0
        %2118 = vmatpush1.msra.mxu0 0.0
        %2119 = vmatprep.subr.mxu0 0.0
        %2120 = vmatpush1.msra.mxu0 0.0
        %2121 = vmatprep.subr.mxu0 0.0
        %2122 = vmatpush1.msra.mxu0 0.0
        %2123 = vmatprep.subr.mxu0 0.0
        %2124 = vmatpush1.msra.mxu0 0.0
        %2125 = vmatprep.subr.mxu0 0.0
        %2126 = vmatpush1.msra.mxu0 0.0
        %2127 = vmatprep.subr.mxu0 0.0
        %2128 = vmatpush1.msra.mxu0 0.0
        %2129 = vmatprep.subr.mxu0 0.0
        %2130 = vmatpush1.msra.mxu0 0.0
        %2131 = vmatprep.subr.mxu0 0.0
        %2132 = vmatpush1.msra.mxu0 0.0
        %2133 = vmatprep.subr.mxu0 0.0
        %2134 = vmatpush1.msra.mxu0 0.0
        %2135 = vmatprep.subr.mxu0 0.0
        %2136 = vmatpush1.msra.mxu0 0.0
        %2137 = vmatprep.subr.mxu0 0.0
        %2138 = vmatpush1.msra.mxu0 0.0
        %2139 = vmatprep.subr.mxu0 0.0
        %2140 = vmatpush1.msra.mxu0 0.0
        %2141 = vmatprep.subr.mxu0 0.0
        %2142 = vmatpush1.msra.mxu0 0.0
        %2143 = vmatprep.subr.mxu0 0.0
        %2144 = vmatpush1.msra.mxu0 0.0
        %2145 = vmatprep.mubr.f32.mxu0 0.0
        %2146 = vmatmul.mubr.f32.gmra.mrb[0].mxu0 %v2072
        %v2147 = vpop.f32.mrb[0].mxu0
        %v2148 = vadd.f32 0.0, %v2147
        %v2149 = vpop.f32.mrb[0].mxu0
        %v2150 = vadd.f32 0.0, %v2149
        %2151 = vdwg.mxu0
        %v2153 = vsel %vm2070, %v1020, 0
        %2155 = vmatprep.subr.mxu0 %v2067
        %2156 = vmatpush1.msra.mxu0 %v2066
        %2157 = vmatprep.subr.mxu0 %v2079
        %2158 = vmatpush1.msra.mxu0 %v2076
        %2159 = vmatprep.subr.mxu0 0.0
        %2160 = vmatpush1.msra.mxu0 0.0
        %2161 = vmatprep.subr.mxu0 0.0
        %2162 = vmatpush1.msra.mxu0 0.0
        %2163 = vmatprep.subr.mxu0 0.0
        %2164 = vmatpush1.msra.mxu0 0.0
        %2165 = vmatprep.subr.mxu0 0.0
        %2166 = vmatpush1.msra.mxu0 0.0
        %2167 = vmatprep.subr.mxu0 0.0
        %2168 = vmatpush1.msra.mxu0 0.0
        %2169 = vmatprep.subr.mxu0 0.0
        %2170 = vmatpush1.msra.mxu0 0.0
        %2171 = vmatprep.subr.mxu0 0.0
        %2172 = vmatpush1.msra.mxu0 0.0
        %2173 = vmatprep.subr.mxu0 0.0
        %2174 = vmatpush1.msra.mxu0 0.0
        %2175 = vmatprep.subr.mxu0 0.0
        %2176 = vmatpush1.msra.mxu0 0.0
        %2177 = vmatprep.subr.mxu0 0.0
        %2178 = vmatpush1.msra.mxu0 0.0
        %2179 = vmatprep.subr.mxu0 0.0
        %2180 = vmatpush1.msra.mxu0 0.0
        %2181 = vmatprep.subr.mxu0 0.0
        %2182 = vmatpush1.msra.mxu0 0.0
        %2183 = vmatprep.subr.mxu0 0.0
        %2184 = vmatpush1.msra.mxu0 0.0
        %2185 = vmatprep.subr.mxu0 0.0
        %2186 = vmatpush1.msra.mxu0 0.0
        %2187 = vmatprep.subr.mxu0 0.0
        %2188 = vmatpush1.msra.mxu0 0.0
        %2189 = vmatprep.subr.mxu0 0.0
        %2190 = vmatpush1.msra.mxu0 0.0
        %2191 = vmatprep.subr.mxu0 0.0
        %2192 = vmatpush1.msra.mxu0 0.0
        %2193 = vmatprep.subr.mxu0 0.0
        %2194 = vmatpush1.msra.mxu0 0.0
        %2195 = vmatprep.subr.mxu0 0.0
        %2196 = vmatpush1.msra.mxu0 0.0
        %2197 = vmatprep.subr.mxu0 0.0
        %2198 = vmatpush1.msra.mxu0 0.0
        %2199 = vmatprep.subr.mxu0 0.0
        %2200 = vmatpush1.msra.mxu0 0.0
        %2201 = vmatprep.subr.mxu0 0.0
        %2202 = vmatpush1.msra.mxu0 0.0
        %2203 = vmatprep.subr.mxu0 0.0
        %2204 = vmatpush1.msra.mxu0 0.0
        %2205 = vmatprep.subr.mxu0 0.0
        %2206 = vmatpush1.msra.mxu0 0.0
        %2207 = vmatprep.subr.mxu0 0.0
        %2208 = vmatpush1.msra.mxu0 0.0
        %2209 = vmatprep.subr.mxu0 0.0
        %2210 = vmatpush1.msra.mxu0 0.0
        %2211 = vmatprep.subr.mxu0 0.0
        %2212 = vmatpush1.msra.mxu0 0.0
        %2213 = vmatprep.subr.mxu0 0.0
        %2214 = vmatpush1.msra.mxu0 0.0
        %2215 = vmatprep.subr.mxu0 0.0
        %2216 = vmatpush1.msra.mxu0 0.0
        %2217 = vmatprep.subr.mxu0 0.0
        %2218 = vmatpush1.msra.mxu0 0.0
        %2219 = vmatprep.mubr.f32.mxu0 0.0
        %2220 = vmatmul.mubr.f32.gmra.mrb[0].mxu0 %v2153
        %v2221 = vpop.f32.mrb[0].mxu0
        %v2222 = vadd.f32 0.0, %v2221
        %v2223 = vpop.f32.mrb[0].mxu0
        %v2224 = vadd.f32 0.0, %v2223
        %2225 = vdwg.mxu0
        %v2226 = vmax.f32 %v2148, %v2222
        %v2227 = vmax.f32 %v2150, %v2224
        %vm2228 = vcmask 392192
        %v2230 = vsel %vm2228, %v2227, 0
        %2232 = vmatprep.subr.mxu0 0.0
        %2233 = vmatpush1.msra.mxu0 %v1021
        %2234 = vmatprep.subr.mxu0 0.0
        %2235 = vmatpush1.msra.mxu0 %v1022
        %2236 = vmatprep.subr.mxu0 0.0
        %2237 = vmatpush1.msra.mxu0 %v1023
        %2238 = vmatprep.subr.mxu0 0.0
        %2239 = vmatpush1.msra.mxu0 %v1024
        %2240 = vmatprep.subr.mxu0 0.0
        %2241 = vmatpush1.msra.mxu0 %v1025
        %2242 = vmatprep.subr.mxu0 0.0
        %2243 = vmatpush1.msra.mxu0 %v1026
        %2244 = vmatprep.subr.mxu0 0.0
        %2245 = vmatpush1.msra.mxu0 %v1027
        %2246 = vmatprep.subr.mxu0 0.0
        %2247 = vmatpush1.msra.mxu0 %v1028
        %2248 = vmatprep.subr.mxu0 0.0
        %2249 = vmatpush1.msra.mxu0 %v1029
        %2250 = vmatprep.subr.mxu0 0.0
        %2251 = vmatpush1.msra.mxu0 %v1030
        %2252 = vmatprep.subr.mxu0 0.0
        %2253 = vmatpush1.msra.mxu0 %v1031
        %2254 = vmatprep.subr.mxu0 0.0
        %2255 = vmatpush1.msra.mxu0 %v1032
        %2256 = vmatprep.subr.mxu0 0.0
        %2257 = vmatpush1.msra.mxu0 %v1033
        %2258 = vmatprep.subr.mxu0 0.0
        %2259 = vmatpush1.msra.mxu0 %v1034
        %2260 = vmatprep.subr.mxu0 0.0
        %2261 = vmatpush1.msra.mxu0 %v1035
        %2262 = vmatprep.subr.mxu0 0.0
        %2263 = vmatpush1.msra.mxu0 %v1036
        %2264 = vmatprep.subr.mxu0 0.0
        %2265 = vmatpush1.msra.mxu0 %v1037
        %2266 = vmatprep.subr.mxu0 0.0
        %2267 = vmatpush1.msra.mxu0 %v1038
        %2268 = vmatprep.subr.mxu0 0.0
        %2269 = vmatpush1.msra.mxu0 %v1039
        %2270 = vmatprep.subr.mxu0 0.0
        %2271 = vmatpush1.msra.mxu0 %v1040
        %2272 = vmatprep.subr.mxu0 0.0
        %2273 = vmatpush1.msra.mxu0 %v1041
        %2274 = vmatprep.subr.mxu0 0.0
        %2275 = vmatpush1.msra.mxu0 %v1042
        %2276 = vmatprep.subr.mxu0 0.0
        %2277 = vmatpush1.msra.mxu0 0.0
        %2278 = vmatprep.subr.mxu0 0.0
        %2279 = vmatpush1.msra.mxu0 0.0
        %2280 = vmatprep.subr.mxu0 0.0
        %2281 = vmatpush1.msra.mxu0 0.0
        %2282 = vmatprep.subr.mxu0 0.0
        %2283 = vmatpush1.msra.mxu0 0.0
        %2284 = vmatprep.subr.mxu0 0.0
        %2285 = vmatpush1.msra.mxu0 0.0
        %2286 = vmatprep.subr.mxu0 0.0
        %2287 = vmatpush1.msra.mxu0 0.0
        %2288 = vmatprep.subr.mxu0 0.0
        %2289 = vmatpush1.msra.mxu0 0.0
        %2290 = vmatprep.subr.mxu0 0.0
        %2291 = vmatpush1.msra.mxu0 0.0
        %2292 = vmatprep.subr.mxu0 0.0
        %2293 = vmatpush1.msra.mxu0 0.0
        %2294 = vmatprep.subr.mxu0 0.0
        %2295 = vmatpush1.msra.mxu0 0.0
        %2296 = vmatprep.mubr.f32.mxu0 %v2230
        %2297 = vmatmul.mubr.f32.gmra.mrb[0].mxu0 %v2226
        %v2298 = vpop.f32.mrb[0].mxu0
        %v2299 = vadd.f32 0.0, %v2298
        %v2300 = vpop.f32.mrb[0].mxu0
        %2301 = vdwg.mxu0
        %2302 = vmatprep.subr.mxu0 0.0
        %2303 = vmatpush1.msra.mxu0 %v1043
        %2304 = vmatprep.subr.mxu0 0.0
        %2305 = vmatpush1.msra.mxu0 %v1044
        %2306 = vmatprep.subr.mxu0 0.0
        %2307 = vmatpush1.msra.mxu0 %v1045
        %2308 = vmatprep.subr.mxu0 0.0
        %2309 = vmatpush1.msra.mxu0 %v1046
        %2310 = vmatprep.subr.mxu0 0.0
        %2311 = vmatpush1.msra.mxu0 %v1047
        %2312 = vmatprep.subr.mxu0 0.0
        %2313 = vmatpush1.msra.mxu0 %v1048
        %2314 = vmatprep.subr.mxu0 0.0
        %2315 = vmatpush1.msra.mxu0 %v1049
        %2316 = vmatprep.subr.mxu0 0.0
        %2317 = vmatpush1.msra.mxu0 %v1050
        %2318 = vmatprep.subr.mxu0 0.0
        %2319 = vmatpush1.msra.mxu0 %v1051
        %2320 = vmatprep.subr.mxu0 0.0
        %2321 = vmatpush1.msra.mxu0 %v1052
        %2322 = vmatprep.subr.mxu0 0.0
        %2323 = vmatpush1.msra.mxu0 %v1053
        %2324 = vmatprep.subr.mxu0 0.0
        %2325 = vmatpush1.msra.mxu0 %v1054
        %2326 = vmatprep.subr.mxu0 0.0
        %2327 = vmatpush1.msra.mxu0 %v1055
        %2328 = vmatprep.subr.mxu0 0.0
        %2329 = vmatpush1.msra.mxu0 %v1056
        %2330 = vmatprep.subr.mxu0 0.0
        %2331 = vmatpush1.msra.mxu0 %v1057
        %2332 = vmatprep.subr.mxu0 0.0
        %2333 = vmatpush1.msra.mxu0 %v1058
        %2334 = vmatprep.subr.mxu0 0.0
        %2335 = vmatpush1.msra.mxu0 %v1059
        %2336 = vmatprep.subr.mxu0 0.0
        %2337 = vmatpush1.msra.mxu0 %v1060
        %2338 = vmatprep.subr.mxu0 0.0
        %2339 = vmatpush1.msra.mxu0 %v1061
        %2340 = vmatprep.subr.mxu0 0.0
        %2341 = vmatpush1.msra.mxu0 %v1062
        %2342 = vmatprep.subr.mxu0 0.0
        %2343 = vmatpush1.msra.mxu0 %v1063
        %2344 = vmatprep.subr.mxu0 0.0
        %2345 = vmatpush1.msra.mxu0 %v1064
        %2346 = vmatprep.subr.mxu0 0.0
        %2347 = vmatpush1.msra.mxu0 0.0
        %2348 = vmatprep.subr.mxu0 0.0
        %2349 = vmatpush1.msra.mxu0 0.0
        %2350 = vmatprep.subr.mxu0 0.0
        %2351 = vmatpush1.msra.mxu0 0.0
        %2352 = vmatprep.subr.mxu0 0.0
        %2353 = vmatpush1.msra.mxu0 0.0
        %2354 = vmatprep.subr.mxu0 0.0
        %2355 = vmatpush1.msra.mxu0 0.0
        %2356 = vmatprep.subr.mxu0 0.0
        %2357 = vmatpush1.msra.mxu0 0.0
        %2358 = vmatprep.subr.mxu0 0.0
        %2359 = vmatpush1.msra.mxu0 0.0
        %2360 = vmatprep.subr.mxu0 0.0
        %2361 = vmatpush1.msra.mxu0 0.0
        %2362 = vmatprep.subr.mxu0 0.0
        %2363 = vmatpush1.msra.mxu0 0.0
        %2364 = vmatprep.subr.mxu0 0.0
        %2365 = vmatpush1.msra.mxu0 0.0
        %2366 = vmatprep.mubr.f32.mxu0 %v2230
        %2367 = vmatmul.mubr.f32.gmra.mrb[0].mxu0 %v2226
        %v2368 = vpop.f32.mrb[0].mxu0
        %v2369 = vadd.f32 0.0, %v2368
        %v2370 = vpop.f32.mrb[0].mxu0
        %2371 = vdwg.mxu0
        %v2372 = vmax.f32 %v2299, %v2369
        %v2373 = vld [vmem:[%s17] sm:$0xff]
        %v2374 = vld [vmem:[%s17 + $0x8] sm:$0xff]
        %v2375 = vld [vmem:[%s17 + $0x10] sm:$0xff]
        %v2376 = vld [vmem:[%s17 + $0x18] sm:$0xff]
        %v2377 = vld [vmem:[%s17 + $0x20] sm:$0xff]
        %v2378 = vld [vmem:[%s17 + $0x28] sm:$0xff]
        %v2379 = vld [vmem:[%s17 + $0x30] sm:$0xff]
        %v2380 = vld [vmem:[%s17 + $0x38] sm:$0xff]
        %v2381 = vld [vmem:[%s17 + $0x40] sm:$0xff]
        %v2382 = vld [vmem:[%s17 + $0x48] sm:$0xff]
        %v2383 = vld [vmem:[%s17 + $0x50] sm:$0xff]
        %v2384 = vld [vmem:[%s17 + $0x58] sm:$0xff]
        %v2385 = vld [vmem:[%s17 + $0x60] sm:$0xff]
        %v2386 = vld [vmem:[%s17 + $0x68] sm:$0xff]
        %v2387 = vld [vmem:[%s17 + $0x70] sm:$0xff]
        %v2388 = vld [vmem:[%s17 + $0x78] sm:$0xff]
        %v2389 = vld [vmem:[%s17 + $0x80] sm:$0xff]
        %v2390 = vld [vmem:[%s17 + $0x88] sm:$0xff]
        %v2391 = vld [vmem:[%s17 + $0x90] sm:$0xff]
        %v2392 = vld [vmem:[%s17 + $0x98] sm:$0xff]
        %v2394 = vrot.slane %v2372, 1
        %vm2395 = vcmask 654336
        %v2396 = vsel %vm2395, %v2394, 0
        %2398 = vmatprep.subr.mxu0 0.0
        %2399 = vmatpush1.msra.mxu0 %v2383
        %2400 = vmatprep.subr.mxu0 0.0
        %2401 = vmatpush1.msra.mxu0 %v2384
        %2402 = vmatprep.subr.mxu0 0.0
        %2403 = vmatpush1.msra.mxu0 %v2385
        %2404 = vmatprep.subr.mxu0 0.0
        %2405 = vmatpush1.msra.mxu0 %v2386
        %2406 = vmatprep.subr.mxu0 0.0
        %2407 = vmatpush1.msra.mxu0 %v2387
        %2408 = vmatprep.subr.mxu0 0.0
        %2409 = vmatpush1.msra.mxu0 %v2388
        %2410 = vmatprep.subr.mxu0 0.0
        %2411 = vmatpush1.msra.mxu0 %v2389
        %2412 = vmatprep.subr.mxu0 0.0
        %2413 = vmatpush1.msra.mxu0 %v2390
        %2414 = vmatprep.subr.mxu0 0.0
        %2415 = vmatpush1.msra.mxu0 %v2391
        %2416 = vmatprep.subr.mxu0 0.0
        %2417 = vmatpush1.msra.mxu0 %v2392
        %2418 = vmatprep.subr.mxu0 0.0
        %2419 = vmatpush1.msra.mxu0 0.0
        %2420 = vmatprep.subr.mxu0 0.0
        %2421 = vmatpush1.msra.mxu0 0.0
        %2422 = vmatprep.subr.mxu0 0.0
        %2423 = vmatpush1.msra.mxu0 0.0
        %2424 = vmatprep.subr.mxu0 0.0
        %2425 = vmatpush1.msra.mxu0 0.0
        %2426 = vmatprep.subr.mxu0 0.0
        %2427 = vmatpush1.msra.mxu0 0.0
        %2428 = vmatprep.subr.mxu0 0.0
        %2429 = vmatpush1.msra.mxu0 0.0
        %2430 = vmatprep.subr.mxu0 0.0
        %2431 = vmatpush1.msra.mxu0 0.0
        %2432 = vmatprep.subr.mxu0 0.0
        %2433 = vmatpush1.msra.mxu0 0.0
        %2434 = vmatprep.subr.mxu0 0.0
        %2435 = vmatpush1.msra.mxu0 0.0
        %2436 = vmatprep.subr.mxu0 0.0
        %2437 = vmatpush1.msra.mxu0 0.0
        %2438 = vmatprep.subr.mxu0 0.0
        %2439 = vmatpush1.msra.mxu0 0.0
        %2440 = vmatprep.subr.mxu0 0.0
        %2441 = vmatpush1.msra.mxu0 0.0
        %2442 = vmatprep.subr.mxu0 0.0
        %2443 = vmatpush1.msra.mxu0 0.0
        %2444 = vmatprep.subr.mxu0 0.0
        %2445 = vmatpush1.msra.mxu0 0.0
        %2446 = vmatprep.subr.mxu0 0.0
        %2447 = vmatpush1.msra.mxu0 0.0
        %2448 = vmatprep.subr.mxu0 0.0
        %2449 = vmatpush1.msra.mxu0 0.0
        %2450 = vmatprep.subr.mxu0 0.0
        %2451 = vmatpush1.msra.mxu0 0.0
        %2452 = vmatprep.subr.mxu0 0.0
        %2453 = vmatpush1.msra.mxu0 0.0
        %2454 = vmatprep.subr.mxu0 0.0
        %2455 = vmatpush1.msra.mxu0 0.0
        %2456 = vmatprep.subr.mxu0 0.0
        %2457 = vmatpush1.msra.mxu0 0.0
        %2458 = vmatprep.subr.mxu0 0.0
        %2459 = vmatpush1.msra.mxu0 0.0
        %2460 = vmatprep.subr.mxu0 0.0
        %2461 = vmatpush1.msra.mxu0 0.0
        %2462 = vmatprep.mubr.f32.mxu0 0.0
        %2463 = vmatmul.mubr.f32.gmra.mrb[0].mxu0 %v2396
        %v2464 = vpop.f32.mrb[0].mxu0
        %v2465 = vadd.f32 0.0, %v2464
        %v2466 = vpop.f32.mrb[0].mxu0
        %2467 = vdwg.mxu0
        %v2468 = vsel %vm2395, %v2372, 0
        %2470 = vmatprep.subr.mxu0 0.0
        %2471 = vmatpush1.msra.mxu0 %v2373
        %2472 = vmatprep.subr.mxu0 0.0
        %2473 = vmatpush1.msra.mxu0 %v2374
        %2474 = vmatprep.subr.mxu0 0.0
        %2475 = vmatpush1.msra.mxu0 %v2375
        %2476 = vmatprep.subr.mxu0 0.0
        %2477 = vmatpush1.msra.mxu0 %v2376
        %2478 = vmatprep.subr.mxu0 0.0
        %2479 = vmatpush1.msra.mxu0 %v2377
        %2480 = vmatprep.subr.mxu0 0.0
        %2481 = vmatpush1.msra.mxu0 %v2378
        %2482 = vmatprep.subr.mxu0 0.0
        %2483 = vmatpush1.msra.mxu0 %v2379
        %2484 = vmatprep.subr.mxu0 0.0
        %2485 = vmatpush1.msra.mxu0 %v2380
        %2486 = vmatprep.subr.mxu0 0.0
        %2487 = vmatpush1.msra.mxu0 %v2381
        %2488 = vmatprep.subr.mxu0 0.0
        %2489 = vmatpush1.msra.mxu0 %v2382
        %2490 = vmatprep.subr.mxu0 0.0
        %2491 = vmatpush1.msra.mxu0 0.0
        %2492 = vmatprep.subr.mxu0 0.0
        %2493 = vmatpush1.msra.mxu0 0.0
        %2494 = vmatprep.subr.mxu0 0.0
        %2495 = vmatpush1.msra.mxu0 0.0
        %2496 = vmatprep.subr.mxu0 0.0
        %2497 = vmatpush1.msra.mxu0 0.0
        %2498 = vmatprep.subr.mxu0 0.0
        %2499 = vmatpush1.msra.mxu0 0.0
        %2500 = vmatprep.subr.mxu0 0.0
        %2501 = vmatpush1.msra.mxu0 0.0
        %2502 = vmatprep.subr.mxu0 0.0
        %2503 = vmatpush1.msra.mxu0 0.0
        %2504 = vmatprep.subr.mxu0 0.0
        %2505 = vmatpush1.msra.mxu0 0.0
        %2506 = vmatprep.subr.mxu0 0.0
        %2507 = vmatpush1.msra.mxu0 0.0
        %2508 = vmatprep.subr.mxu0 0.0
        %2509 = vmatpush1.msra.mxu0 0.0
        %2510 = vmatprep.subr.mxu0 0.0
        %2511 = vmatpush1.msra.mxu0 0.0
        %2512 = vmatprep.subr.mxu0 0.0
        %2513 = vmatpush1.msra.mxu0 0.0
        %2514 = vmatprep.subr.mxu0 0.0
        %2515 = vmatpush1.msra.mxu0 0.0
        %2516 = vmatprep.subr.mxu0 0.0
        %2517 = vmatpush1.msra.mxu0 0.0
        %2518 = vmatprep.subr.mxu0 0.0
        %2519 = vmatpush1.msra.mxu0 0.0
        %2520 = vmatprep.subr.mxu0 0.0
        %2521 = vmatpush1.msra.mxu0 0.0
        %2522 = vmatprep.subr.mxu0 0.0
        %2523 = vmatpush1.msra.mxu0 0.0
        %2524 = vmatprep.subr.mxu0 0.0
        %2525 = vmatpush1.msra.mxu0 0.0
        %2526 = vmatprep.subr.mxu0 0.0
        %2527 = vmatpush1.msra.mxu0 0.0
        %2528 = vmatprep.subr.mxu0 0.0
        %2529 = vmatpush1.msra.mxu0 0.0
        %2530 = vmatprep.subr.mxu0 0.0
        %2531 = vmatpush1.msra.mxu0 0.0
        %2532 = vmatprep.subr.mxu0 0.0
        %2533 = vmatpush1.msra.mxu0 0.0
        %2534 = vmatprep.mubr.f32.mxu0 0.0
        %2535 = vmatmul.mubr.f32.gmra.mrb[0].mxu0 %v2468
        %v2536 = vpop.f32.mrb[0].mxu0
        %v2537 = vadd.f32 %v2465, %v2536
        %v2538 = vpop.f32.mrb[0].mxu0
        %2539 = vdwg.mxu0
        %v2540 = vld [vmem:[%s17 + $0xa0] sm:$0xff]
        %v2541 = vld [vmem:[%s17 + $0xa8] sm:$0xff]
        %v2542 = vld [vmem:[%s17 + $0xb0] sm:$0xff]
        %v2543 = vld [vmem:[%s17 + $0xb8] sm:$0xff]
        %v2544 = vld [vmem:[%s17 + $0xc0] sm:$0xff]
        %v2545 = vld [vmem:[%s17 + $0xc8] sm:$0xff]
        %v2546 = vld [vmem:[%s17 + $0xd0] sm:$0xff]
        %v2547 = vld [vmem:[%s17 + $0xd8] sm:$0xff]
        %v2548 = vld [vmem:[%s17 + $0xe0] sm:$0xff]
        %v2549 = vld [vmem:[%s17 + $0xe8] sm:$0xff]
        %v2550 = vrot.slane %v2372, 2
        %v2551 = vsel %vm2395, %v2550, 0
        %2553 = vmatprep.subr.mxu0 0.0
        %2554 = vmatpush1.msra.mxu0 %v2540
        %2555 = vmatprep.subr.mxu0 0.0
        %2556 = vmatpush1.msra.mxu0 %v2541
        %2557 = vmatprep.subr.mxu0 0.0
        %2558 = vmatpush1.msra.mxu0 %v2542
        %2559 = vmatprep.subr.mxu0 0.0
        %2560 = vmatpush1.msra.mxu0 %v2543
        %2561 = vmatprep.subr.mxu0 0.0
        %2562 = vmatpush1.msra.mxu0 %v2544
        %2563 = vmatprep.subr.mxu0 0.0
        %2564 = vmatpush1.msra.mxu0 %v2545
        %2565 = vmatprep.subr.mxu0 0.0
        %2566 = vmatpush1.msra.mxu0 %v2546
        %2567 = vmatprep.subr.mxu0 0.0
        %2568 = vmatpush1.msra.mxu0 %v2547
        %2569 = vmatprep.subr.mxu0 0.0
        %2570 = vmatpush1.msra.mxu0 %v2548
        %2571 = vmatprep.subr.mxu0 0.0
        %2572 = vmatpush1.msra.mxu0 %v2549
        %2573 = vmatprep.subr.mxu0 0.0
        %2574 = vmatpush1.msra.mxu0 0.0
        %2575 = vmatprep.subr.mxu0 0.0
        %2576 = vmatpush1.msra.mxu0 0.0
        %2577 = vmatprep.subr.mxu0 0.0
        %2578 = vmatpush1.msra.mxu0 0.0
        %2579 = vmatprep.subr.mxu0 0.0
        %2580 = vmatpush1.msra.mxu0 0.0
        %2581 = vmatprep.subr.mxu0 0.0
        %2582 = vmatpush1.msra.mxu0 0.0
        %2583 = vmatprep.subr.mxu0 0.0
        %2584 = vmatpush1.msra.mxu0 0.0
        %2585 = vmatprep.subr.mxu0 0.0
        %2586 = vmatpush1.msra.mxu0 0.0
        %2587 = vmatprep.subr.mxu0 0.0
        %2588 = vmatpush1.msra.mxu0 0.0
        %2589 = vmatprep.subr.mxu0 0.0
        %2590 = vmatpush1.msra.mxu0 0.0
        %2591 = vmatprep.subr.mxu0 0.0
        %2592 = vmatpush1.msra.mxu0 0.0
        %2593 = vmatprep.subr.mxu0 0.0
        %2594 = vmatpush1.msra.mxu0 0.0
        %2595 = vmatprep.subr.mxu0 0.0
        %2596 = vmatpush1.msra.mxu0 0.0
        %2597 = vmatprep.subr.mxu0 0.0
        %2598 = vmatpush1.msra.mxu0 0.0
        %2599 = vmatprep.subr.mxu0 0.0
        %2600 = vmatpush1.msra.mxu0 0.0
        %2601 = vmatprep.subr.mxu0 0.0
        %2602 = vmatpush1.msra.mxu0 0.0
        %2603 = vmatprep.subr.mxu0 0.0
        %2604 = vmatpush1.msra.mxu0 0.0
        %2605 = vmatprep.subr.mxu0 0.0
        %2606 = vmatpush1.msra.mxu0 0.0
        %2607 = vmatprep.subr.mxu0 0.0
        %2608 = vmatpush1.msra.mxu0 0.0
        %2609 = vmatprep.subr.mxu0 0.0
        %2610 = vmatpush1.msra.mxu0 0.0
        %2611 = vmatprep.subr.mxu0 0.0
        %2612 = vmatpush1.msra.mxu0 0.0
        %2613 = vmatprep.subr.mxu0 0.0
        %2614 = vmatpush1.msra.mxu0 0.0
        %2615 = vmatprep.subr.mxu0 0.0
        %2616 = vmatpush1.msra.mxu0 0.0
        %2617 = vmatprep.mubr.f32.mxu0 0.0
        %2618 = vmatmul.mubr.f32.gmra.mrb[0].mxu0 %v2551
        %v2619 = vpop.f32.mrb[0].mxu0
        %v2620 = vadd.f32 0.0, %v2619
        %v2621 = vpop.f32.mrb[0].mxu0
        %2622 = vdwg.mxu0
        %v2623 = vadd.f32 %v2537, %v2620
        %v2624 = vld [vmem:[%s17 + $0xf0] sm:$0xff]
        %v2625 = vld [vmem:[%s17 + $0xf8] sm:$0xff]
        %v2626 = vld [vmem:[%s17 + $0x100] sm:$0xff]
        %v2627 = vld [vmem:[%s17 + $0x108] sm:$0xff]
        %v2628 = vld [vmem:[%s17 + $0x110] sm:$0xff]
        %v2629 = vld [vmem:[%s17 + $0x118] sm:$0xff]
        %v2630 = vld [vmem:[%s17 + $0x120] sm:$0xff]
        %v2631 = vld [vmem:[%s17 + $0x128] sm:$0xff]
        %v2632 = vld [vmem:[%s17 + $0x130] sm:$0xff]
        %v2633 = vld [vmem:[%s17 + $0x138] sm:$0xff]
        %v2634 = vrot.slane %v2372, 3
        %v2635 = vsel %vm2395, %v2634, 0
        %2637 = vmatprep.subr.mxu0 0.0
        %2638 = vmatpush1.msra.mxu0 %v2624
        %2639 = vmatprep.subr.mxu0 0.0
        %2640 = vmatpush1.msra.mxu0 %v2625
        %2641 = vmatprep.subr.mxu0 0.0
        %2642 = vmatpush1.msra.mxu0 %v2626
        %2643 = vmatprep.subr.mxu0 0.0
        %2644 = vmatpush1.msra.mxu0 %v2627
        %2645 = vmatprep.subr.mxu0 0.0
        %2646 = vmatpush1.msra.mxu0 %v2628
        %2647 = vmatprep.subr.mxu0 0.0
        %2648 = vmatpush1.msra.mxu0 %v2629
        %2649 = vmatprep.subr.mxu0 0.0
        %2650 = vmatpush1.msra.mxu0 %v2630
        %2651 = vmatprep.subr.mxu0 0.0
        %2652 = vmatpush1.msra.mxu0 %v2631
        %2653 = vmatprep.subr.mxu0 0.0
        %2654 = vmatpush1.msra.mxu0 %v2632
        %2655 = vmatprep.subr.mxu0 0.0
        %2656 = vmatpush1.msra.mxu0 %v2633
        %2657 = vmatprep.subr.mxu0 0.0
        %2658 = vmatpush1.msra.mxu0 0.0
        %2659 = vmatprep.subr.mxu0 0.0
        %2660 = vmatpush1.msra.mxu0 0.0
        %2661 = vmatprep.subr.mxu0 0.0
        %2662 = vmatpush1.msra.mxu0 0.0
        %2663 = vmatprep.subr.mxu0 0.0
        %2664 = vmatpush1.msra.mxu0 0.0
        %2665 = vmatprep.subr.mxu0 0.0
        %2666 = vmatpush1.msra.mxu0 0.0
        %2667 = vmatprep.subr.mxu0 0.0
        %2668 = vmatpush1.msra.mxu0 0.0
        %2669 = vmatprep.subr.mxu0 0.0
        %2670 = vmatpush1.msra.mxu0 0.0
        %2671 = vmatprep.subr.mxu0 0.0
        %2672 = vmatpush1.msra.mxu0 0.0
        %2673 = vmatprep.subr.mxu0 0.0
        %2674 = vmatpush1.msra.mxu0 0.0
        %2675 = vmatprep.subr.mxu0 0.0
        %2676 = vmatpush1.msra.mxu0 0.0
        %2677 = vmatprep.subr.mxu0 0.0
        %2678 = vmatpush1.msra.mxu0 0.0
        %2679 = vmatprep.subr.mxu0 0.0
        %2680 = vmatpush1.msra.mxu0 0.0
        %2681 = vmatprep.subr.mxu0 0.0
        %2682 = vmatpush1.msra.mxu0 0.0
        %2683 = vmatprep.subr.mxu0 0.0
        %2684 = vmatpush1.msra.mxu0 0.0
        %2685 = vmatprep.subr.mxu0 0.0
        %2686 = vmatpush1.msra.mxu0 0.0
        %2687 = vmatprep.subr.mxu0 0.0
        %2688 = vmatpush1.msra.mxu0 0.0
        %2689 = vmatprep.subr.mxu0 0.0
        %2690 = vmatpush1.msra.mxu0 0.0
        %2691 = vmatprep.subr.mxu0 0.0
        %2692 = vmatpush1.msra.mxu0 0.0
        %2693 = vmatprep.subr.mxu0 0.0
        %2694 = vmatpush1.msra.mxu0 0.0
        %2695 = vmatprep.subr.mxu0 0.0
        %2696 = vmatpush1.msra.mxu0 0.0
        %2697 = vmatprep.subr.mxu0 0.0
        %2698 = vmatpush1.msra.mxu0 0.0
        %2699 = vmatprep.subr.mxu0 0.0
        %2700 = vmatpush1.msra.mxu0 0.0
        %2701 = vmatprep.mubr.f32.mxu0 0.0
        %2702 = vmatmul.mubr.f32.gmra.mrb[0].mxu0 %v2635
        %v2703 = vpop.f32.mrb[0].mxu0
        %v2704 = vadd.f32 0.0, %v2703
        %v2705 = vpop.f32.mrb[0].mxu0
        %2706 = vdwg.mxu0
        %v2707 = vadd.f32 %v2623, %v2704
        %v2708 = vld [vmem:[%s17 + $0x140] sm:$0xff]
        %v2709 = vld [vmem:[%s17 + $0x148] sm:$0xff]
        %v2710 = vld [vmem:[%s17 + $0x150] sm:$0xff]
        %v2711 = vld [vmem:[%s17 + $0x158] sm:$0xff]
        %v2712 = vld [vmem:[%s17 + $0x160] sm:$0xff]
        %v2713 = vld [vmem:[%s17 + $0x168] sm:$0xff]
        %v2714 = vld [vmem:[%s17 + $0x170] sm:$0xff]
        %v2715 = vld [vmem:[%s17 + $0x178] sm:$0xff]
        %v2716 = vld [vmem:[%s17 + $0x180] sm:$0xff]
        %v2717 = vld [vmem:[%s17 + $0x188] sm:$0xff]
        %v2718 = vrot.slane %v2372, 4
        %v2719 = vsel %vm2395, %v2718, 0
        %2721 = vmatprep.subr.mxu0 0.0
        %2722 = vmatpush1.msra.mxu0 %v2708
        %2723 = vmatprep.subr.mxu0 0.0
        %2724 = vmatpush1.msra.mxu0 %v2709
        %2725 = vmatprep.subr.mxu0 0.0
        %2726 = vmatpush1.msra.mxu0 %v2710
        %2727 = vmatprep.subr.mxu0 0.0
        %2728 = vmatpush1.msra.mxu0 %v2711
        %2729 = vmatprep.subr.mxu0 0.0
        %2730 = vmatpush1.msra.mxu0 %v2712
        %2731 = vmatprep.subr.mxu0 0.0
        %2732 = vmatpush1.msra.mxu0 %v2713
        %2733 = vmatprep.subr.mxu0 0.0
        %2734 = vmatpush1.msra.mxu0 %v2714
        %2735 = vmatprep.subr.mxu0 0.0
        %2736 = vmatpush1.msra.mxu0 %v2715
        %2737 = vmatprep.subr.mxu0 0.0
        %2738 = vmatpush1.msra.mxu0 %v2716
        %2739 = vmatprep.subr.mxu0 0.0
        %2740 = vmatpush1.msra.mxu0 %v2717
        %2741 = vmatprep.subr.mxu0 0.0
        %2742 = vmatpush1.msra.mxu0 0.0
        %2743 = vmatprep.subr.mxu0 0.0
        %2744 = vmatpush1.msra.mxu0 0.0
        %2745 = vmatprep.subr.mxu0 0.0
        %2746 = vmatpush1.msra.mxu0 0.0
        %2747 = vmatprep.subr.mxu0 0.0
        %2748 = vmatpush1.msra.mxu0 0.0
        %2749 = vmatprep.subr.mxu0 0.0
        %2750 = vmatpush1.msra.mxu0 0.0
        %2751 = vmatprep.subr.mxu0 0.0
        %2752 = vmatpush1.msra.mxu0 0.0
        %2753 = vmatprep.subr.mxu0 0.0
        %2754 = vmatpush1.msra.mxu0 0.0
        %2755 = vmatprep.subr.mxu0 0.0
        %2756 = vmatpush1.msra.mxu0 0.0
        %2757 = vmatprep.subr.mxu0 0.0
        %2758 = vmatpush1.msra.mxu0 0.0
        %2759 = vmatprep.subr.mxu0 0.0
        %2760 = vmatpush1.msra.mxu0 0.0
        %2761 = vmatprep.subr.mxu0 0.0
        %2762 = vmatpush1.msra.mxu0 0.0
        %2763 = vmatprep.subr.mxu0 0.0
        %2764 = vmatpush1.msra.mxu0 0.0
        %2765 = vmatprep.subr.mxu0 0.0
        %2766 = vmatpush1.msra.mxu0 0.0
        %2767 = vmatprep.subr.mxu0 0.0
        %2768 = vmatpush1.msra.mxu0 0.0
        %2769 = vmatprep.subr.mxu0 0.0
        %2770 = vmatpush1.msra.mxu0 0.0
        %2771 = vmatprep.subr.mxu0 0.0
        %2772 = vmatpush1.msra.mxu0 0.0
        %2773 = vmatprep.subr.mxu0 0.0
        %2774 = vmatpush1.msra.mxu0 0.0
        %2775 = vmatprep.subr.mxu0 0.0
        %2776 = vmatpush1.msra.mxu0 0.0
        %2777 = vmatprep.subr.mxu0 0.0
        %2778 = vmatpush1.msra.mxu0 0.0
        %2779 = vmatprep.subr.mxu0 0.0
        %2780 = vmatpush1.msra.mxu0 0.0
        %2781 = vmatprep.subr.mxu0 0.0
        %2782 = vmatpush1.msra.mxu0 0.0
        %2783 = vmatprep.subr.mxu0 0.0
        %2784 = vmatpush1.msra.mxu0 0.0
        %2785 = vmatprep.mubr.f32.mxu0 0.0
        %2786 = vmatmul.mubr.f32.gmra.mrb[0].mxu0 %v2719
        %v2787 = vpop.f32.mrb[0].mxu0
        %v2788 = vadd.f32 0.0, %v2787
        %v2789 = vpop.f32.mrb[0].mxu0
        %2790 = vdwg.mxu0
        %v2791 = vadd.f32 %v2707, %v2788
        %v2792 = vld [vmem:[%s18] sm:$0x1]
        %v2793 = vadd.f32 %v2791, %v2792
        %v2794 = vmax.f32 %v2793, 0.0
        %v2795 = vld [vmem:[#allocation20] sm:$0xff]
        %v2796 = vld [vmem:[#allocation20 + $0x8] sm:$0xff]
        %v2797 = vld [vmem:[#allocation20 + $0x10] sm:$0xff]
        %v2798 = vld [vmem:[#allocation20 + $0x18] sm:$0xff]
        %v2799 = vld [vmem:[#allocation20 + $0x20] sm:$0xff]
        %v2800 = vld [vmem:[#allocation20 + $0x28] sm:$0xff]
        %v2801 = vld [vmem:[#allocation20 + $0x30] sm:$0xff]
        %v2802 = vld [vmem:[#allocation20 + $0x38] sm:$0xff]
        %v2803 = vld [vmem:[#allocation20 + $0x40] sm:$0xff]
        %v2804 = vld [vmem:[#allocation20 + $0x48] sm:$0xff]
        %v2805 = vld [vmem:[#allocation20 + $0x50] sm:$0xff]
        %v2806 = vld [vmem:[#allocation20 + $0x58] sm:$0xff]
        %v2807 = vld [vmem:[#allocation20 + $0x60] sm:$0xff]
        %v2808 = vld [vmem:[#allocation20 + $0x68] sm:$0xff]
        %v2809 = vld [vmem:[#allocation20 + $0x70] sm:$0xff]
        %v2810 = vld [vmem:[#allocation20 + $0x78] sm:$0xff]
        %v2811 = vld [vmem:[%s20] sm:$0x1]
        %2812 = vmatprep.subr.mxu0 0.0
        %2813 = vmatpush1.msra.mxu0 %v2795
        %2814 = vmatprep.subr.mxu0 0.0
        %2815 = vmatpush1.msra.mxu0 %v2796
        %2816 = vmatprep.subr.mxu0 0.0
        %2817 = vmatpush1.msra.mxu0 %v2797
        %2818 = vmatprep.subr.mxu0 0.0
        %2819 = vmatpush1.msra.mxu0 %v2798
        %2820 = vmatprep.subr.mxu0 0.0
        %2821 = vmatpush1.msra.mxu0 %v2799
        %2822 = vmatprep.subr.mxu0 0.0
        %2823 = vmatpush1.msra.mxu0 %v2800
        %2824 = vmatprep.subr.mxu0 0.0
        %2825 = vmatpush1.msra.mxu0 %v2801
        %2826 = vmatprep.subr.mxu0 0.0
        %2827 = vmatpush1.msra.mxu0 %v2802
        %2828 = vmatprep.subr.mxu0 0.0
        %2829 = vmatpush1.msra.mxu0 %v2803
        %2830 = vmatprep.subr.mxu0 0.0
        %2831 = vmatpush1.msra.mxu0 %v2804
        %2832 = vmatprep.subr.mxu0 0.0
        %2833 = vmatpush1.msra.mxu0 %v2805
        %2834 = vmatprep.subr.mxu0 0.0
        %2835 = vmatpush1.msra.mxu0 %v2806
        %2836 = vmatprep.subr.mxu0 0.0
        %2837 = vmatpush1.msra.mxu0 %v2807
        %2838 = vmatprep.subr.mxu0 0.0
        %2839 = vmatpush1.msra.mxu0 %v2808
        %2840 = vmatprep.subr.mxu0 0.0
        %2841 = vmatpush1.msra.mxu0 %v2809
        %2842 = vmatprep.subr.mxu0 0.0
        %2843 = vmatpush1.msra.mxu0 %v2810
        %2844 = vmatprep.subr.mxu0 0.0
        %2845 = vmatpush1.msra.mxu0 0.0
        %2846 = vmatprep.subr.mxu0 0.0
        %2847 = vmatpush1.msra.mxu0 0.0
        %2848 = vmatprep.subr.mxu0 0.0
        %2849 = vmatpush1.msra.mxu0 0.0
        %2850 = vmatprep.subr.mxu0 0.0
        %2851 = vmatpush1.msra.mxu0 0.0
        %2852 = vmatprep.subr.mxu0 0.0
        %2853 = vmatpush1.msra.mxu0 0.0
        %2854 = vmatprep.subr.mxu0 0.0
        %2855 = vmatpush1.msra.mxu0 0.0
        %2856 = vmatprep.subr.mxu0 0.0
        %2857 = vmatpush1.msra.mxu0 0.0
        %2858 = vmatprep.subr.mxu0 0.0
        %2859 = vmatpush1.msra.mxu0 0.0
        %2860 = vmatprep.subr.mxu0 0.0
        %2861 = vmatpush1.msra.mxu0 0.0
        %2862 = vmatprep.subr.mxu0 0.0
        %2863 = vmatpush1.msra.mxu0 0.0
        %2864 = vmatprep.subr.mxu0 0.0
        %2865 = vmatpush1.msra.mxu0 0.0
        %2866 = vmatprep.subr.mxu0 0.0
        %2867 = vmatpush1.msra.mxu0 0.0
        %2868 = vmatprep.subr.mxu0 0.0
        %2869 = vmatpush1.msra.mxu0 0.0
        %2870 = vmatprep.subr.mxu0 0.0
        %2871 = vmatpush1.msra.mxu0 0.0
        %2872 = vmatprep.subr.mxu0 0.0
        %2873 = vmatpush1.msra.mxu0 0.0
        %2874 = vmatprep.subr.mxu0 0.0
        %2875 = vmatpush1.msra.mxu0 0.0
        %2876 = vmatprep.mubr.f32.mxu0 0.0
        %2877 = vmatmul.mubr.f32.gmra.mrb[0].mxu0 %v2794
        %v2878 = vpop.f32.mrb[0].mxu0
        %v2879 = vadd.f32 %v2811, %v2878
        %v2880 = vpop.f32.mrb[0].mxu0
        %2881 = vdwg.mxu0
        %v2882 = vmax.f32 %v2879, 0.0
        %v2883 = vld [vmem:[#allocation22] sm:$0xff]
        %v2884 = vld [vmem:[#allocation22 + $0x8] sm:$0xff]
        %v2885 = vld [vmem:[#allocation22 + $0x10] sm:$0xff]
        %v2886 = vld [vmem:[#allocation22 + $0x18] sm:$0xff]
        %v2887 = vld [vmem:[#allocation22 + $0x20] sm:$0xff]
        %v2888 = vld [vmem:[#allocation22 + $0x28] sm:$0xff]
        %v2889 = vld [vmem:[#allocation22 + $0x30] sm:$0xff]
        %v2890 = vld [vmem:[#allocation22 + $0x38] sm:$0xff]
        %v2891 = vld [vmem:[#allocation22 + $0x40] sm:$0xff]
        %v2892 = vld [vmem:[#allocation22 + $0x48] sm:$0xff]
        %v2893 = vld [vmem:[#allocation22 + $0x50] sm:$0xff]
        %v2894 = vld [vmem:[#allocation22 + $0x58] sm:$0xff]
        %v2895 = vld [vmem:[#allocation22 + $0x60] sm:$0xff]
        %v2896 = vld [vmem:[#allocation22 + $0x68] sm:$0xff]
        %v2897 = vld [vmem:[#allocation22 + $0x70] sm:$0xff]
        %v2898 = vld [vmem:[#allocation22 + $0x78] sm:$0xff]
        %v2899 = vld [vmem:[%s22] sm:$0x1]
        %2900 = vmatprep.subr.mxu0 0.0
        %2901 = vmatpush1.msra.mxu0 %v2883
        %2902 = vmatprep.subr.mxu0 0.0
        %2903 = vmatpush1.msra.mxu0 %v2884
        %2904 = vmatprep.subr.mxu0 0.0
        %2905 = vmatpush1.msra.mxu0 %v2885
        %2906 = vmatprep.subr.mxu0 0.0
        %2907 = vmatpush1.msra.mxu0 %v2886
        %2908 = vmatprep.subr.mxu0 0.0
        %2909 = vmatpush1.msra.mxu0 %v2887
        %2910 = vmatprep.subr.mxu0 0.0
        %2911 = vmatpush1.msra.mxu0 %v2888
        %2912 = vmatprep.subr.mxu0 0.0
        %2913 = vmatpush1.msra.mxu0 %v2889
        %2914 = vmatprep.subr.mxu0 0.0
        %2915 = vmatpush1.msra.mxu0 %v2890
        %2916 = vmatprep.subr.mxu0 0.0
        %2917 = vmatpush1.msra.mxu0 %v2891
        %2918 = vmatprep.subr.mxu0 0.0
        %2919 = vmatpush1.msra.mxu0 %v2892
        %2920 = vmatprep.subr.mxu0 0.0
        %2921 = vmatpush1.msra.mxu0 %v2893
        %2922 = vmatprep.subr.mxu0 0.0
        %2923 = vmatpush1.msra.mxu0 %v2894
        %2924 = vmatprep.subr.mxu0 0.0
        %2925 = vmatpush1.msra.mxu0 %v2895
        %2926 = vmatprep.subr.mxu0 0.0
        %2927 = vmatpush1.msra.mxu0 %v2896
        %2928 = vmatprep.subr.mxu0 0.0
        %2929 = vmatpush1.msra.mxu0 %v2897
        %2930 = vmatprep.subr.mxu0 0.0
        %2931 = vmatpush1.msra.mxu0 %v2898
        %2932 = vmatprep.subr.mxu0 0.0
        %2933 = vmatpush1.msra.mxu0 0.0
        %2934 = vmatprep.subr.mxu0 0.0
        %2935 = vmatpush1.msra.mxu0 0.0
        %2936 = vmatprep.subr.mxu0 0.0
        %2937 = vmatpush1.msra.mxu0 0.0
        %2938 = vmatprep.subr.mxu0 0.0
        %2939 = vmatpush1.msra.mxu0 0.0
        %2940 = vmatprep.subr.mxu0 0.0
        %2941 = vmatpush1.msra.mxu0 0.0
        %2942 = vmatprep.subr.mxu0 0.0
        %2943 = vmatpush1.msra.mxu0 0.0
        %2944 = vmatprep.subr.mxu0 0.0
        %2945 = vmatpush1.msra.mxu0 0.0
        %2946 = vmatprep.subr.mxu0 0.0
        %2947 = vmatpush1.msra.mxu0 0.0
        %2948 = vmatprep.subr.mxu0 0.0
        %2949 = vmatpush1.msra.mxu0 0.0
        %2950 = vmatprep.subr.mxu0 0.0
        %2951 = vmatpush1.msra.mxu0 0.0
        %2952 = vmatprep.subr.mxu0 0.0
        %2953 = vmatpush1.msra.mxu0 0.0
        %2954 = vmatprep.subr.mxu0 0.0
        %2955 = vmatpush1.msra.mxu0 0.0
        %2956 = vmatprep.subr.mxu0 0.0
        %2957 = vmatpush1.msra.mxu0 0.0
        %2958 = vmatprep.subr.mxu0 0.0
        %2959 = vmatpush1.msra.mxu0 0.0
        %2960 = vmatprep.subr.mxu0 0.0
        %2961 = vmatpush1.msra.mxu0 0.0
        %2962 = vmatprep.subr.mxu0 0.0
        %2963 = vmatpush1.msra.mxu0 0.0
        %2964 = vmatprep.mubr.f32.mxu0 0.0
        %2965 = vmatmul.mubr.f32.gmra.mrb[0].mxu0 %v2882
        %v2966 = vpop.f32.mrb[0].mxu0
        %v2967 = vadd.f32 %v2899, %v2966
        %v2968 = vpop.f32.mrb[0].mxu0
        %2969 = vdwg.mxu0
        %v2970 = vlaneseq
        %v2971 = vand.u32 %v2970, 127
        %vm2972 = vcmp.lt.s32.totalorder %v2971, 10
        %v2973 = vsel %vm2972, %v2967, -1e+30
        %vm2974 = vcmask 1040384
        %v2975 = vsel %vm2974, %v2973, -inf
        %2976 = vmax.xlane.f32.xlu0 %v2975
        %v2977 = vpop.xlane.xlu0 %2976
        %v2978 = vsub.f32 %v2973, %v2977
        %v2979 = vmul.f32 %v2978, 1.442695
        %v2980 = vpow.pop %v2979
        %v2981 = vsel %vm2972, %v2980, 0.0
        %v2982 = vsel %vm2974, %v2981, 0.0
        %2983 = vadd.xlane.f32.xlu0 %v2982
        %v2984 = vpop.xlane.xlu0 %2983
        %v2985 = vlog2.pop %v2984
        %v2986 = vmul.f32 %v2985, 0.6931472
        %v2987 = vsub.f32 %v2978, %v2986
        %2988 = vst [vmem:[%s883] sm:$0x1] %v2987
        %s2989 = sand.u32 %s540, 1
        %s2990 = scalar_lea.sflag [#allocation4], %s2989
        %s2991 = sand.u32 %s540, 1
        %s2992 = scalar_lea.vmem [#allocation23], %s2991
        // Predicated region
        $region165: #{cnn_forward.1} parent=111 // pred_check
          %p2993 = pneg %p550
        $region166: #{cnn_forward.1} parent=111 // pred_check_branch
          %2995 = sbr.rel (%p2993) target = $region168
        $region167: #{cnn_forward.1} parent=111 // pred_region
          %s2997 = ssub.s32 16, 16
          %2998 = vsyncadd %s2990, %s2997
          %s2999 = smul.addr %s44, 16
          %s3000 = scalar_lea.hbm %s23, %s2999
          %s3002 = sshll.u32 %s2992, 4
          %s3003 = int_to_ptr.vmem [resolvable:$true] %s3002
          %3005 = dma.vmem_to_hbm [thread:$0]  %s3003, 16, %s3000, %s2990
        $region168: #{cnn_forward.1} parent=111 // pred_fallthru
          _
      $region112: #{cnn_forward.1} parent=5 // pred_fallthru
        _
      %p3006 = scmp.le.s32.totalorder 2, %s39
      // Predicated region
      $region169: #{cnn_forward.1} parent=5 // pred_check
        %p3007 = pneg %p3006
      $region170: #{cnn_forward.1} parent=5 // pred_check_branch
        %3009 = sbr.rel (%p3007) target = $region172
      $region171: #{cnn_forward.1} parent=5 // pred_region
        %s3010 = ssub.s32 %s39, 2
        // Predicated region
        $region173: #{cnn_forward.1} parent=171 // pred_check
          %p3011 = pneg %p556
        $region174: #{cnn_forward.1} parent=171 // pred_check_branch
          %3013 = sbr.rel (%p3011) target = $region176
        $region175: #{cnn_forward.1} parent=171 // pred_region
          %s3014 = sand.u32 %s541, 1
          %s3015 = scalar_lea.sflag [#allocation4], %s3014
          %s3016 = sand.u32 %s541, 1
          %s3017 = scalar_lea.vmem [#allocation23], %s3016
          %3018 = dma.done %s3015, 16
        $region176: #{cnn_forward.1} parent=171 // pred_fallthru
          _
      $region172: #{cnn_forward.1} parent=5 // pred_fallthru
        _
    $region6: #{cnn_forward.1} parent=1 // loop_footer
      %s43 = sadd.s32 1, %s39
    $region7: #{cnn_forward.1} parent=1 // loop_footer_branch
      %38 = sbr.rel target = $region3
    $region8: #{cnn_forward.1} parent=1 // loop_exit
      _
    %3019 = vsyncpa [#allocation3], 1
    %s3020 = scalar_lea.sflag [#allocation3], 1
    %3021 = vsyncpa %s3020, 1
    %3022 = vsyncpa [#allocation6], 1
    %3023 = vsyncpa [#allocation9], 1
    %3024 = vsyncpa [#allocation12], 1
    %3025 = vsyncpa [#allocation15], 1
    %3026 = vsyncpa [#allocation18], 1
    %3027 = vsyncpa [#allocation21], 1
    %3028 = vsyncpa [#allocation4], 1
    %s3029 = scalar_lea.sflag [#allocation4], 1
    %3030 = vsyncpa %s3029, 1

</llo_original>
